<compile_context>
chip_gen: v5e
topology: v5e:2x2
jax: 0.10.0
libtpu: 0.0.40
codegen_flags: <defaults>
</compile_context>

<pallas_src>
import functools

import numpy as np
import jax
import jax.numpy as jnp
from jax.experimental import pallas as pl
from jax.experimental.pallas import tpu as pltpu

NEG_SLOPE = 0.2                 # nn.LeakyReLU(0.2)
EPS = 1e-5                      # nn.InstanceNorm2d default eps
VMEM_LIMIT = 32 * 1024 * 1024   # safe scoped-VMEM limit on v5e / v6e / v7x


def _leaky(y):
    return jnp.where(y >= 0, y, NEG_SLOPE * y)


def _round_up(v, m):
    return (v + m - 1) // m * m


def _layer_dims(img_size):
    """Static geometry for the four k=4 / s=2 / p=1 convs."""
    o, s = [], img_size
    for _ in range(4):
        s //= 2
        o.append(s)                                  # 32, 16, 8, 4 for img_size=64
    dims = []
    for l in range(4):
        oh = o[l]
        owp = oh + 1                                 # block-grid pitch of layer l's padded input
        dims.append({"oh": oh, "owp": owp, "mp": oh * owp})
    ncols = {}
    for l in (1, 2, 3):
        owp = dims[l]["owp"]
        need = max(owp * owp, dims[l]["mp"] + owp + 2)
        ncols[l] = _round_up(need, 128)              # lane-aligned width of S_l scratch
    return o, dims, ncols


# ----------------------------- fused Pallas kernel ---------------------------

def _disc_kernel(a_ref, w0_ref, b0_ref, m0_ref,
                 w1_ref, g1_ref, be1_ref, m1_ref, p1_ref,
                 w2_ref, g2_ref, be2_ref, m2_ref, p2_ref,
                 w3_ref, g3_ref, be3_ref, m3_ref,
                 w4_ref, b4_ref,
                 o_ref,
                 s1_ref, s2_ref, s3_ref,
                 *, cfg):
    c1, c2, c3, _ = cfg["cout"]

    # ---- layer 0: Conv(k4,s2,p1) + bias + LeakyReLU --------------------------
    # One merged-K GEMM (K = 16*Cin0) per output phase; written straight into
    # the space-to-depth layout S1 consumed by layer 1.  Lane-dense output.
    for ph in range(4):
        acc = jnp.dot(w0_ref[...], a_ref[0, ph],
                      preferred_element_type=jnp.float32)          # (c1, NCOLS1)
        y = _leaky(acc + b0_ref[...]) * m0_ref[ph:ph + 1, :]
        s1_ref[ph * c1:(ph + 1) * c1, :] = y

    def conv_in_lrelu(s_ref, w_ref, g_ref, be_ref, m_ref, layer):
        """Conv(k4,s2,p1,no bias) + InstanceNorm2d(affine) + LeakyReLU, fused.

        Input is the space-to-depth scratch (4*Cin, NCOLS); the conv is 4
        lane-shifted GEMMs; output is (Cout, mp) with spatial on lanes.
        """
        owp, mp, inv_cnt = cfg[layer]
        acc = jnp.dot(w_ref[0], s_ref[:, pl.ds(0, mp)].astype(jnp.bfloat16),
                      preferred_element_type=jnp.float32)
        for s, shift in ((1, 1), (2, owp), (3, owp + 1)):
            acc = acc + jnp.dot(w_ref[s],
                                s_ref[:, pl.ds(shift, mp)].astype(jnp.bfloat16),
                                preferred_element_type=jnp.float32)
        mask = m_ref[...]                                           # (1, mp)
        mean = jnp.sum(acc * mask, axis=1, keepdims=True) * inv_cnt
        ctr = acc - mean
        var = jnp.sum(ctr * ctr * mask, axis=1, keepdims=True) * inv_cnt
        y = ctr * jax.lax.rsqrt(var + EPS)                          # biased var
        return _leaky(y * g_ref[...] + be_ref[...])

    def relayout(y, p_ref, s_next_ref, cout):
        # In-kernel space-to-depth via tiny constant 0/1 matrices on the MXU.
        yb = y.astype(jnp.bfloat16)
        for ph in range(4):
            s_next_ref[ph * cout:(ph + 1) * cout, :] = jnp.dot(
                yb, p_ref[ph], preferred_element_type=jnp.float32)

    y1 = conv_in_lrelu(s1_ref, w1_ref, g1_ref, be1_ref, m1_ref, "l1")
    relayout(y1, p1_ref, s2_ref, c2)
    y2 = conv_in_lrelu(s2_ref, w2_ref, g2_ref, be2_ref, m2_ref, "l2")
    relayout(y2, p2_ref, s3_ref, c3)
    y3 = conv_in_lrelu(s3_ref, w3_ref, g3_ref, be3_ref, m3_ref, "l3")

    # ---- final Conv2d(8*fd -> 1, k=4, s=2, p=0) on the 4x4 map: one dot ------
    t = y3 * w4_ref[...]                                            # (c4, mp3)
    v = jnp.sum(t, axis=1, keepdims=True)                           # (c4, 1)
    o_ref[0] = jnp.sum(v, axis=0, keepdims=True) + b4_ref[...]      # (1, 1)


# -------------------------- one-time parameter prep --------------------------

def _prep_w0(w):
    """(4,4,C0,Cout) -> (Cout, 16*C0) bf16; k = (p*4+q)*C0 + ci."""
    kh, kw, c0, cout = w.shape
    return jnp.asarray(w).transpose(3, 0, 1, 2).reshape(cout, kh * kw * c0).astype(jnp.bfloat16)


def _prep_wl(w):
    """(4,4,Cin,Cout) -> (4, Cout, 4*Cin) bf16; s = 2*di+dj, col = (2*pi+pj)*Cin+ci."""
    _, _, cin, cout = w.shape
    w6 = jnp.asarray(w).reshape(2, 2, 2, 2, cin, cout)   # (di, pi, dj, pj, ci, co)
    w6 = w6.transpose(0, 2, 5, 1, 3, 4)                  # (di, dj, co, pi, pj, ci)
    return w6.reshape(4, cout, 4 * cin).astype(jnp.bfloat16)


def _prep_w4(w, owp3):
    """(4,4,C,1) -> (C, 4*owp3) f32 with the halo columns zeroed."""
    kh, kw, c, _ = w.shape
    wt = jnp.asarray(w)[..., 0].transpose(2, 0, 1)       # (C, 4, 4)
    wt = jnp.pad(wt, ((0, 0), (0, 0), (0, owp3 - kw)))   # (C, 4, owp3)
    return wt.reshape(c, kh * owp3).astype(jnp.float32)


def _make_mask0(oh0, nbp, ncols):
    """(4, ncols) mask zeroing S1 padding columns per output phase."""
    m = np.zeros((4, ncols), np.float32)
    b = np.arange(nbp)
    for pi in range(2):
        vi = (2 * b - 1 + pi >= 0) & (2 * b - 1 + pi < oh0)
        for pj in range(2):
            vj = (2 * b - 1 + pj >= 0) & (2 * b - 1 + pj < oh0)
            m[2 * pi + pj, :nbp * nbp] = (vi[:, None] & vj[None, :]).astype(np.float32).reshape(-1)
    return jnp.asarray(m)


def _make_valid_mask(oh, owp):
    """(1, oh*owp) mask: 1 on real output columns, 0 on halo columns."""
    col = np.arange(oh * owp)
    return jnp.asarray(((col % owp) < oh).astype(np.float32).reshape(1, -1))


def _make_relayout(oh, owp, nbp, ncols):
    """(4, oh*owp, ncols) 0/1 matrices: layer-l output -> S_{l+1} space-to-depth."""
    p = np.zeros((4, oh * owp, ncols), np.float32)
    for pi in range(2):
        for pj in range(2):
            ph = 2 * pi + pj
            for bi in range(nbp):
                r = 2 * bi - 1 + pi
                if not 0 <= r < oh:
                    continue
                for bj in range(nbp):
                    c = 2 * bj - 1 + pj
                    if not 0 <= c < oh:
                        continue
                    p[ph, r * owp + c, bi * nbp + bj] = 1.0
    return jnp.asarray(p, dtype=jnp.bfloat16)


def prepare_params(params, img_size):
    """One-time, non-jitted prep of kernel-ready weights/masks/relayout matrices."""
    if img_size != 64:
        raise ValueError("fused kernel assumes img_size=64 (final 4x4 conv -> 1x1 output)")
    o, dims, ncols = _layer_dims(img_size)
    prepped = {
        "embed": params["embed"],
        "w0": _prep_w0(params["w0"]),
        "b0": params["b0"].reshape(-1, 1).astype(jnp.float32),
        "m0": _make_mask0(o[0], dims[1]["owp"], ncols[1]),
        "w4": _prep_w4(params["w4"], dims[3]["owp"]),
        "b4": params["b4"].reshape(1, 1).astype(jnp.float32),
    }
    for l in (1, 2, 3):
        prepped[f"w{l}"] = _prep_wl(params[f"w{l}"])
        prepped[f"g{l}"] = params[f"g{l}"].reshape(-1, 1).astype(jnp.float32)
        prepped[f"be{l}"] = params[f"be{l}"].reshape(-1, 1).astype(jnp.float32)
        prepped[f"m{l}"] = _make_valid_mask(dims[l]["oh"], dims[l]["owp"])
    for l in (1, 2):
        prepped[f"p{l}"] = _make_relayout(dims[l]["oh"], dims[l]["owp"],
                                          dims[l + 1]["owp"], ncols[l + 1])
    return prepped


# ----------------------------- wrapper / forward ------------------------------

def _prep_layer0_inputs(x_cat, nbp, ncols1):
    """(N,H,W,C0) f32 -> (N, 4, 16*C0, ncols1) bf16 phase/merged-K operands for layer 0."""
    n, h, w, c0 = x_cat.shape
    xp = jnp.pad(x_cat, ((0, 0), (3, 3), (3, 3), (0, 0)))   # pad=1 (conv) + 2 (phase halo)
    stop = 4 * (nbp - 1) + 1
    phases = []
    for pi in range(2):
        for pj in range(2):
            taps = []
            for p in range(4):
                for q in range(4):
                    r0, q0 = 2 * pi + p, 2 * pj + q
                    taps.append(xp[:, r0:r0 + stop:4, q0:q0 + stop:4, :])  # (N,nbp,nbp,C0)
            a = jnp.stack(taps, axis=3).reshape(n, nbp * nbp, 16 * c0)
            phases.append(jnp.transpose(a, (0, 2, 1)))                      # (N,16*C0,nbp^2)
    a4 = jnp.stack(phases, axis=1)                                           # (N,4,16*C0,nbp^2)
    a4 = jnp.pad(a4, ((0, 0), (0, 0), (0, 0), (0, ncols1 - nbp * nbp)))
    return a4.astype(jnp.bfloat16)


def _fused_forward(prepped, x_cat, *, features_d, img_size):
    n = x_cat.shape[0]
    fd = features_d
    _, dims, ncols = _layer_dims(img_size)
    a = _prep_layer0_inputs(x_cat, dims[1]["owp"], ncols[1])

    cfg = {
        "cout": (fd, 2 * fd, 4 * fd, 8 * fd),
        "l1": (dims[1]["owp"], dims[1]["mp"], 1.0 / float(dims[1]["oh"] ** 2)),
        "l2": (dims[2]["owp"], dims[2]["mp"], 1.0 / float(dims[2]["oh"] ** 2)),
        "l3": (dims[3]["owp"], dims[3]["mp"], 1.0 / float(dims[3]["oh"] ** 2)),
    }
    kernel = functools.partial(_disc_kernel, cfg=cfg)

    def cspec(shape):
        nd = len(shape)
        return pl.BlockSpec(shape, lambda i, _nd=nd: (0,) * _nd)

    operands = (a,
                prepped["w0"], prepped["b0"], prepped["m0"],
                prepped["w1"], prepped["g1"], prepped["be1"], prepped["m1"], prepped["p1"],
                prepped["w2"], prepped["g2"], prepped["be2"], prepped["m2"], prepped["p2"],
                prepped["w3"], prepped["g3"], prepped["be3"], prepped["m3"],
                prepped["w4"], prepped["b4"])
    in_specs = [pl.BlockSpec((1,) + a.shape[1:], lambda i: (i, 0, 0, 0))]
    in_specs += [cspec(v.shape) for v in operands[1:]]

    cin0 = a.shape[2] // 16
    flops = n * int(
        2 * 4 * fd * (16 * cin0) * ncols[1]
        + 2 * 4 * (2 * fd) * (4 * fd) * dims[1]["mp"]
        + 2 * 4 * (2 * fd) * dims[1]["mp"] * ncols[2]
        + 2 * 4 * (4 * fd) * (8 * fd) * dims[2]["mp"]
        + 2 * 4 * (4 * fd) * dims[2]["mp"] * ncols[3]
        + 2 * 4 * (8 * fd) * (16 * fd) * dims[3]["mp"]
        + 2 * (8 * fd) * dims[3]["mp"])
    const_bytes = sum(int(np.prod(v.shape)) * v.dtype.itemsize for v in operands[1:])
    bytes_accessed = int(np.prod(a.shape)) * a.dtype.itemsize + const_bytes + n * 4

    out = pl.pallas_call(
        kernel,
        out_shape=jax.ShapeDtypeStruct((n, 1, 1), jnp.float32),
        grid=(n,),
        in_specs=in_specs,
        out_specs=pl.BlockSpec((1, 1, 1), lambda i: (i, 0, 0)),
        scratch_shapes=[
            pltpu.VMEM((4 * fd, ncols[1]), jnp.float32),       # S1
            pltpu.VMEM((4 * 2 * fd, ncols[2]), jnp.float32),   # S2
            pltpu.VMEM((4 * 4 * fd, ncols[3]), jnp.float32),   # S3
        ],
        compiler_params=pltpu.CompilerParams(
            dimension_semantics=("parallel",),
            vmem_limit_bytes=VMEM_LIMIT),
        cost_estimate=pl.CostEstimate(
            flops=flops,
            transcendentals=int(n * 14 * fd),
            bytes_accessed=int(bytes_accessed)),
    )(*operands)
    return out


@functools.partial(jax.jit, static_argnames=("features_d", "img_size"))
def discriminator_forward(prepped, x_nchw, labels, *, features_d, img_size):
    n, _, h, w = x_nchw.shape
    # TODO(synk): nn.Embedding lookup + channel concat stay as XLA gather/concat
    # in the wrapper (data-dependent gather, not worth a Pallas launch).
    emb = jnp.take(prepped["embed"], labels, axis=0).reshape(n, h, w, 1)
    x = jnp.concatenate(
        [jnp.transpose(x_nchw.astype(jnp.float32), (0, 2, 3, 1)), emb], axis=-1)
    out = _fused_forward(prepped, x, features_d=features_d, img_size=img_size)
    return out.reshape(n, 1, 1, 1)          # matches PyTorch NCHW (N,1,1,1)


# --------------------------------- params ------------------------------------

def init_params(key, channels_img, features_d, num_classes, img_size):
    fd = features_d
    ks = jax.random.split(key, 8)

    def w(k, cin, cout):
        return jax.random.normal(k, (4, 4, cin, cout), jnp.float32) * 0.05

    return {
        "embed": jax.random.normal(ks[0], (num_classes, img_size * img_size), jnp.float32),
        "w0": w(ks[1], channels_img + 1, fd),
        "b0": jax.random.normal(ks[2], (fd,), jnp.float32) * 0.01,
        "w1": w(ks[3], fd, fd * 2),
        "g1": jnp.ones((fd * 2,), jnp.float32),
        "be1": jnp.zeros((fd * 2,), jnp.float32),
        "w2": w(ks[4], fd * 2, fd * 4),
        "g2": jnp.ones((fd * 4,), jnp.float32),
        "be2": jnp.zeros((fd * 4,), jnp.float32),
        "w3": w(ks[5], fd * 4, fd * 8),
        "g3": jnp.ones((fd * 8,), jnp.float32),
        "be3": jnp.zeros((fd * 8,), jnp.float32),
        "w4": w(ks[6], fd * 8, 1),
        "b4": jax.random.normal(ks[7], (1,), jnp.float32) * 0.01,
    }


# ----------------------------- pure-JAX reference ------------------------------

def _reference_forward(params, x_nchw, labels):
    n, _, h, w_sz = x_nchw.shape
    emb = jnp.take(params["embed"], labels, axis=0).reshape(n, h, w_sz, 1)
    x = jnp.concatenate(
        [jnp.transpose(x_nchw.astype(jnp.float32), (0, 2, 3, 1)), emb], axis=-1)

    def conv(x, w, stride, pad):
        return jax.lax.conv_general_dilated(
            x, w, window_strides=(stride, stride),
            padding=[(pad, pad), (pad, pad)],
            dimension_numbers=("NHWC", "HWIO", "NHWC"))

    x = _leaky(conv(x, params["w0"], 2, 1) + params["b0"])
    for i in (1, 2, 3):
        x = conv(x, params[f"w{i}"], 2, 1)
        mean = jnp.mean(x, axis=(1, 2), keepdims=True)
        var = jnp.mean((x - mean) ** 2, axis=(1, 2), keepdims=True)
        x = (x - mean) * jax.lax.rsqrt(var + EPS)
        x = _leaky(x * params[f"g{i}"] + params[f"be{i}"])
    x = conv(x, params["w4"], 2, 0) + params["b4"]
    return jnp.transpose(x, (0, 3, 1, 2))


if __name__ == "__main__":
    key = jax.random.PRNGKey(0)
    kp, kx, kl = jax.random.split(key, 3)

    # img_size must be 64 so the final k=4/s=2/p=0 conv yields a 1x1 output.
    batch, channels_img, features_d, num_classes, img_size = 2, 1, 8, 5, 64

    params = init_params(kp, channels_img, features_d, num_classes, img_size)
    prepped = prepare_params(params, img_size)          # one-time, outside jit

    x = jax.random.normal(kx, (batch, channels_img, img_size, img_size), jnp.float32)
    labels = jax.random.randint(kl, (batch,), 0, num_classes)

    out = discriminator_forward(prepped, x, labels,
                                features_d=features_d, img_size=img_size)
    jax.block_until_ready(out)

    assert out.shape == (batch, 1, 1, 1), out.shape
    assert bool(jnp.all(jnp.isfinite(out)))

    # Check vs f32 reference (kernel uses bf16 MXU operands by design).
    ref = _reference_forward(params, x, labels)
    err = float(jnp.max(jnp.abs(out - ref)))
    tol = 0.1 * (float(jnp.max(jnp.abs(ref))) + 1.0)
    assert err <= tol, (err, tol)

    print("KERNEL_OK")
</pallas_src>

<mosaic_0001>
module attributes {stable_mosaic.version = 11 : i64} {
  func.func @_disc_kernel(%arg0: i32, %arg1: memref<1x4x32x384xbf16, #tpu.memory_space<vmem>>, %arg2: memref<8x32xbf16, #tpu.memory_space<vmem>>, %arg3: memref<8x1xf32, #tpu.memory_space<vmem>>, %arg4: memref<4x384xf32, #tpu.memory_space<vmem>>, %arg5: memref<4x16x32xbf16, #tpu.memory_space<vmem>>, %arg6: memref<16x1xf32, #tpu.memory_space<vmem>>, %arg7: memref<16x1xf32, #tpu.memory_space<vmem>>, %arg8: memref<1x272xf32, #tpu.memory_space<vmem>>, %arg9: memref<4x272x128xbf16, #tpu.memory_space<vmem>>, %arg10: memref<4x32x64xbf16, #tpu.memory_space<vmem>>, %arg11: memref<32x1xf32, #tpu.memory_space<vmem>>, %arg12: memref<32x1xf32, #tpu.memory_space<vmem>>, %arg13: memref<1x72xf32, #tpu.memory_space<vmem>>, %arg14: memref<4x72x128xbf16, #tpu.memory_space<vmem>>, %arg15: memref<4x64x128xbf16, #tpu.memory_space<vmem>>, %arg16: memref<64x1xf32, #tpu.memory_space<vmem>>, %arg17: memref<64x1xf32, #tpu.memory_space<vmem>>, %arg18: memref<1x20xf32, #tpu.memory_space<vmem>>, %arg19: memref<64x20xf32, #tpu.memory_space<vmem>>, %arg20: memref<1x1xf32, #tpu.memory_space<vmem>>, %arg21: memref<1x1x1xf32, #tpu.memory_space<vmem>>, %arg22: memref<32x384xf32, #tpu.memory_space<vmem>>, %arg23: memref<64x128xf32, #tpu.memory_space<vmem>>, %arg24: memref<128x128xf32, #tpu.memory_space<vmem>>) attributes {dimension_semantics = [#tpu.dimension_semantics<parallel>], iteration_bounds = array<i64: 2>, scalar_prefetch = 0 : i64, scratch_operands = 3 : i64, tpu.core_type = #tpu.core_type<tc>, window_params = [{transform_indices = @transform_0, window_bounds = array<i64: 1, 4, 32, 384>}, {pipeline_mode = #tpu.pipeline_mode<synchronous>, transform_indices = @transform_1, window_bounds = array<i64: 8, 32>}, {pipeline_mode = #tpu.pipeline_mode<synchronous>, transform_indices = @transform_2, window_bounds = array<i64: 8, 1>}, {pipeline_mode = #tpu.pipeline_mode<synchronous>, transform_indices = @transform_3, window_bounds = array<i64: 4, 384>}, {pipeline_mode = #tpu.pipeline_mode<synchronous>, transform_indices = @transform_4, window_bounds = array<i64: 4, 16, 32>}, {pipeline_mode = #tpu.pipeline_mode<synchronous>, transform_indices = @transform_5, window_bounds = array<i64: 16, 1>}, {pipeline_mode = #tpu.pipeline_mode<synchronous>, transform_indices = @transform_6, window_bounds = array<i64: 16, 1>}, {pipeline_mode = #tpu.pipeline_mode<synchronous>, transform_indices = @transform_7, window_bounds = array<i64: 1, 272>}, {pipeline_mode = #tpu.pipeline_mode<synchronous>, transform_indices = @transform_8, window_bounds = array<i64: 4, 272, 128>}, {pipeline_mode = #tpu.pipeline_mode<synchronous>, transform_indices = @transform_9, window_bounds = array<i64: 4, 32, 64>}, {pipeline_mode = #tpu.pipeline_mode<synchronous>, transform_indices = @transform_10, window_bounds = array<i64: 32, 1>}, {pipeline_mode = #tpu.pipeline_mode<synchronous>, transform_indices = @transform_11, window_bounds = array<i64: 32, 1>}, {pipeline_mode = #tpu.pipeline_mode<synchronous>, transform_indices = @transform_12, window_bounds = array<i64: 1, 72>}, {pipeline_mode = #tpu.pipeline_mode<synchronous>, transform_indices = @transform_13, window_bounds = array<i64: 4, 72, 128>}, {pipeline_mode = #tpu.pipeline_mode<synchronous>, transform_indices = @transform_14, window_bounds = array<i64: 4, 64, 128>}, {pipeline_mode = #tpu.pipeline_mode<synchronous>, transform_indices = @transform_15, window_bounds = array<i64: 64, 1>}, {pipeline_mode = #tpu.pipeline_mode<synchronous>, transform_indices = @transform_16, window_bounds = array<i64: 64, 1>}, {pipeline_mode = #tpu.pipeline_mode<synchronous>, transform_indices = @transform_17, window_bounds = array<i64: 1, 20>}, {pipeline_mode = #tpu.pipeline_mode<synchronous>, transform_indices = @transform_18, window_bounds = array<i64: 64, 20>}, {pipeline_mode = #tpu.pipeline_mode<synchronous>, transform_indices = @transform_19, window_bounds = array<i64: 1, 1>}, {transform_indices = @transform_20, window_bounds = array<i64: 1, 1, 1>}]} {
    %c0 = arith.constant 0 : index
    %c0_0 = arith.constant 0 : index
    %0 = vector.load %arg2[%c0, %c0_0] : memref<8x32xbf16, #tpu.memory_space<vmem>>, vector<8x32xbf16>
    %c0_1 = arith.constant 0 : index
    %c0_2 = arith.constant 0 : index
    %c0_3 = arith.constant 0 : index
    %c0_4 = arith.constant 0 : index
    %1 = vector.load %arg1[%c0_1, %c0_2, %c0_3, %c0_4] : memref<1x4x32x384xbf16, #tpu.memory_space<vmem>>, vector<1x1x32x384xbf16>
    %2 = vector.shape_cast %1 : vector<1x1x32x384xbf16> to vector<32x384xbf16>
    %cst = arith.constant dense<0.000000e+00> : vector<8x384xf32>
    %3 = tpu.matmul %0, %2, %cst {dimension_numbers = #tpu.dot_dimension_numbers<[1], [0], [0], [1], [0, 0, 1, 1], [], []>} : vector<8x32xbf16>, vector<32x384xbf16>, vector<8x384xf32> -> vector<8x384xf32>
    %c0_5 = arith.constant 0 : index
    %c0_6 = arith.constant 0 : index
    %4 = vector.load %arg3[%c0_5, %c0_6] : memref<8x1xf32, #tpu.memory_space<vmem>>, vector<8x1xf32>
    %5 = vector.broadcast %4 : vector<8x1xf32> to vector<8x384xf32>
    %6 = arith.addf %3, %5 : vector<8x384xf32>
    %cst_7 = arith.constant 0.000000e+00 : f32
    %7 = vector.broadcast %cst_7 : f32 to vector<8x384xf32>
    %8 = arith.cmpf oge, %6, %7 : vector<8x384xf32>
    %cst_8 = arith.constant 2.000000e-01 : f32
    %9 = vector.broadcast %cst_8 : f32 to vector<8x384xf32>
    %10 = arith.mulf %9, %6 : vector<8x384xf32>
    %11 = arith.select %8, %6, %10 : vector<8x384xi1>, vector<8x384xf32>
    %c0_9 = arith.constant 0 : index
    %c0_10 = arith.constant 0 : index
    %12 = vector.load %arg4[%c0_9, %c0_10] : memref<4x384xf32, #tpu.memory_space<vmem>>, vector<1x384xf32>
    %13 = vector.broadcast %12 : vector<1x384xf32> to vector<8x384xf32>
    %14 = arith.mulf %11, %13 : vector<8x384xf32>
    %c0_11 = arith.constant 0 : index
    %c0_12 = arith.constant 0 : index
    %15 = vector.load %arg22[%c0_11, %c0_12] : memref<32x384xf32, #tpu.memory_space<vmem>>, vector<8x384xf32>
    tpu.vector_store %arg22[%c0_11, %c0_12], %14 {strides = array<i32>} : memref<32x384xf32, #tpu.memory_space<vmem>>, vector<8x384xf32>,
    %c0_13 = arith.constant 0 : index
    %c0_14 = arith.constant 0 : index
    %16 = vector.load %arg2[%c0_13, %c0_14] : memref<8x32xbf16, #tpu.memory_space<vmem>>, vector<8x32xbf16>
    %c0_15 = arith.constant 0 : index
    %c1 = arith.constant 1 : index
    %c0_16 = arith.constant 0 : index
    %c0_17 = arith.constant 0 : index
    %17 = vector.load %arg1[%c0_15, %c1, %c0_16, %c0_17] : memref<1x4x32x384xbf16, #tpu.memory_space<vmem>>, vector<1x1x32x384xbf16>
    %18 = vector.shape_cast %17 : vector<1x1x32x384xbf16> to vector<32x384xbf16>
    %cst_18 = arith.constant dense<0.000000e+00> : vector<8x384xf32>
    %19 = tpu.matmul %16, %18, %cst_18 {dimension_numbers = #tpu.dot_dimension_numbers<[1], [0], [0], [1], [0, 0, 1, 1], [], []>} : vector<8x32xbf16>, vector<32x384xbf16>, vector<8x384xf32> -> vector<8x384xf32>
    %c0_19 = arith.constant 0 : index
    %c0_20 = arith.constant 0 : index
    %20 = vector.load %arg3[%c0_19, %c0_20] : memref<8x1xf32, #tpu.memory_space<vmem>>, vector<8x1xf32>
    %21 = vector.broadcast %20 : vector<8x1xf32> to vector<8x384xf32>
    %22 = arith.addf %19, %21 : vector<8x384xf32>
    %cst_21 = arith.constant 0.000000e+00 : f32
    %23 = vector.broadcast %cst_21 : f32 to vector<8x384xf32>
    %24 = arith.cmpf oge, %22, %23 : vector<8x384xf32>
    %cst_22 = arith.constant 2.000000e-01 : f32
    %25 = vector.broadcast %cst_22 : f32 to vector<8x384xf32>
    %26 = arith.mulf %25, %22 : vector<8x384xf32>
    %27 = arith.select %24, %22, %26 : vector<8x384xi1>, vector<8x384xf32>
    %c1_23 = arith.constant 1 : index
    %c0_24 = arith.constant 0 : index
    %28 = vector.load %arg4[%c1_23, %c0_24] : memref<4x384xf32, #tpu.memory_space<vmem>>, vector<1x384xf32>
    %29 = vector.broadcast %28 : vector<1x384xf32> to vector<8x384xf32>
    %30 = arith.mulf %27, %29 : vector<8x384xf32>
    %c8 = arith.constant 8 : index
    %c0_25 = arith.constant 0 : index
    %31 = vector.load %arg22[%c8, %c0_25] : memref<32x384xf32, #tpu.memory_space<vmem>>, vector<8x384xf32>
    tpu.vector_store %arg22[%c8, %c0_25], %30 {strides = array<i32>} : memref<32x384xf32, #tpu.memory_space<vmem>>, vector<8x384xf32>,
    %c0_26 = arith.constant 0 : index
    %c0_27 = arith.constant 0 : index
    %32 = vector.load %arg2[%c0_26, %c0_27] : memref<8x32xbf16, #tpu.memory_space<vmem>>, vector<8x32xbf16>
    %c0_28 = arith.constant 0 : index
    %c2 = arith.constant 2 : index
    %c0_29 = arith.constant 0 : index
    %c0_30 = arith.constant 0 : index
    %33 = vector.load %arg1[%c0_28, %c2, %c0_29, %c0_30] : memref<1x4x32x384xbf16, #tpu.memory_space<vmem>>, vector<1x1x32x384xbf16>
    %34 = vector.shape_cast %33 : vector<1x1x32x384xbf16> to vector<32x384xbf16>
    %cst_31 = arith.constant dense<0.000000e+00> : vector<8x384xf32>
    %35 = tpu.matmul %32, %34, %cst_31 {dimension_numbers = #tpu.dot_dimension_numbers<[1], [0], [0], [1], [0, 0, 1, 1], [], []>} : vector<8x32xbf16>, vector<32x384xbf16>, vector<8x384xf32> -> vector<8x384xf32>
    %c0_32 = arith.constant 0 : index
    %c0_33 = arith.constant 0 : index
    %36 = vector.load %arg3[%c0_32, %c0_33] : memref<8x1xf32, #tpu.memory_space<vmem>>, vector<8x1xf32>
    %37 = vector.broadcast %36 : vector<8x1xf32> to vector<8x384xf32>
    %38 = arith.addf %35, %37 : vector<8x384xf32>
    %cst_34 = arith.constant 0.000000e+00 : f32
    %39 = vector.broadcast %cst_34 : f32 to vector<8x384xf32>
    %40 = arith.cmpf oge, %38, %39 : vector<8x384xf32>
    %cst_35 = arith.constant 2.000000e-01 : f32
    %41 = vector.broadcast %cst_35 : f32 to vector<8x384xf32>
    %42 = arith.mulf %41, %38 : vector<8x384xf32>
    %43 = arith.select %40, %38, %42 : vector<8x384xi1>, vector<8x384xf32>
    %c2_36 = arith.constant 2 : index
    %c0_37 = arith.constant 0 : index
    %44 = vector.load %arg4[%c2_36, %c0_37] : memref<4x384xf32, #tpu.memory_space<vmem>>, vector<1x384xf32>
    %45 = vector.broadcast %44 : vector<1x384xf32> to vector<8x384xf32>
    %46 = arith.mulf %43, %45 : vector<8x384xf32>
    %c16 = arith.constant 16 : index
    %c0_38 = arith.constant 0 : index
    %47 = vector.load %arg22[%c16, %c0_38] : memref<32x384xf32, #tpu.memory_space<vmem>>, vector<8x384xf32>
    tpu.vector_store %arg22[%c16, %c0_38], %46 {strides = array<i32>} : memref<32x384xf32, #tpu.memory_space<vmem>>, vector<8x384xf32>,
    %c0_39 = arith.constant 0 : index
    %c0_40 = arith.constant 0 : index
    %48 = vector.load %arg2[%c0_39, %c0_40] : memref<8x32xbf16, #tpu.memory_space<vmem>>, vector<8x32xbf16>
    %c0_41 = arith.constant 0 : index
    %c3 = arith.constant 3 : index
    %c0_42 = arith.constant 0 : index
    %c0_43 = arith.constant 0 : index
    %49 = vector.load %arg1[%c0_41, %c3, %c0_42, %c0_43] : memref<1x4x32x384xbf16, #tpu.memory_space<vmem>>, vector<1x1x32x384xbf16>
    %50 = vector.shape_cast %49 : vector<1x1x32x384xbf16> to vector<32x384xbf16>
    %cst_44 = arith.constant dense<0.000000e+00> : vector<8x384xf32>
    %51 = tpu.matmul %48, %50, %cst_44 {dimension_numbers = #tpu.dot_dimension_numbers<[1], [0], [0], [1], [0, 0, 1, 1], [], []>} : vector<8x32xbf16>, vector<32x384xbf16>, vector<8x384xf32> -> vector<8x384xf32>
    %c0_45 = arith.constant 0 : index
    %c0_46 = arith.constant 0 : index
    %52 = vector.load %arg3[%c0_45, %c0_46] : memref<8x1xf32, #tpu.memory_space<vmem>>, vector<8x1xf32>
    %53 = vector.broadcast %52 : vector<8x1xf32> to vector<8x384xf32>
    %54 = arith.addf %51, %53 : vector<8x384xf32>
    %cst_47 = arith.constant 0.000000e+00 : f32
    %55 = vector.broadcast %cst_47 : f32 to vector<8x384xf32>
    %56 = arith.cmpf oge, %54, %55 : vector<8x384xf32>
    %cst_48 = arith.constant 2.000000e-01 : f32
    %57 = vector.broadcast %cst_48 : f32 to vector<8x384xf32>
    %58 = arith.mulf %57, %54 : vector<8x384xf32>
    %59 = arith.select %56, %54, %58 : vector<8x384xi1>, vector<8x384xf32>
    %c3_49 = arith.constant 3 : index
    %c0_50 = arith.constant 0 : index
    %60 = vector.load %arg4[%c3_49, %c0_50] : memref<4x384xf32, #tpu.memory_space<vmem>>, vector<1x384xf32>
    %61 = vector.broadcast %60 : vector<1x384xf32> to vector<8x384xf32>
    %62 = arith.mulf %59, %61 : vector<8x384xf32>
    %c24 = arith.constant 24 : index
    %c0_51 = arith.constant 0 : index
    %63 = vector.load %arg22[%c24, %c0_51] : memref<32x384xf32, #tpu.memory_space<vmem>>, vector<8x384xf32>
    tpu.vector_store %arg22[%c24, %c0_51], %62 {strides = array<i32>} : memref<32x384xf32, #tpu.memory_space<vmem>>, vector<8x384xf32>,
    %c0_52 = arith.constant 0 : index
    %c0_53 = arith.constant 0 : index
    %c0_54 = arith.constant 0 : index
    %64 = vector.load %arg5[%c0_52, %c0_53, %c0_54] : memref<4x16x32xbf16, #tpu.memory_space<vmem>>, vector<1x16x32xbf16>
    %65 = vector.shape_cast %64 : vector<1x16x32xbf16> to vector<16x32xbf16>
    %c0_55 = arith.constant 0 : index
    %c0_56 = arith.constant 0 : index
    %66 = vector.load %arg22[%c0_55, %c0_56] : memref<32x384xf32, #tpu.memory_space<vmem>>, vector<32x272xf32>
    %67 = arith.truncf %66 : vector<32x272xf32> to vector<32x272xbf16>
    %cst_57 = arith.constant dense<0.000000e+00> : vector<16x272xf32>
    %68 = tpu.matmul %65, %67, %cst_57 {dimension_numbers = #tpu.dot_dimension_numbers<[1], [0], [0], [1], [0, 0, 1, 1], [], []>} : vector<16x32xbf16>, vector<32x272xbf16>, vector<16x272xf32> -> vector<16x272xf32>
    %c1_58 = arith.constant 1 : index
    %c0_59 = arith.constant 0 : index
    %c0_60 = arith.constant 0 : index
    %69 = vector.load %arg5[%c1_58, %c0_59, %c0_60] : memref<4x16x32xbf16, #tpu.memory_space<vmem>>, vector<1x16x32xbf16>
    %70 = vector.shape_cast %69 : vector<1x16x32xbf16> to vector<16x32xbf16>
    %c0_61 = arith.constant 0 : index
    %c1_62 = arith.constant 1 : index
    %71 = vector.load %arg22[%c0_61, %c1_62] : memref<32x384xf32, #tpu.memory_space<vmem>>, vector<32x272xf32>
    %72 = arith.truncf %71 : vector<32x272xf32> to vector<32x272xbf16>
    %cst_63 = arith.constant dense<0.000000e+00> : vector<16x272xf32>
    %73 = tpu.matmul %70, %72, %cst_63 {dimension_numbers = #tpu.dot_dimension_numbers<[1], [0], [0], [1], [0, 0, 1, 1], [], []>} : vector<16x32xbf16>, vector<32x272xbf16>, vector<16x272xf32> -> vector<16x272xf32>
    %74 = arith.addf %68, %73 : vector<16x272xf32>
    %c2_64 = arith.constant 2 : index
    %c0_65 = arith.constant 0 : index
    %c0_66 = arith.constant 0 : index
    %75 = vector.load %arg5[%c2_64, %c0_65, %c0_66] : memref<4x16x32xbf16, #tpu.memory_space<vmem>>, vector<1x16x32xbf16>
    %76 = vector.shape_cast %75 : vector<1x16x32xbf16> to vector<16x32xbf16>
    %c0_67 = arith.constant 0 : index
    %c17 = arith.constant 17 : index
    %77 = vector.load %arg22[%c0_67, %c17] : memref<32x384xf32, #tpu.memory_space<vmem>>, vector<32x272xf32>
    %78 = arith.truncf %77 : vector<32x272xf32> to vector<32x272xbf16>
    %cst_68 = arith.constant dense<0.000000e+00> : vector<16x272xf32>
    %79 = tpu.matmul %76, %78, %cst_68 {dimension_numbers = #tpu.dot_dimension_numbers<[1], [0], [0], [1], [0, 0, 1, 1], [], []>} : vector<16x32xbf16>, vector<32x272xbf16>, vector<16x272xf32> -> vector<16x272xf32>
    %80 = arith.addf %74, %79 : vector<16x272xf32>
    %c3_69 = arith.constant 3 : index
    %c0_70 = arith.constant 0 : index
    %c0_71 = arith.constant 0 : index
    %81 = vector.load %arg5[%c3_69, %c0_70, %c0_71] : memref<4x16x32xbf16, #tpu.memory_space<vmem>>, vector<1x16x32xbf16>
    %82 = vector.shape_cast %81 : vector<1x16x32xbf16> to vector<16x32xbf16>
    %c0_72 = arith.constant 0 : index
    %c18 = arith.constant 18 : index
    %83 = vector.load %arg22[%c0_72, %c18] : memref<32x384xf32, #tpu.memory_space<vmem>>, vector<32x272xf32>
    %84 = arith.truncf %83 : vector<32x272xf32> to vector<32x272xbf16>
    %cst_73 = arith.constant dense<0.000000e+00> : vector<16x272xf32>
    %85 = tpu.matmul %82, %84, %cst_73 {dimension_numbers = #tpu.dot_dimension_numbers<[1], [0], [0], [1], [0, 0, 1, 1], [], []>} : vector<16x32xbf16>, vector<32x272xbf16>, vector<16x272xf32> -> vector<16x272xf32>
    %86 = arith.addf %80, %85 : vector<16x272xf32>
    %c0_74 = arith.constant 0 : index
    %c0_75 = arith.constant 0 : index
    %87 = vector.load %arg8[%c0_74, %c0_75] : memref<1x272xf32, #tpu.memory_space<vmem>>, vector<1x272xf32>
    %88 = vector.broadcast %87 : vector<1x272xf32> to vector<16x272xf32>
    %89 = arith.mulf %86, %88 : vector<16x272xf32>
    %cst_76 = arith.constant dense<0.000000e+00> : vector<16xf32>
    %90 = vector.multi_reduction <add>, %89, %cst_76 [1] : vector<16x272xf32> to vector<16xf32>
    %91 = vector.shape_cast %90 : vector<16xf32> to vector<16x1xf32>
    %cst_77 = arith.constant 3.906250e-03 : f32
    %92 = vector.broadcast %cst_77 : f32 to vector<16x1xf32>
    %93 = arith.mulf %91, %92 : vector<16x1xf32>
    %94 = vector.broadcast %93 : vector<16x1xf32> to vector<16x272xf32>
    %95 = arith.subf %86, %94 : vector<16x272xf32>
    %96 = arith.mulf %95, %95 : vector<16x272xf32>
    %97 = vector.broadcast %87 : vector<1x272xf32> to vector<16x272xf32>
    %98 = arith.mulf %96, %97 : vector<16x272xf32>
    %cst_78 = arith.constant dense<0.000000e+00> : vector<16xf32>
    %99 = vector.multi_reduction <add>, %98, %cst_78 [1] : vector<16x272xf32> to vector<16xf32>
    %100 = vector.shape_cast %99 : vector<16xf32> to vector<16x1xf32>
    %cst_79 = arith.constant 3.906250e-03 : f32
    %101 = vector.broadcast %cst_79 : f32 to vector<16x1xf32>
    %102 = arith.mulf %100, %101 : vector<16x1xf32>
    %cst_80 = arith.constant 9.99999974E-6 : f32
    %103 = vector.broadcast %cst_80 : f32 to vector<16x1xf32>
    %104 = arith.addf %102, %103 : vector<16x1xf32>
    %105 = math.rsqrt %104 : vector<16x1xf32>
    %106 = vector.broadcast %105 : vector<16x1xf32> to vector<16x272xf32>
    %107 = arith.mulf %95, %106 : vector<16x272xf32>
    %c0_81 = arith.constant 0 : index
    %c0_82 = arith.constant 0 : index
    %108 = vector.load %arg6[%c0_81, %c0_82] : memref<16x1xf32, #tpu.memory_space<vmem>>, vector<16x1xf32>
    %109 = vector.broadcast %108 : vector<16x1xf32> to vector<16x272xf32>
    %110 = arith.mulf %107, %109 : vector<16x272xf32>
    %c0_83 = arith.constant 0 : index
    %c0_84 = arith.constant 0 : index
    %111 = vector.load %arg7[%c0_83, %c0_84] : memref<16x1xf32, #tpu.memory_space<vmem>>, vector<16x1xf32>
    %112 = vector.broadcast %111 : vector<16x1xf32> to vector<16x272xf32>
    %113 = arith.addf %110, %112 : vector<16x272xf32>
    %cst_85 = arith.constant 0.000000e+00 : f32
    %114 = vector.broadcast %cst_85 : f32 to vector<16x272xf32>
    %115 = arith.cmpf oge, %113, %114 : vector<16x272xf32>
    %cst_86 = arith.constant 2.000000e-01 : f32
    %116 = vector.broadcast %cst_86 : f32 to vector<16x272xf32>
    %117 = arith.mulf %116, %113 : vector<16x272xf32>
    %118 = arith.select %115, %113, %117 : vector<16x272xi1>, vector<16x272xf32>
    %119 = arith.truncf %118 : vector<16x272xf32> to vector<16x272xbf16>
    %c0_87 = arith.constant 0 : index
    %c0_88 = arith.constant 0 : index
    %c0_89 = arith.constant 0 : index
    %120 = vector.load %arg9[%c0_87, %c0_88, %c0_89] : memref<4x272x128xbf16, #tpu.memory_space<vmem>>, vector<1x272x128xbf16>
    %121 = vector.shape_cast %120 : vector<1x272x128xbf16> to vector<272x128xbf16>
    %cst_90 = arith.constant dense<0.000000e+00> : vector<16x128xf32>
    %122 = tpu.matmul %119, %121, %cst_90 {dimension_numbers = #tpu.dot_dimension_numbers<[1], [0], [0], [1], [0, 0, 1, 1], [], []>} : vector<16x272xbf16>, vector<272x128xbf16>, vector<16x128xf32> -> vector<16x128xf32>
    %c0_91 = arith.constant 0 : index
    %c0_92 = arith.constant 0 : index
    %123 = vector.load %arg23[%c0_91, %c0_92] : memref<64x128xf32, #tpu.memory_space<vmem>>, vector<16x128xf32>
    tpu.vector_store %arg23[%c0_91, %c0_92], %122 {strides = array<i32>} : memref<64x128xf32, #tpu.memory_space<vmem>>, vector<16x128xf32>,
    %c1_93 = arith.constant 1 : index
    %c0_94 = arith.constant 0 : index
    %c0_95 = arith.constant 0 : index
    %124 = vector.load %arg9[%c1_93, %c0_94, %c0_95] : memref<4x272x128xbf16, #tpu.memory_space<vmem>>, vector<1x272x128xbf16>
    %125 = vector.shape_cast %124 : vector<1x272x128xbf16> to vector<272x128xbf16>
    %cst_96 = arith.constant dense<0.000000e+00> : vector<16x128xf32>
    %126 = tpu.matmul %119, %125, %cst_96 {dimension_numbers = #tpu.dot_dimension_numbers<[1], [0], [0], [1], [0, 0, 1, 1], [], []>} : vector<16x272xbf16>, vector<272x128xbf16>, vector<16x128xf32> -> vector<16x128xf32>
    %c16_97 = arith.constant 16 : index
    %c0_98 = arith.constant 0 : index
    %127 = vector.load %arg23[%c16_97, %c0_98] : memref<64x128xf32, #tpu.memory_space<vmem>>, vector<16x128xf32>
    tpu.vector_store %arg23[%c16_97, %c0_98], %126 {strides = array<i32>} : memref<64x128xf32, #tpu.memory_space<vmem>>, vector<16x128xf32>,
    %c2_99 = arith.constant 2 : index
    %c0_100 = arith.constant 0 : index
    %c0_101 = arith.constant 0 : index
    %128 = vector.load %arg9[%c2_99, %c0_100, %c0_101] : memref<4x272x128xbf16, #tpu.memory_space<vmem>>, vector<1x272x128xbf16>
    %129 = vector.shape_cast %128 : vector<1x272x128xbf16> to vector<272x128xbf16>
    %cst_102 = arith.constant dense<0.000000e+00> : vector<16x128xf32>
    %130 = tpu.matmul %119, %129, %cst_102 {dimension_numbers = #tpu.dot_dimension_numbers<[1], [0], [0], [1], [0, 0, 1, 1], [], []>} : vector<16x272xbf16>, vector<272x128xbf16>, vector<16x128xf32> -> vector<16x128xf32>
    %c32 = arith.constant 32 : index
    %c0_103 = arith.constant 0 : index
    %131 = vector.load %arg23[%c32, %c0_103] : memref<64x128xf32, #tpu.memory_space<vmem>>, vector<16x128xf32>
    tpu.vector_store %arg23[%c32, %c0_103], %130 {strides = array<i32>} : memref<64x128xf32, #tpu.memory_space<vmem>>, vector<16x128xf32>,
    %c3_104 = arith.constant 3 : index
    %c0_105 = arith.constant 0 : index
    %c0_106 = arith.constant 0 : index
    %132 = vector.load %arg9[%c3_104, %c0_105, %c0_106] : memref<4x272x128xbf16, #tpu.memory_space<vmem>>, vector<1x272x128xbf16>
    %133 = vector.shape_cast %132 : vector<1x272x128xbf16> to vector<272x128xbf16>
    %cst_107 = arith.constant dense<0.000000e+00> : vector<16x128xf32>
    %134 = tpu.matmul %119, %133, %cst_107 {dimension_numbers = #tpu.dot_dimension_numbers<[1], [0], [0], [1], [0, 0, 1, 1], [], []>} : vector<16x272xbf16>, vector<272x128xbf16>, vector<16x128xf32> -> vector<16x128xf32>
    %c48 = arith.constant 48 : index
    %c0_108 = arith.constant 0 : index
    %135 = vector.load %arg23[%c48, %c0_108] : memref<64x128xf32, #tpu.memory_space<vmem>>, vector<16x128xf32>
    tpu.vector_store %arg23[%c48, %c0_108], %134 {strides = array<i32>} : memref<64x128xf32, #tpu.memory_space<vmem>>, vector<16x128xf32>,
    %c0_109 = arith.constant 0 : index
    %c0_110 = arith.constant 0 : index
    %c0_111 = arith.constant 0 : index
    %136 = vector.load %arg10[%c0_109, %c0_110, %c0_111] : memref<4x32x64xbf16, #tpu.memory_space<vmem>>, vector<1x32x64xbf16>
    %137 = vector.shape_cast %136 : vector<1x32x64xbf16> to vector<32x64xbf16>
    %c0_112 = arith.constant 0 : index
    %c0_113 = arith.constant 0 : index
    %138 = vector.load %arg23[%c0_112, %c0_113] : memref<64x128xf32, #tpu.memory_space<vmem>>, vector<64x72xf32>
    %139 = arith.truncf %138 : vector<64x72xf32> to vector<64x72xbf16>
    %cst_114 = arith.constant dense<0.000000e+00> : vector<32x72xf32>
    %140 = tpu.matmul %137, %139, %cst_114 {dimension_numbers = #tpu.dot_dimension_numbers<[1], [0], [0], [1], [0, 0, 1, 1], [], []>} : vector<32x64xbf16>, vector<64x72xbf16>, vector<32x72xf32> -> vector<32x72xf32>
    %c1_115 = arith.constant 1 : index
    %c0_116 = arith.constant 0 : index
    %c0_117 = arith.constant 0 : index
    %141 = vector.load %arg10[%c1_115, %c0_116, %c0_117] : memref<4x32x64xbf16, #tpu.memory_space<vmem>>, vector<1x32x64xbf16>
    %142 = vector.shape_cast %141 : vector<1x32x64xbf16> to vector<32x64xbf16>
    %c0_118 = arith.constant 0 : index
    %c1_119 = arith.constant 1 : index
    %143 = vector.load %arg23[%c0_118, %c1_119] : memref<64x128xf32, #tpu.memory_space<vmem>>, vector<64x72xf32>
    %144 = arith.truncf %143 : vector<64x72xf32> to vector<64x72xbf16>
    %cst_120 = arith.constant dense<0.000000e+00> : vector<32x72xf32>
    %145 = tpu.matmul %142, %144, %cst_120 {dimension_numbers = #tpu.dot_dimension_numbers<[1], [0], [0], [1], [0, 0, 1, 1], [], []>} : vector<32x64xbf16>, vector<64x72xbf16>, vector<32x72xf32> -> vector<32x72xf32>
    %146 = arith.addf %140, %145 : vector<32x72xf32>
    %c2_121 = arith.constant 2 : index
    %c0_122 = arith.constant 0 : index
    %c0_123 = arith.constant 0 : index
    %147 = vector.load %arg10[%c2_121, %c0_122, %c0_123] : memref<4x32x64xbf16, #tpu.memory_space<vmem>>, vector<1x32x64xbf16>
    %148 = vector.shape_cast %147 : vector<1x32x64xbf16> to vector<32x64xbf16>
    %c0_124 = arith.constant 0 : index
    %c9 = arith.constant 9 : index
    %149 = vector.load %arg23[%c0_124, %c9] : memref<64x128xf32, #tpu.memory_space<vmem>>, vector<64x72xf32>
    %150 = arith.truncf %149 : vector<64x72xf32> to vector<64x72xbf16>
    %cst_125 = arith.constant dense<0.000000e+00> : vector<32x72xf32>
    %151 = tpu.matmul %148, %150, %cst_125 {dimension_numbers = #tpu.dot_dimension_numbers<[1], [0], [0], [1], [0, 0, 1, 1], [], []>} : vector<32x64xbf16>, vector<64x72xbf16>, vector<32x72xf32> -> vector<32x72xf32>
    %152 = arith.addf %146, %151 : vector<32x72xf32>
    %c3_126 = arith.constant 3 : index
    %c0_127 = arith.constant 0 : index
    %c0_128 = arith.constant 0 : index
    %153 = vector.load %arg10[%c3_126, %c0_127, %c0_128] : memref<4x32x64xbf16, #tpu.memory_space<vmem>>, vector<1x32x64xbf16>
    %154 = vector.shape_cast %153 : vector<1x32x64xbf16> to vector<32x64xbf16>
    %c0_129 = arith.constant 0 : index
    %c10 = arith.constant 10 : index
    %155 = vector.load %arg23[%c0_129, %c10] : memref<64x128xf32, #tpu.memory_space<vmem>>, vector<64x72xf32>
    %156 = arith.truncf %155 : vector<64x72xf32> to vector<64x72xbf16>
    %cst_130 = arith.constant dense<0.000000e+00> : vector<32x72xf32>
    %157 = tpu.matmul %154, %156, %cst_130 {dimension_numbers = #tpu.dot_dimension_numbers<[1], [0], [0], [1], [0, 0, 1, 1], [], []>} : vector<32x64xbf16>, vector<64x72xbf16>, vector<32x72xf32> -> vector<32x72xf32>
    %158 = arith.addf %152, %157 : vector<32x72xf32>
    %c0_131 = arith.constant 0 : index
    %c0_132 = arith.constant 0 : index
    %159 = vector.load %arg13[%c0_131, %c0_132] : memref<1x72xf32, #tpu.memory_space<vmem>>, vector<1x72xf32>
    %160 = vector.broadcast %159 : vector<1x72xf32> to vector<32x72xf32>
    %161 = arith.mulf %158, %160 : vector<32x72xf32>
    %cst_133 = arith.constant dense<0.000000e+00> : vector<32xf32>
    %162 = vector.multi_reduction <add>, %161, %cst_133 [1] : vector<32x72xf32> to vector<32xf32>
    %163 = vector.shape_cast %162 : vector<32xf32> to vector<32x1xf32>
    %cst_134 = arith.constant 1.562500e-02 : f32
    %164 = vector.broadcast %cst_134 : f32 to vector<32x1xf32>
    %165 = arith.mulf %163, %164 : vector<32x1xf32>
    %166 = vector.broadcast %165 : vector<32x1xf32> to vector<32x72xf32>
    %167 = arith.subf %158, %166 : vector<32x72xf32>
    %168 = arith.mulf %167, %167 : vector<32x72xf32>
    %169 = vector.broadcast %159 : vector<1x72xf32> to vector<32x72xf32>
    %170 = arith.mulf %168, %169 : vector<32x72xf32>
    %cst_135 = arith.constant dense<0.000000e+00> : vector<32xf32>
    %171 = vector.multi_reduction <add>, %170, %cst_135 [1] : vector<32x72xf32> to vector<32xf32>
    %172 = vector.shape_cast %171 : vector<32xf32> to vector<32x1xf32>
    %cst_136 = arith.constant 1.562500e-02 : f32
    %173 = vector.broadcast %cst_136 : f32 to vector<32x1xf32>
    %174 = arith.mulf %172, %173 : vector<32x1xf32>
    %cst_137 = arith.constant 9.99999974E-6 : f32
    %175 = vector.broadcast %cst_137 : f32 to vector<32x1xf32>
    %176 = arith.addf %174, %175 : vector<32x1xf32>
    %177 = math.rsqrt %176 : vector<32x1xf32>
    %178 = vector.broadcast %177 : vector<32x1xf32> to vector<32x72xf32>
    %179 = arith.mulf %167, %178 : vector<32x72xf32>
    %c0_138 = arith.constant 0 : index
    %c0_139 = arith.constant 0 : index
    %180 = vector.load %arg11[%c0_138, %c0_139] : memref<32x1xf32, #tpu.memory_space<vmem>>, vector<32x1xf32>
    %181 = vector.broadcast %180 : vector<32x1xf32> to vector<32x72xf32>
    %182 = arith.mulf %179, %181 : vector<32x72xf32>
    %c0_140 = arith.constant 0 : index
    %c0_141 = arith.constant 0 : index
    %183 = vector.load %arg12[%c0_140, %c0_141] : memref<32x1xf32, #tpu.memory_space<vmem>>, vector<32x1xf32>
    %184 = vector.broadcast %183 : vector<32x1xf32> to vector<32x72xf32>
    %185 = arith.addf %182, %184 : vector<32x72xf32>
    %cst_142 = arith.constant 0.000000e+00 : f32
    %186 = vector.broadcast %cst_142 : f32 to vector<32x72xf32>
    %187 = arith.cmpf oge, %185, %186 : vector<32x72xf32>
    %cst_143 = arith.constant 2.000000e-01 : f32
    %188 = vector.broadcast %cst_143 : f32 to vector<32x72xf32>
    %189 = arith.mulf %188, %185 : vector<32x72xf32>
    %190 = arith.select %187, %185, %189 : vector<32x72xi1>, vector<32x72xf32>
    %191 = arith.truncf %190 : vector<32x72xf32> to vector<32x72xbf16>
    %c0_144 = arith.constant 0 : index
    %c0_145 = arith.constant 0 : index
    %c0_146 = arith.constant 0 : index
    %192 = vector.load %arg14[%c0_144, %c0_145, %c0_146] : memref<4x72x128xbf16, #tpu.memory_space<vmem>>, vector<1x72x128xbf16>
    %193 = vector.shape_cast %192 : vector<1x72x128xbf16> to vector<72x128xbf16>
    %cst_147 = arith.constant dense<0.000000e+00> : vector<32x128xf32>
    %194 = tpu.matmul %191, %193, %cst_147 {dimension_numbers = #tpu.dot_dimension_numbers<[1], [0], [0], [1], [0, 0, 1, 1], [], []>} : vector<32x72xbf16>, vector<72x128xbf16>, vector<32x128xf32> -> vector<32x128xf32>
    %c0_148 = arith.constant 0 : index
    %c0_149 = arith.constant 0 : index
    %195 = vector.load %arg24[%c0_148, %c0_149] : memref<128x128xf32, #tpu.memory_space<vmem>>, vector<32x128xf32>
    tpu.vector_store %arg24[%c0_148, %c0_149], %194 {strides = array<i32>} : memref<128x128xf32, #tpu.memory_space<vmem>>, vector<32x128xf32>,
    %c1_150 = arith.constant 1 : index
    %c0_151 = arith.constant 0 : index
    %c0_152 = arith.constant 0 : index
    %196 = vector.load %arg14[%c1_150, %c0_151, %c0_152] : memref<4x72x128xbf16, #tpu.memory_space<vmem>>, vector<1x72x128xbf16>
    %197 = vector.shape_cast %196 : vector<1x72x128xbf16> to vector<72x128xbf16>
    %cst_153 = arith.constant dense<0.000000e+00> : vector<32x128xf32>
    %198 = tpu.matmul %191, %197, %cst_153 {dimension_numbers = #tpu.dot_dimension_numbers<[1], [0], [0], [1], [0, 0, 1, 1], [], []>} : vector<32x72xbf16>, vector<72x128xbf16>, vector<32x128xf32> -> vector<32x128xf32>
    %c32_154 = arith.constant 32 : index
    %c0_155 = arith.constant 0 : index
    %199 = vector.load %arg24[%c32_154, %c0_155] : memref<128x128xf32, #tpu.memory_space<vmem>>, vector<32x128xf32>
    tpu.vector_store %arg24[%c32_154, %c0_155], %198 {strides = array<i32>} : memref<128x128xf32, #tpu.memory_space<vmem>>, vector<32x128xf32>,
    %c2_156 = arith.constant 2 : index
    %c0_157 = arith.constant 0 : index
    %c0_158 = arith.constant 0 : index
    %200 = vector.load %arg14[%c2_156, %c0_157, %c0_158] : memref<4x72x128xbf16, #tpu.memory_space<vmem>>, vector<1x72x128xbf16>
    %201 = vector.shape_cast %200 : vector<1x72x128xbf16> to vector<72x128xbf16>
    %cst_159 = arith.constant dense<0.000000e+00> : vector<32x128xf32>
    %202 = tpu.matmul %191, %201, %cst_159 {dimension_numbers = #tpu.dot_dimension_numbers<[1], [0], [0], [1], [0, 0, 1, 1], [], []>} : vector<32x72xbf16>, vector<72x128xbf16>, vector<32x128xf32> -> vector<32x128xf32>
    %c64 = arith.constant 64 : index
    %c0_160 = arith.constant 0 : index
    %203 = vector.load %arg24[%c64, %c0_160] : memref<128x128xf32, #tpu.memory_space<vmem>>, vector<32x128xf32>
    tpu.vector_store %arg24[%c64, %c0_160], %202 {strides = array<i32>} : memref<128x128xf32, #tpu.memory_space<vmem>>, vector<32x128xf32>,
    %c3_161 = arith.constant 3 : index
    %c0_162 = arith.constant 0 : index
    %c0_163 = arith.constant 0 : index
    %204 = vector.load %arg14[%c3_161, %c0_162, %c0_163] : memref<4x72x128xbf16, #tpu.memory_space<vmem>>, vector<1x72x128xbf16>
    %205 = vector.shape_cast %204 : vector<1x72x128xbf16> to vector<72x128xbf16>
    %cst_164 = arith.constant dense<0.000000e+00> : vector<32x128xf32>
    %206 = tpu.matmul %191, %205, %cst_164 {dimension_numbers = #tpu.dot_dimension_numbers<[1], [0], [0], [1], [0, 0, 1, 1], [], []>} : vector<32x72xbf16>, vector<72x128xbf16>, vector<32x128xf32> -> vector<32x128xf32>
    %c96 = arith.constant 96 : index
    %c0_165 = arith.constant 0 : index
    %207 = vector.load %arg24[%c96, %c0_165] : memref<128x128xf32, #tpu.memory_space<vmem>>, vector<32x128xf32>
    tpu.vector_store %arg24[%c96, %c0_165], %206 {strides = array<i32>} : memref<128x128xf32, #tpu.memory_space<vmem>>, vector<32x128xf32>,
    %c0_166 = arith.constant 0 : index
    %c0_167 = arith.constant 0 : index
    %c0_168 = arith.constant 0 : index
    %208 = vector.load %arg15[%c0_166, %c0_167, %c0_168] : memref<4x64x128xbf16, #tpu.memory_space<vmem>>, vector<1x64x128xbf16>
    %209 = vector.shape_cast %208 : vector<1x64x128xbf16> to vector<64x128xbf16>
    %c0_169 = arith.constant 0 : index
    %c0_170 = arith.constant 0 : index
    %210 = vector.load %arg24[%c0_169, %c0_170] : memref<128x128xf32, #tpu.memory_space<vmem>>, vector<128x20xf32>
    %211 = arith.truncf %210 : vector<128x20xf32> to vector<128x20xbf16>
    %cst_171 = arith.constant dense<0.000000e+00> : vector<64x20xf32>
    %212 = tpu.matmul %209, %211, %cst_171 {dimension_numbers = #tpu.dot_dimension_numbers<[1], [0], [0], [1], [0, 0, 1, 1], [], []>} : vector<64x128xbf16>, vector<128x20xbf16>, vector<64x20xf32> -> vector<64x20xf32>
    %c1_172 = arith.constant 1 : index
    %c0_173 = arith.constant 0 : index
    %c0_174 = arith.constant 0 : index
    %213 = vector.load %arg15[%c1_172, %c0_173, %c0_174] : memref<4x64x128xbf16, #tpu.memory_space<vmem>>, vector<1x64x128xbf16>
    %214 = vector.shape_cast %213 : vector<1x64x128xbf16> to vector<64x128xbf16>
    %c0_175 = arith.constant 0 : index
    %c1_176 = arith.constant 1 : index
    %215 = vector.load %arg24[%c0_175, %c1_176] : memref<128x128xf32, #tpu.memory_space<vmem>>, vector<128x20xf32>
    %216 = arith.truncf %215 : vector<128x20xf32> to vector<128x20xbf16>
    %cst_177 = arith.constant dense<0.000000e+00> : vector<64x20xf32>
    %217 = tpu.matmul %214, %216, %cst_177 {dimension_numbers = #tpu.dot_dimension_numbers<[1], [0], [0], [1], [0, 0, 1, 1], [], []>} : vector<64x128xbf16>, vector<128x20xbf16>, vector<64x20xf32> -> vector<64x20xf32>
    %218 = arith.addf %212, %217 : vector<64x20xf32>
    %c2_178 = arith.constant 2 : index
    %c0_179 = arith.constant 0 : index
    %c0_180 = arith.constant 0 : index
    %219 = vector.load %arg15[%c2_178, %c0_179, %c0_180] : memref<4x64x128xbf16, #tpu.memory_space<vmem>>, vector<1x64x128xbf16>
    %220 = vector.shape_cast %219 : vector<1x64x128xbf16> to vector<64x128xbf16>
    %c0_181 = arith.constant 0 : index
    %c5 = arith.constant 5 : index
    %221 = vector.load %arg24[%c0_181, %c5] : memref<128x128xf32, #tpu.memory_space<vmem>>, vector<128x20xf32>
    %222 = arith.truncf %221 : vector<128x20xf32> to vector<128x20xbf16>
    %cst_182 = arith.constant dense<0.000000e+00> : vector<64x20xf32>
    %223 = tpu.matmul %220, %222, %cst_182 {dimension_numbers = #tpu.dot_dimension_numbers<[1], [0], [0], [1], [0, 0, 1, 1], [], []>} : vector<64x128xbf16>, vector<128x20xbf16>, vector<64x20xf32> -> vector<64x20xf32>
    %224 = arith.addf %218, %223 : vector<64x20xf32>
    %c3_183 = arith.constant 3 : index
    %c0_184 = arith.constant 0 : index
    %c0_185 = arith.constant 0 : index
    %225 = vector.load %arg15[%c3_183, %c0_184, %c0_185] : memref<4x64x128xbf16, #tpu.memory_space<vmem>>, vector<1x64x128xbf16>
    %226 = vector.shape_cast %225 : vector<1x64x128xbf16> to vector<64x128xbf16>
    %c0_186 = arith.constant 0 : index
    %c6 = arith.constant 6 : index
    %227 = vector.load %arg24[%c0_186, %c6] : memref<128x128xf32, #tpu.memory_space<vmem>>, vector<128x20xf32>
    %228 = arith.truncf %227 : vector<128x20xf32> to vector<128x20xbf16>
    %cst_187 = arith.constant dense<0.000000e+00> : vector<64x20xf32>
    %229 = tpu.matmul %226, %228, %cst_187 {dimension_numbers = #tpu.dot_dimension_numbers<[1], [0], [0], [1], [0, 0, 1, 1], [], []>} : vector<64x128xbf16>, vector<128x20xbf16>, vector<64x20xf32> -> vector<64x20xf32>
    %230 = arith.addf %224, %229 : vector<64x20xf32>
    %c0_188 = arith.constant 0 : index
    %c0_189 = arith.constant 0 : index
    %231 = vector.load %arg18[%c0_188, %c0_189] : memref<1x20xf32, #tpu.memory_space<vmem>>, vector<1x20xf32>
    %232 = vector.broadcast %231 : vector<1x20xf32> to vector<64x20xf32>
    %233 = arith.mulf %230, %232 : vector<64x20xf32>
    %cst_190 = arith.constant dense<0.000000e+00> : vector<64xf32>
    %234 = vector.multi_reduction <add>, %233, %cst_190 [1] : vector<64x20xf32> to vector<64xf32>
    %235 = vector.shape_cast %234 : vector<64xf32> to vector<64x1xf32>
    %cst_191 = arith.constant 6.250000e-02 : f32
    %236 = vector.broadcast %cst_191 : f32 to vector<64x1xf32>
    %237 = arith.mulf %235, %236 : vector<64x1xf32>
    %238 = vector.broadcast %237 : vector<64x1xf32> to vector<64x20xf32>
    %239 = arith.subf %230, %238 : vector<64x20xf32>
    %240 = arith.mulf %239, %239 : vector<64x20xf32>
    %241 = vector.broadcast %231 : vector<1x20xf32> to vector<64x20xf32>
    %242 = arith.mulf %240, %241 : vector<64x20xf32>
    %cst_192 = arith.constant dense<0.000000e+00> : vector<64xf32>
    %243 = vector.multi_reduction <add>, %242, %cst_192 [1] : vector<64x20xf32> to vector<64xf32>
    %244 = vector.shape_cast %243 : vector<64xf32> to vector<64x1xf32>
    %cst_193 = arith.constant 6.250000e-02 : f32
    %245 = vector.broadcast %cst_193 : f32 to vector<64x1xf32>
    %246 = arith.mulf %244, %245 : vector<64x1xf32>
    %cst_194 = arith.constant 9.99999974E-6 : f32
    %247 = vector.broadcast %cst_194 : f32 to vector<64x1xf32>
    %248 = arith.addf %246, %247 : vector<64x1xf32>
    %249 = math.rsqrt %248 : vector<64x1xf32>
    %250 = vector.broadcast %249 : vector<64x1xf32> to vector<64x20xf32>
    %251 = arith.mulf %239, %250 : vector<64x20xf32>
    %c0_195 = arith.constant 0 : index
    %c0_196 = arith.constant 0 : index
    %252 = vector.load %arg16[%c0_195, %c0_196] : memref<64x1xf32, #tpu.memory_space<vmem>>, vector<64x1xf32>
    %253 = vector.broadcast %252 : vector<64x1xf32> to vector<64x20xf32>
    %254 = arith.mulf %251, %253 : vector<64x20xf32>
    %c0_197 = arith.constant 0 : index
    %c0_198 = arith.constant 0 : index
    %255 = vector.load %arg17[%c0_197, %c0_198] : memref<64x1xf32, #tpu.memory_space<vmem>>, vector<64x1xf32>
    %256 = vector.broadcast %255 : vector<64x1xf32> to vector<64x20xf32>
    %257 = arith.addf %254, %256 : vector<64x20xf32>
    %cst_199 = arith.constant 0.000000e+00 : f32
    %258 = vector.broadcast %cst_199 : f32 to vector<64x20xf32>
    %259 = arith.cmpf oge, %257, %258 : vector<64x20xf32>
    %cst_200 = arith.constant 2.000000e-01 : f32
    %260 = vector.broadcast %cst_200 : f32 to vector<64x20xf32>
    %261 = arith.mulf %260, %257 : vector<64x20xf32>
    %262 = arith.select %259, %257, %261 : vector<64x20xi1>, vector<64x20xf32>
    %c0_201 = arith.constant 0 : index
    %c0_202 = arith.constant 0 : index
    %263 = vector.load %arg19[%c0_201, %c0_202] : memref<64x20xf32, #tpu.memory_space<vmem>>, vector<64x20xf32>
    %264 = arith.mulf %262, %263 : vector<64x20xf32>
    %cst_203 = arith.constant dense<0.000000e+00> : vector<64xf32>
    %265 = vector.multi_reduction <add>, %264, %cst_203 [1] : vector<64x20xf32> to vector<64xf32>
    %266 = vector.shape_cast %265 : vector<64xf32> to vector<64x1xf32>
    %cst_204 = arith.constant dense<0.000000e+00> : vector<1xf32>
    %267 = vector.multi_reduction <add>, %266, %cst_204 [0] : vector<64x1xf32> to vector<1xf32>
    %268 = vector.shape_cast %267 : vector<1xf32> to vector<1x1xf32>
    %c0_205 = arith.constant 0 : index
    %c0_206 = arith.constant 0 : index
    %269 = vector.load %arg20[%c0_205, %c0_206] : memref<1x1xf32, #tpu.memory_space<vmem>>, vector<1x1xf32>
    %270 = arith.addf %268, %269 : vector<1x1xf32>
    %c0_207 = arith.constant 0 : index
    %c0_208 = arith.constant 0 : index
    %c0_209 = arith.constant 0 : index
    %271 = vector.load %arg21[%c0_207, %c0_208, %c0_209] : memref<1x1x1xf32, #tpu.memory_space<vmem>>, vector<1x1x1xf32>
    %272 = vector.shape_cast %271 : vector<1x1x1xf32> to vector<1x1xf32>
    %273 = vector.shape_cast %270 : vector<1x1xf32> to vector<1x1x1xf32>
    tpu.vector_store %arg21[%c0_207, %c0_208, %c0_209], %273 {strides = array<i32>} : memref<1x1x1xf32, #tpu.memory_space<vmem>>, vector<1x1x1xf32>,
    return
  }
  func.func @transform_0(%arg0: i32) -> (i32, i32, i32, i32) {
    %c0_i32 = arith.constant 0 : i32
    %c0_i32_0 = arith.constant 0 : i32
    %c0_i32_1 = arith.constant 0 : i32
    %c0_i32_2 = arith.constant 0 : i32
    return %arg0, %c0_i32, %c0_i32_0, %c0_i32_1 : i32, i32, i32, i32
  }
  func.func @transform_1(%arg0: i32) -> (i32, i32) {
    %c0_i32 = arith.constant 0 : i32
    %c0_i32_0 = arith.constant 0 : i32
    %c0_i32_1 = arith.constant 0 : i32
    return %c0_i32, %c0_i32_0 : i32, i32
  }
  func.func @transform_2(%arg0: i32) -> (i32, i32) {
    %c0_i32 = arith.constant 0 : i32
    %c0_i32_0 = arith.constant 0 : i32
    %c0_i32_1 = arith.constant 0 : i32
    return %c0_i32, %c0_i32_0 : i32, i32
  }
  func.func @transform_3(%arg0: i32) -> (i32, i32) {
    %c0_i32 = arith.constant 0 : i32
    %c0_i32_0 = arith.constant 0 : i32
    %c0_i32_1 = arith.constant 0 : i32
    return %c0_i32, %c0_i32_0 : i32, i32
  }
  func.func @transform_4(%arg0: i32) -> (i32, i32, i32) {
    %c0_i32 = arith.constant 0 : i32
    %c0_i32_0 = arith.constant 0 : i32
    %c0_i32_1 = arith.constant 0 : i32
    %c0_i32_2 = arith.constant 0 : i32
    return %c0_i32, %c0_i32_0, %c0_i32_1 : i32, i32, i32
  }
  func.func @transform_5(%arg0: i32) -> (i32, i32) {
    %c0_i32 = arith.constant 0 : i32
    %c0_i32_0 = arith.constant 0 : i32
    %c0_i32_1 = arith.constant 0 : i32
    return %c0_i32, %c0_i32_0 : i32, i32
  }
  func.func @transform_6(%arg0: i32) -> (i32, i32) {
    %c0_i32 = arith.constant 0 : i32
    %c0_i32_0 = arith.constant 0 : i32
    %c0_i32_1 = arith.constant 0 : i32
    return %c0_i32, %c0_i32_0 : i32, i32
  }
  func.func @transform_7(%arg0: i32) -> (i32, i32) {
    %c0_i32 = arith.constant 0 : i32
    %c0_i32_0 = arith.constant 0 : i32
    %c0_i32_1 = arith.constant 0 : i32
    return %c0_i32, %c0_i32_0 : i32, i32
  }
  func.func @transform_8(%arg0: i32) -> (i32, i32, i32) {
    %c0_i32 = arith.constant 0 : i32
    %c0_i32_0 = arith.constant 0 : i32
    %c0_i32_1 = arith.constant 0 : i32
    %c0_i32_2 = arith.constant 0 : i32
    return %c0_i32, %c0_i32_0, %c0_i32_1 : i32, i32, i32
  }
  func.func @transform_9(%arg0: i32) -> (i32, i32, i32) {
    %c0_i32 = arith.constant 0 : i32
    %c0_i32_0 = arith.constant 0 : i32
    %c0_i32_1 = arith.constant 0 : i32
    %c0_i32_2 = arith.constant 0 : i32
    return %c0_i32, %c0_i32_0, %c0_i32_1 : i32, i32, i32
  }
  func.func @transform_10(%arg0: i32) -> (i32, i32) {
    %c0_i32 = arith.constant 0 : i32
    %c0_i32_0 = arith.constant 0 : i32
    %c0_i32_1 = arith.constant 0 : i32
    return %c0_i32, %c0_i32_0 : i32, i32
  }
  func.func @transform_11(%arg0: i32) -> (i32, i32) {
    %c0_i32 = arith.constant 0 : i32
    %c0_i32_0 = arith.constant 0 : i32
    %c0_i32_1 = arith.constant 0 : i32
    return %c0_i32, %c0_i32_0 : i32, i32
  }
  func.func @transform_12(%arg0: i32) -> (i32, i32) {
    %c0_i32 = arith.constant 0 : i32
    %c0_i32_0 = arith.constant 0 : i32
    %c0_i32_1 = arith.constant 0 : i32
    return %c0_i32, %c0_i32_0 : i32, i32
  }
  func.func @transform_13(%arg0: i32) -> (i32, i32, i32) {
    %c0_i32 = arith.constant 0 : i32
    %c0_i32_0 = arith.constant 0 : i32
    %c0_i32_1 = arith.constant 0 : i32
    %c0_i32_2 = arith.constant 0 : i32
    return %c0_i32, %c0_i32_0, %c0_i32_1 : i32, i32, i32
  }
  func.func @transform_14(%arg0: i32) -> (i32, i32, i32) {
    %c0_i32 = arith.constant 0 : i32
    %c0_i32_0 = arith.constant 0 : i32
    %c0_i32_1 = arith.constant 0 : i32
    %c0_i32_2 = arith.constant 0 : i32
    return %c0_i32, %c0_i32_0, %c0_i32_1 : i32, i32, i32
  }
  func.func @transform_15(%arg0: i32) -> (i32, i32) {
    %c0_i32 = arith.constant 0 : i32
    %c0_i32_0 = arith.constant 0 : i32
    %c0_i32_1 = arith.constant 0 : i32
    return %c0_i32, %c0_i32_0 : i32, i32
  }
  func.func @transform_16(%arg0: i32) -> (i32, i32) {
    %c0_i32 = arith.constant 0 : i32
    %c0_i32_0 = arith.constant 0 : i32
    %c0_i32_1 = arith.constant 0 : i32
    return %c0_i32, %c0_i32_0 : i32, i32
  }
  func.func @transform_17(%arg0: i32) -> (i32, i32) {
    %c0_i32 = arith.constant 0 : i32
    %c0_i32_0 = arith.constant 0 : i32
    %c0_i32_1 = arith.constant 0 : i32
    return %c0_i32, %c0_i32_0 : i32, i32
  }
  func.func @transform_18(%arg0: i32) -> (i32, i32) {
    %c0_i32 = arith.constant 0 : i32
    %c0_i32_0 = arith.constant 0 : i32
    %c0_i32_1 = arith.constant 0 : i32
    return %c0_i32, %c0_i32_0 : i32, i32
  }
  func.func @transform_19(%arg0: i32) -> (i32, i32) {
    %c0_i32 = arith.constant 0 : i32
    %c0_i32_0 = arith.constant 0 : i32
    %c0_i32_1 = arith.constant 0 : i32
    return %c0_i32, %c0_i32_0 : i32, i32
  }
  func.func @transform_20(%arg0: i32) -> (i32, i32, i32) {
    %c0_i32 = arith.constant 0 : i32
    %c0_i32_0 = arith.constant 0 : i32
    %c0_i32_1 = arith.constant 0 : i32
    return %arg0, %c0_i32, %c0_i32_0 : i32, i32, i32
  }
}

</mosaic_0001>

<llo_original>
// kernel: discriminator_forward.1
$region0: #{discriminator_forward.1}
  #allocation0 [shape = 'u32[]', space=smem, size = 0x4, offset = 0x4, fixed_abs, tag = 'smem constant byte address 0x4 - core index']
  #allocation1 [shape = 'u32[72,128]{1,0:T(1,128)}', space=vmem, size = 0x9000, scoped, tag = 'internal scratch']
  #allocation2 [shape = 'f32[32,384]{1,0:T(8,128)}', space=vmem, size = 0xc000, scoped, tag = 'scratch operand']
  #allocation3 [shape = 'f32[64,128]{1,0:T(8,128)}', space=vmem, size = 0x8000, scoped, tag = 'scratch operand']
  #allocation4 [shape = 'f32[128,128]{1,0:T(8,128)}', space=vmem, size = 0x10000, scoped, tag = 'scratch operand']
  #allocation5 [shape = 'f32[1,1]{1,0:T(1,128)S(1)}', space=vmem, size = 0x200, scoped, tag = 'scoped memory for discriminator_forward.1']
  %s0 = inlined_call_operand.vmem [shape: bf16[2,4,32,384], index: 0, kind: input, shape index: {}]
  %s1 = inlined_call_operand.vmem [shape: bf16[8,32], index: 1, kind: input, shape index: {}]
  %s2 = inlined_call_operand.vmem [shape: f32[8,1], index: 2, kind: input, shape index: {}]
  %s3 = inlined_call_operand.vmem [shape: f32[4,384], index: 3, kind: input, shape index: {}]
  %s4 = inlined_call_operand.vmem [shape: bf16[4,16,32], index: 4, kind: input, shape index: {}]
  %s5 = inlined_call_operand.vmem [shape: f32[16,1], index: 5, kind: input, shape index: {}]
  %s6 = inlined_call_operand.vmem [shape: f32[16,1], index: 6, kind: input, shape index: {}]
  %s7 = inlined_call_operand.vmem [shape: f32[1,272], index: 7, kind: input, shape index: {}]
  %s8 = inlined_call_operand.vmem [shape: bf16[4,272,128], index: 8, kind: input, shape index: {}]
  %s9 = inlined_call_operand.vmem [shape: bf16[4,32,64], index: 9, kind: input, shape index: {}]
  %s10 = inlined_call_operand.vmem [shape: f32[32,1], index: 10, kind: input, shape index: {}]
  %s11 = inlined_call_operand.vmem [shape: f32[32,1], index: 11, kind: input, shape index: {}]
  %s12 = inlined_call_operand.vmem [shape: f32[1,72], index: 12, kind: input, shape index: {}]
  %s13 = inlined_call_operand.vmem [shape: bf16[4,72,128], index: 13, kind: input, shape index: {}]
  %s14 = inlined_call_operand.vmem [shape: bf16[4,64,128], index: 14, kind: input, shape index: {}]
  %s15 = inlined_call_operand.vmem [shape: f32[64,1], index: 15, kind: input, shape index: {}]
  %s16 = inlined_call_operand.vmem [shape: f32[64,1], index: 16, kind: input, shape index: {}]
  %s17 = inlined_call_operand.vmem [shape: f32[1,20], index: 17, kind: input, shape index: {}]
  %s18 = inlined_call_operand.vmem [shape: f32[64,20], index: 18, kind: input, shape index: {}]
  %s19 = inlined_call_operand.<no memory space> [shape: f32[1,1], index: 19, kind: input, shape index: {}]
  %s20 = inlined_call_operand.vmem [shape: f32[2,1,1], index: 20, kind: output, shape index: {}]
  %s21 = sld [smem:[#allocation0]]
  $region113: #{discriminator_forward.1} parent=0
    _
  %s23 = ssub.s32 1, %s21
  %s24 = scalar_select 0, %s23, %s21
  %v25 = vstv %s19
  %26 = vst [vmem:[#allocation5] sm:$0x1] %v25
  loop: start=0, step=1, limit=4
  $region2: #{discriminator_forward.1} parent=0 // loop_pre_header
    _
  $region3: #{discriminator_forward.1} parent=0 // loop_header
    %s28 = sphi 0, %s32
    %p29 = scmp.ge.s32.totalorder %s28, 4
    %s38 = sphi 0, %s40
    %s41 = sphi 0, %s38
    %s42 = sphi 0, %s41
    %s58 = sphi 0, %s42
    %s62 = sphi 0, %s62
    %s64 = sphi 0, %s62
    %s65 = sphi 0, %s64
    %s79 = sphi 0, %s65
    %s83 = sphi 0, %s83
    %s85 = sphi 0, %s83
    %s86 = sphi 0, %s85
    %s100 = sphi 0, %s86
    %s104 = sphi 0, %s104
    %s106 = sphi 0, %s104
    %s107 = sphi 0, %s106
    %s121 = sphi 0, %s107
    %s125 = sphi 0, %s125
    %s127 = sphi 0, %s125
    %s128 = sphi 0, %s127
    %s142 = sphi 0, %s128
    %s146 = sphi 0, %s146
    %s148 = sphi 0, %s146
    %s149 = sphi 0, %s148
    %s163 = sphi 0, %s149
    %s167 = sphi 0, %s167
    %s169 = sphi 0, %s167
    %s170 = sphi 0, %s169
    %s184 = sphi 0, %s170
    %s188 = sphi 0, %s188
    %s190 = sphi 0, %s188
    %s191 = sphi 0, %s190
    %s205 = sphi 0, %s191
    %s209 = sphi 0, %s209
    %s211 = sphi 0, %s209
    %s212 = sphi 0, %s211
    %s226 = sphi 0, %s212
    %s230 = sphi 0, %s230
    %s232 = sphi 0, %s230
    %s233 = sphi 0, %s232
    %s247 = sphi 0, %s233
    %s251 = sphi 0, %s251
    %s253 = sphi 0, %s251
    %s254 = sphi 0, %s253
    %s268 = sphi 0, %s254
    %s272 = sphi 0, %s272
    %s274 = sphi 0, %s272
    %s275 = sphi 0, %s274
    %s289 = sphi 0, %s275
    %s293 = sphi 0, %s293
    %s295 = sphi 0, %s293
    %s296 = sphi 0, %s295
    %s310 = sphi 0, %s296
    %s314 = sphi 0, %s314
    %s316 = sphi 0, %s314
    %s317 = sphi 0, %s316
    %s331 = sphi 0, %s317
    %s335 = sphi 0, %s335
    %s337 = sphi 0, %s335
    %s338 = sphi 0, %s337
    %s352 = sphi 0, %s338
    %s356 = sphi 0, %s356
    %s358 = sphi 0, %s356
    %s359 = sphi 0, %s358
    %s373 = sphi 0, %s359
    %s377 = sphi 0, %s377
    %s379 = sphi 0, %s377
    %s380 = sphi 0, %s379
    %s394 = sphi 0, %s380
    %s398 = sphi 0, %s398
    %s400 = sphi 0, %s398
    %s401 = sphi 0, %s400
    %s415 = sphi 0, %s401
    %s419 = sphi 0, %s419
    %s421 = sphi 0, %s419
    %s422 = sphi 0, %s421
    %s436 = sphi 0, %s422
    %s440 = sphi 0, %s440
    %s442 = sphi 0, %s440
    %s443 = sphi 0, %s442
    %s457 = sphi 0, %s443
    %s463 = sphi 0, %s465
    %s466 = sphi 0, %s463
    %s467 = sphi 0, %s466
    %s483 = sphi 0, %s467
  $region4: #{discriminator_forward.1} parent=0 // loop_header_branch
    %31 = sbr.rel (%p29) target = $region8
  $region5: #{discriminator_forward.1} parent=0 // loop_body
    %s33 = ssub.s32 %s28, 1
    %s34 = ssub.s32 %s28, 2
    %s35 = sadd.s32 %s28, 1
    %s36 = ssub.s32 %s28, %s35
    %p37 = scmp.eq.s32.totalorder %s36, 0
    %s39 = sadd.s32 %s38, 1
    %s40 = scalar_select %p37, %s38, %s39
    %p43 = pneg %p37
    %p44 = scmp.eq.s32.totalorder %s28, 1
    %p45 = por %p43, %p44
    %p46 = scmp.ne.s32.totalorder %s38, %s41
    %p47 = scmp.eq.s32.totalorder %s28, 0
    %p48 = por %p46, %p47
    %p49 = scmp.ne.s32.totalorder %s38, %s41
    %p50 = scmp.eq.s32.totalorder %s33, 1
    %p51 = por %p49, %p50
    %p52 = scmp.ne.s32.totalorder %s41, %s42
    %p53 = scmp.eq.s32.totalorder %s33, 0
    %p54 = por %p52, %p53
    %p55 = scmp.ne.s32.totalorder %s41, %s42
    %p56 = scmp.eq.s32.totalorder %s34, 1
    %p57 = por %p55, %p56
    %p59 = scmp.ne.s32.totalorder %s42, %s58
    %p60 = scmp.eq.s32.totalorder %s34, 0
    %p61 = por %p59, %p60
    %s63 = sadd.s32 %s62, 1
    %p66 = scmp.eq.s32.totalorder %s28, 1
    %p67 = scmp.ne.s32.totalorder %s62, %s64
    %p68 = scmp.eq.s32.totalorder %s28, 0
    %p69 = por %p67, %p68
    %p70 = scmp.ne.s32.totalorder %s62, %s64
    %p71 = scmp.eq.s32.totalorder %s33, 1
    %p72 = por %p70, %p71
    %p73 = scmp.ne.s32.totalorder %s64, %s65
    %p74 = scmp.eq.s32.totalorder %s33, 0
    %p75 = por %p73, %p74
    %p76 = scmp.ne.s32.totalorder %s64, %s65
    %p77 = scmp.eq.s32.totalorder %s34, 1
    %p78 = por %p76, %p77
    %p80 = scmp.ne.s32.totalorder %s65, %s79
    %p81 = scmp.eq.s32.totalorder %s34, 0
    %p82 = por %p80, %p81
    %s84 = sadd.s32 %s83, 1
    %p87 = scmp.eq.s32.totalorder %s28, 1
    %p88 = scmp.ne.s32.totalorder %s83, %s85
    %p89 = scmp.eq.s32.totalorder %s28, 0
    %p90 = por %p88, %p89
    %p91 = scmp.ne.s32.totalorder %s83, %s85
    %p92 = scmp.eq.s32.totalorder %s33, 1
    %p93 = por %p91, %p92
    %p94 = scmp.ne.s32.totalorder %s85, %s86
    %p95 = scmp.eq.s32.totalorder %s33, 0
    %p96 = por %p94, %p95
    %p97 = scmp.ne.s32.totalorder %s85, %s86
    %p98 = scmp.eq.s32.totalorder %s34, 1
    %p99 = por %p97, %p98
    %p101 = scmp.ne.s32.totalorder %s86, %s100
    %p102 = scmp.eq.s32.totalorder %s34, 0
    %p103 = por %p101, %p102
    %s105 = sadd.s32 %s104, 1
    %p108 = scmp.eq.s32.totalorder %s28, 1
    %p109 = scmp.ne.s32.totalorder %s104, %s106
    %p110 = scmp.eq.s32.totalorder %s28, 0
    %p111 = por %p109, %p110
    %p112 = scmp.ne.s32.totalorder %s104, %s106
    %p113 = scmp.eq.s32.totalorder %s33, 1
    %p114 = por %p112, %p113
    %p115 = scmp.ne.s32.totalorder %s106, %s107
    %p116 = scmp.eq.s32.totalorder %s33, 0
    %p117 = por %p115, %p116
    %p118 = scmp.ne.s32.totalorder %s106, %s107
    %p119 = scmp.eq.s32.totalorder %s34, 1
    %p120 = por %p118, %p119
    %p122 = scmp.ne.s32.totalorder %s107, %s121
    %p123 = scmp.eq.s32.totalorder %s34, 0
    %p124 = por %p122, %p123
    %s126 = sadd.s32 %s125, 1
    %p129 = scmp.eq.s32.totalorder %s28, 1
    %p130 = scmp.ne.s32.totalorder %s125, %s127
    %p131 = scmp.eq.s32.totalorder %s28, 0
    %p132 = por %p130, %p131
    %p133 = scmp.ne.s32.totalorder %s125, %s127
    %p134 = scmp.eq.s32.totalorder %s33, 1
    %p135 = por %p133, %p134
    %p136 = scmp.ne.s32.totalorder %s127, %s128
    %p137 = scmp.eq.s32.totalorder %s33, 0
    %p138 = por %p136, %p137
    %p139 = scmp.ne.s32.totalorder %s127, %s128
    %p140 = scmp.eq.s32.totalorder %s34, 1
    %p141 = por %p139, %p140
    %p143 = scmp.ne.s32.totalorder %s128, %s142
    %p144 = scmp.eq.s32.totalorder %s34, 0
    %p145 = por %p143, %p144
    %s147 = sadd.s32 %s146, 1
    %p150 = scmp.eq.s32.totalorder %s28, 1
    %p151 = scmp.ne.s32.totalorder %s146, %s148
    %p152 = scmp.eq.s32.totalorder %s28, 0
    %p153 = por %p151, %p152
    %p154 = scmp.ne.s32.totalorder %s146, %s148
    %p155 = scmp.eq.s32.totalorder %s33, 1
    %p156 = por %p154, %p155
    %p157 = scmp.ne.s32.totalorder %s148, %s149
    %p158 = scmp.eq.s32.totalorder %s33, 0
    %p159 = por %p157, %p158
    %p160 = scmp.ne.s32.totalorder %s148, %s149
    %p161 = scmp.eq.s32.totalorder %s34, 1
    %p162 = por %p160, %p161
    %p164 = scmp.ne.s32.totalorder %s149, %s163
    %p165 = scmp.eq.s32.totalorder %s34, 0
    %p166 = por %p164, %p165
    %s168 = sadd.s32 %s167, 1
    %p171 = scmp.eq.s32.totalorder %s28, 1
    %p172 = scmp.ne.s32.totalorder %s167, %s169
    %p173 = scmp.eq.s32.totalorder %s28, 0
    %p174 = por %p172, %p173
    %p175 = scmp.ne.s32.totalorder %s167, %s169
    %p176 = scmp.eq.s32.totalorder %s33, 1
    %p177 = por %p175, %p176
    %p178 = scmp.ne.s32.totalorder %s169, %s170
    %p179 = scmp.eq.s32.totalorder %s33, 0
    %p180 = por %p178, %p179
    %p181 = scmp.ne.s32.totalorder %s169, %s170
    %p182 = scmp.eq.s32.totalorder %s34, 1
    %p183 = por %p181, %p182
    %p185 = scmp.ne.s32.totalorder %s170, %s184
    %p186 = scmp.eq.s32.totalorder %s34, 0
    %p187 = por %p185, %p186
    %s189 = sadd.s32 %s188, 1
    %p192 = scmp.eq.s32.totalorder %s28, 1
    %p193 = scmp.ne.s32.totalorder %s188, %s190
    %p194 = scmp.eq.s32.totalorder %s28, 0
    %p195 = por %p193, %p194
    %p196 = scmp.ne.s32.totalorder %s188, %s190
    %p197 = scmp.eq.s32.totalorder %s33, 1
    %p198 = por %p196, %p197
    %p199 = scmp.ne.s32.totalorder %s190, %s191
    %p200 = scmp.eq.s32.totalorder %s33, 0
    %p201 = por %p199, %p200
    %p202 = scmp.ne.s32.totalorder %s190, %s191
    %p203 = scmp.eq.s32.totalorder %s34, 1
    %p204 = por %p202, %p203
    %p206 = scmp.ne.s32.totalorder %s191, %s205
    %p207 = scmp.eq.s32.totalorder %s34, 0
    %p208 = por %p206, %p207
    %s210 = sadd.s32 %s209, 1
    %p213 = scmp.eq.s32.totalorder %s28, 1
    %p214 = scmp.ne.s32.totalorder %s209, %s211
    %p215 = scmp.eq.s32.totalorder %s28, 0
    %p216 = por %p214, %p215
    %p217 = scmp.ne.s32.totalorder %s209, %s211
    %p218 = scmp.eq.s32.totalorder %s33, 1
    %p219 = por %p217, %p218
    %p220 = scmp.ne.s32.totalorder %s211, %s212
    %p221 = scmp.eq.s32.totalorder %s33, 0
    %p222 = por %p220, %p221
    %p223 = scmp.ne.s32.totalorder %s211, %s212
    %p224 = scmp.eq.s32.totalorder %s34, 1
    %p225 = por %p223, %p224
    %p227 = scmp.ne.s32.totalorder %s212, %s226
    %p228 = scmp.eq.s32.totalorder %s34, 0
    %p229 = por %p227, %p228
    %s231 = sadd.s32 %s230, 1
    %p234 = scmp.eq.s32.totalorder %s28, 1
    %p235 = scmp.ne.s32.totalorder %s230, %s232
    %p236 = scmp.eq.s32.totalorder %s28, 0
    %p237 = por %p235, %p236
    %p238 = scmp.ne.s32.totalorder %s230, %s232
    %p239 = scmp.eq.s32.totalorder %s33, 1
    %p240 = por %p238, %p239
    %p241 = scmp.ne.s32.totalorder %s232, %s233
    %p242 = scmp.eq.s32.totalorder %s33, 0
    %p243 = por %p241, %p242
    %p244 = scmp.ne.s32.totalorder %s232, %s233
    %p245 = scmp.eq.s32.totalorder %s34, 1
    %p246 = por %p244, %p245
    %p248 = scmp.ne.s32.totalorder %s233, %s247
    %p249 = scmp.eq.s32.totalorder %s34, 0
    %p250 = por %p248, %p249
    %s252 = sadd.s32 %s251, 1
    %p255 = scmp.eq.s32.totalorder %s28, 1
    %p256 = scmp.ne.s32.totalorder %s251, %s253
    %p257 = scmp.eq.s32.totalorder %s28, 0
    %p258 = por %p256, %p257
    %p259 = scmp.ne.s32.totalorder %s251, %s253
    %p260 = scmp.eq.s32.totalorder %s33, 1
    %p261 = por %p259, %p260
    %p262 = scmp.ne.s32.totalorder %s253, %s254
    %p263 = scmp.eq.s32.totalorder %s33, 0
    %p264 = por %p262, %p263
    %p265 = scmp.ne.s32.totalorder %s253, %s254
    %p266 = scmp.eq.s32.totalorder %s34, 1
    %p267 = por %p265, %p266
    %p269 = scmp.ne.s32.totalorder %s254, %s268
    %p270 = scmp.eq.s32.totalorder %s34, 0
    %p271 = por %p269, %p270
    %s273 = sadd.s32 %s272, 1
    %p276 = scmp.eq.s32.totalorder %s28, 1
    %p277 = scmp.ne.s32.totalorder %s272, %s274
    %p278 = scmp.eq.s32.totalorder %s28, 0
    %p279 = por %p277, %p278
    %p280 = scmp.ne.s32.totalorder %s272, %s274
    %p281 = scmp.eq.s32.totalorder %s33, 1
    %p282 = por %p280, %p281
    %p283 = scmp.ne.s32.totalorder %s274, %s275
    %p284 = scmp.eq.s32.totalorder %s33, 0
    %p285 = por %p283, %p284
    %p286 = scmp.ne.s32.totalorder %s274, %s275
    %p287 = scmp.eq.s32.totalorder %s34, 1
    %p288 = por %p286, %p287
    %p290 = scmp.ne.s32.totalorder %s275, %s289
    %p291 = scmp.eq.s32.totalorder %s34, 0
    %p292 = por %p290, %p291
    %s294 = sadd.s32 %s293, 1
    %p297 = scmp.eq.s32.totalorder %s28, 1
    %p298 = scmp.ne.s32.totalorder %s293, %s295
    %p299 = scmp.eq.s32.totalorder %s28, 0
    %p300 = por %p298, %p299
    %p301 = scmp.ne.s32.totalorder %s293, %s295
    %p302 = scmp.eq.s32.totalorder %s33, 1
    %p303 = por %p301, %p302
    %p304 = scmp.ne.s32.totalorder %s295, %s296
    %p305 = scmp.eq.s32.totalorder %s33, 0
    %p306 = por %p304, %p305
    %p307 = scmp.ne.s32.totalorder %s295, %s296
    %p308 = scmp.eq.s32.totalorder %s34, 1
    %p309 = por %p307, %p308
    %p311 = scmp.ne.s32.totalorder %s296, %s310
    %p312 = scmp.eq.s32.totalorder %s34, 0
    %p313 = por %p311, %p312
    %s315 = sadd.s32 %s314, 1
    %p318 = scmp.eq.s32.totalorder %s28, 1
    %p319 = scmp.ne.s32.totalorder %s314, %s316
    %p320 = scmp.eq.s32.totalorder %s28, 0
    %p321 = por %p319, %p320
    %p322 = scmp.ne.s32.totalorder %s314, %s316
    %p323 = scmp.eq.s32.totalorder %s33, 1
    %p324 = por %p322, %p323
    %p325 = scmp.ne.s32.totalorder %s316, %s317
    %p326 = scmp.eq.s32.totalorder %s33, 0
    %p327 = por %p325, %p326
    %p328 = scmp.ne.s32.totalorder %s316, %s317
    %p329 = scmp.eq.s32.totalorder %s34, 1
    %p330 = por %p328, %p329
    %p332 = scmp.ne.s32.totalorder %s317, %s331
    %p333 = scmp.eq.s32.totalorder %s34, 0
    %p334 = por %p332, %p333
    %s336 = sadd.s32 %s335, 1
    %p339 = scmp.eq.s32.totalorder %s28, 1
    %p340 = scmp.ne.s32.totalorder %s335, %s337
    %p341 = scmp.eq.s32.totalorder %s28, 0
    %p342 = por %p340, %p341
    %p343 = scmp.ne.s32.totalorder %s335, %s337
    %p344 = scmp.eq.s32.totalorder %s33, 1
    %p345 = por %p343, %p344
    %p346 = scmp.ne.s32.totalorder %s337, %s338
    %p347 = scmp.eq.s32.totalorder %s33, 0
    %p348 = por %p346, %p347
    %p349 = scmp.ne.s32.totalorder %s337, %s338
    %p350 = scmp.eq.s32.totalorder %s34, 1
    %p351 = por %p349, %p350
    %p353 = scmp.ne.s32.totalorder %s338, %s352
    %p354 = scmp.eq.s32.totalorder %s34, 0
    %p355 = por %p353, %p354
    %s357 = sadd.s32 %s356, 1
    %p360 = scmp.eq.s32.totalorder %s28, 1
    %p361 = scmp.ne.s32.totalorder %s356, %s358
    %p362 = scmp.eq.s32.totalorder %s28, 0
    %p363 = por %p361, %p362
    %p364 = scmp.ne.s32.totalorder %s356, %s358
    %p365 = scmp.eq.s32.totalorder %s33, 1
    %p366 = por %p364, %p365
    %p367 = scmp.ne.s32.totalorder %s358, %s359
    %p368 = scmp.eq.s32.totalorder %s33, 0
    %p369 = por %p367, %p368
    %p370 = scmp.ne.s32.totalorder %s358, %s359
    %p371 = scmp.eq.s32.totalorder %s34, 1
    %p372 = por %p370, %p371
    %p374 = scmp.ne.s32.totalorder %s359, %s373
    %p375 = scmp.eq.s32.totalorder %s34, 0
    %p376 = por %p374, %p375
    %s378 = sadd.s32 %s377, 1
    %p381 = scmp.eq.s32.totalorder %s28, 1
    %p382 = scmp.ne.s32.totalorder %s377, %s379
    %p383 = scmp.eq.s32.totalorder %s28, 0
    %p384 = por %p382, %p383
    %p385 = scmp.ne.s32.totalorder %s377, %s379
    %p386 = scmp.eq.s32.totalorder %s33, 1
    %p387 = por %p385, %p386
    %p388 = scmp.ne.s32.totalorder %s379, %s380
    %p389 = scmp.eq.s32.totalorder %s33, 0
    %p390 = por %p388, %p389
    %p391 = scmp.ne.s32.totalorder %s379, %s380
    %p392 = scmp.eq.s32.totalorder %s34, 1
    %p393 = por %p391, %p392
    %p395 = scmp.ne.s32.totalorder %s380, %s394
    %p396 = scmp.eq.s32.totalorder %s34, 0
    %p397 = por %p395, %p396
    %s399 = sadd.s32 %s398, 1
    %p402 = scmp.eq.s32.totalorder %s28, 1
    %p403 = scmp.ne.s32.totalorder %s398, %s400
    %p404 = scmp.eq.s32.totalorder %s28, 0
    %p405 = por %p403, %p404
    %p406 = scmp.ne.s32.totalorder %s398, %s400
    %p407 = scmp.eq.s32.totalorder %s33, 1
    %p408 = por %p406, %p407
    %p409 = scmp.ne.s32.totalorder %s400, %s401
    %p410 = scmp.eq.s32.totalorder %s33, 0
    %p411 = por %p409, %p410
    %p412 = scmp.ne.s32.totalorder %s400, %s401
    %p413 = scmp.eq.s32.totalorder %s34, 1
    %p414 = por %p412, %p413
    %p416 = scmp.ne.s32.totalorder %s401, %s415
    %p417 = scmp.eq.s32.totalorder %s34, 0
    %p418 = por %p416, %p417
    %s420 = sadd.s32 %s419, 1
    %p423 = scmp.eq.s32.totalorder %s28, 1
    %p424 = scmp.ne.s32.totalorder %s419, %s421
    %p425 = scmp.eq.s32.totalorder %s28, 0
    %p426 = por %p424, %p425
    %p427 = scmp.ne.s32.totalorder %s419, %s421
    %p428 = scmp.eq.s32.totalorder %s33, 1
    %p429 = por %p427, %p428
    %p430 = scmp.ne.s32.totalorder %s421, %s422
    %p431 = scmp.eq.s32.totalorder %s33, 0
    %p432 = por %p430, %p431
    %p433 = scmp.ne.s32.totalorder %s421, %s422
    %p434 = scmp.eq.s32.totalorder %s34, 1
    %p435 = por %p433, %p434
    %p437 = scmp.ne.s32.totalorder %s422, %s436
    %p438 = scmp.eq.s32.totalorder %s34, 0
    %p439 = por %p437, %p438
    %s441 = sadd.s32 %s440, 1
    %p444 = scmp.eq.s32.totalorder %s28, 1
    %p445 = scmp.ne.s32.totalorder %s440, %s442
    %p446 = scmp.eq.s32.totalorder %s28, 0
    %p447 = por %p445, %p446
    %p448 = scmp.ne.s32.totalorder %s440, %s442
    %p449 = scmp.eq.s32.totalorder %s33, 1
    %p450 = por %p448, %p449
    %p451 = scmp.ne.s32.totalorder %s442, %s443
    %p452 = scmp.eq.s32.totalorder %s33, 0
    %p453 = por %p451, %p452
    %p454 = scmp.ne.s32.totalorder %s442, %s443
    %p455 = scmp.eq.s32.totalorder %s34, 1
    %p456 = por %p454, %p455
    %p458 = scmp.ne.s32.totalorder %s443, %s457
    %p459 = scmp.eq.s32.totalorder %s34, 0
    %p460 = por %p458, %p459
    %s461 = ssub.s32 %s28, %s35
    %p462 = scmp.eq.s32.totalorder %s461, 0
    %s464 = sadd.s32 %s463, 1
    %s465 = scalar_select %p462, %s463, %s464
    %p468 = pneg %p462
    %p469 = scmp.eq.s32.totalorder %s28, 1
    %p470 = por %p468, %p469
    %p471 = scmp.ne.s32.totalorder %s463, %s466
    %p472 = scmp.eq.s32.totalorder %s28, 0
    %p473 = por %p471, %p472
    %p474 = scmp.ne.s32.totalorder %s463, %s466
    %p475 = scmp.eq.s32.totalorder %s33, 1
    %p476 = por %p474, %p475
    %p477 = scmp.ne.s32.totalorder %s466, %s467
    %p478 = scmp.eq.s32.totalorder %s33, 0
    %p479 = por %p477, %p478
    %p480 = scmp.ne.s32.totalorder %s466, %s467
    %p481 = scmp.eq.s32.totalorder %s34, 1
    %p482 = por %p480, %p481
    %p484 = scmp.ne.s32.totalorder %s467, %s483
    %p485 = scmp.eq.s32.totalorder %s34, 0
    %p486 = por %p484, %p485
    %p487 = scmp.le.s32.totalorder 1, %s28
    %p488 = scmp.lt.s32.totalorder %s28, 3
    %p489 = pnand %p487, %p488
    %p490 = pneg %p489
    // Predicated region
    $region9: #{discriminator_forward.1} parent=5 // pred_check
      _
    $region10: #{discriminator_forward.1} parent=5 // pred_check_branch
      %492 = sbr.rel (%p489) target = $region12
    $region11: #{discriminator_forward.1} parent=5 // pred_region
      %s493 = ssub.s32 %s28, 1
      // Predicated region
      $region13: #{discriminator_forward.1} parent=11 // pred_check
        %p494 = pneg %p75
      $region14: #{discriminator_forward.1} parent=11 // pred_check_branch
        %496 = sbr.rel (%p494) target = $region16
      $region15: #{discriminator_forward.1} parent=11 // pred_region
        _
      $region16: #{discriminator_forward.1} parent=11 // pred_fallthru
        _
      // Predicated region
      $region17: #{discriminator_forward.1} parent=11 // pred_check
        %p497 = pneg %p96
      $region18: #{discriminator_forward.1} parent=11 // pred_check_branch
        %499 = sbr.rel (%p497) target = $region20
      $region19: #{discriminator_forward.1} parent=11 // pred_region
        _
      $region20: #{discriminator_forward.1} parent=11 // pred_fallthru
        _
      // Predicated region
      $region21: #{discriminator_forward.1} parent=11 // pred_check
        %p500 = pneg %p117
      $region22: #{discriminator_forward.1} parent=11 // pred_check_branch
        %502 = sbr.rel (%p500) target = $region24
      $region23: #{discriminator_forward.1} parent=11 // pred_region
        _
      $region24: #{discriminator_forward.1} parent=11 // pred_fallthru
        _
      // Predicated region
      $region25: #{discriminator_forward.1} parent=11 // pred_check
        %p503 = pneg %p138
      $region26: #{discriminator_forward.1} parent=11 // pred_check_branch
        %505 = sbr.rel (%p503) target = $region28
      $region27: #{discriminator_forward.1} parent=11 // pred_region
        _
      $region28: #{discriminator_forward.1} parent=11 // pred_fallthru
        _
      // Predicated region
      $region29: #{discriminator_forward.1} parent=11 // pred_check
        %p506 = pneg %p159
      $region30: #{discriminator_forward.1} parent=11 // pred_check_branch
        %508 = sbr.rel (%p506) target = $region32
      $region31: #{discriminator_forward.1} parent=11 // pred_region
        _
      $region32: #{discriminator_forward.1} parent=11 // pred_fallthru
        _
      // Predicated region
      $region33: #{discriminator_forward.1} parent=11 // pred_check
        %p509 = pneg %p180
      $region34: #{discriminator_forward.1} parent=11 // pred_check_branch
        %511 = sbr.rel (%p509) target = $region36
      $region35: #{discriminator_forward.1} parent=11 // pred_region
        _
      $region36: #{discriminator_forward.1} parent=11 // pred_fallthru
        _
      // Predicated region
      $region37: #{discriminator_forward.1} parent=11 // pred_check
        %p512 = pneg %p201
      $region38: #{discriminator_forward.1} parent=11 // pred_check_branch
        %514 = sbr.rel (%p512) target = $region40
      $region39: #{discriminator_forward.1} parent=11 // pred_region
        _
      $region40: #{discriminator_forward.1} parent=11 // pred_fallthru
        _
      // Predicated region
      $region41: #{discriminator_forward.1} parent=11 // pred_check
        %p515 = pneg %p222
      $region42: #{discriminator_forward.1} parent=11 // pred_check_branch
        %517 = sbr.rel (%p515) target = $region44
      $region43: #{discriminator_forward.1} parent=11 // pred_region
        _
      $region44: #{discriminator_forward.1} parent=11 // pred_fallthru
        _
      // Predicated region
      $region45: #{discriminator_forward.1} parent=11 // pred_check
        %p518 = pneg %p243
      $region46: #{discriminator_forward.1} parent=11 // pred_check_branch
        %520 = sbr.rel (%p518) target = $region48
      $region47: #{discriminator_forward.1} parent=11 // pred_region
        _
      $region48: #{discriminator_forward.1} parent=11 // pred_fallthru
        _
      // Predicated region
      $region49: #{discriminator_forward.1} parent=11 // pred_check
        %p521 = pneg %p264
      $region50: #{discriminator_forward.1} parent=11 // pred_check_branch
        %523 = sbr.rel (%p521) target = $region52
      $region51: #{discriminator_forward.1} parent=11 // pred_region
        _
      $region52: #{discriminator_forward.1} parent=11 // pred_fallthru
        _
      // Predicated region
      $region53: #{discriminator_forward.1} parent=11 // pred_check
        %p524 = pneg %p285
      $region54: #{discriminator_forward.1} parent=11 // pred_check_branch
        %526 = sbr.rel (%p524) target = $region56
      $region55: #{discriminator_forward.1} parent=11 // pred_region
        _
      $region56: #{discriminator_forward.1} parent=11 // pred_fallthru
        _
      // Predicated region
      $region57: #{discriminator_forward.1} parent=11 // pred_check
        %p527 = pneg %p306
      $region58: #{discriminator_forward.1} parent=11 // pred_check_branch
        %529 = sbr.rel (%p527) target = $region60
      $region59: #{discriminator_forward.1} parent=11 // pred_region
        _
      $region60: #{discriminator_forward.1} parent=11 // pred_fallthru
        _
      // Predicated region
      $region61: #{discriminator_forward.1} parent=11 // pred_check
        %p530 = pneg %p327
      $region62: #{discriminator_forward.1} parent=11 // pred_check_branch
        %532 = sbr.rel (%p530) target = $region64
      $region63: #{discriminator_forward.1} parent=11 // pred_region
        _
      $region64: #{discriminator_forward.1} parent=11 // pred_fallthru
        _
      // Predicated region
      $region65: #{discriminator_forward.1} parent=11 // pred_check
        %p533 = pneg %p348
      $region66: #{discriminator_forward.1} parent=11 // pred_check_branch
        %535 = sbr.rel (%p533) target = $region68
      $region67: #{discriminator_forward.1} parent=11 // pred_region
        _
      $region68: #{discriminator_forward.1} parent=11 // pred_fallthru
        _
      // Predicated region
      $region69: #{discriminator_forward.1} parent=11 // pred_check
        %p536 = pneg %p369
      $region70: #{discriminator_forward.1} parent=11 // pred_check_branch
        %538 = sbr.rel (%p536) target = $region72
      $region71: #{discriminator_forward.1} parent=11 // pred_region
        _
      $region72: #{discriminator_forward.1} parent=11 // pred_fallthru
        _
      // Predicated region
      $region73: #{discriminator_forward.1} parent=11 // pred_check
        %p539 = pneg %p390
      $region74: #{discriminator_forward.1} parent=11 // pred_check_branch
        %541 = sbr.rel (%p539) target = $region76
      $region75: #{discriminator_forward.1} parent=11 // pred_region
        _
      $region76: #{discriminator_forward.1} parent=11 // pred_fallthru
        _
      // Predicated region
      $region77: #{discriminator_forward.1} parent=11 // pred_check
        %p542 = pneg %p411
      $region78: #{discriminator_forward.1} parent=11 // pred_check_branch
        %544 = sbr.rel (%p542) target = $region80
      $region79: #{discriminator_forward.1} parent=11 // pred_region
        _
      $region80: #{discriminator_forward.1} parent=11 // pred_fallthru
        _
      // Predicated region
      $region81: #{discriminator_forward.1} parent=11 // pred_check
        %p545 = pneg %p432
      $region82: #{discriminator_forward.1} parent=11 // pred_check_branch
        %547 = sbr.rel (%p545) target = $region84
      $region83: #{discriminator_forward.1} parent=11 // pred_region
        _
      $region84: #{discriminator_forward.1} parent=11 // pred_fallthru
        _
      // Predicated region
      $region85: #{discriminator_forward.1} parent=11 // pred_check
        %p548 = pneg %p453
      $region86: #{discriminator_forward.1} parent=11 // pred_check_branch
        %550 = sbr.rel (%p548) target = $region88
      $region87: #{discriminator_forward.1} parent=11 // pred_region
        _
      $region88: #{discriminator_forward.1} parent=11 // pred_fallthru
        _
    $region12: #{discriminator_forward.1} parent=5 // pred_fallthru
      _
    %p551 = scmp.lt.s32.totalorder %s28, 2
    // Predicated region
    $region89: #{discriminator_forward.1} parent=5 // pred_check
      %p552 = pneg %p551
    $region90: #{discriminator_forward.1} parent=5 // pred_check_branch
      %554 = sbr.rel (%p552) target = $region92
    $region91: #{discriminator_forward.1} parent=5 // pred_region
      // Predicated region
      $region93: #{discriminator_forward.1} parent=91 // pred_check
        %p555 = pneg %p48
      $region94: #{discriminator_forward.1} parent=91 // pred_check_branch
        %557 = sbr.rel (%p555) target = $region96
      $region95: #{discriminator_forward.1} parent=91 // pred_region
        %p558 = scmp.lt.s32.totalorder %s28, 1
        %s559 = scalar_select %p558, %s28, 1
        %s560 = smul.addr %s559, 48
        %s561 = smul.addr %s560, 4
        %s562 = scalar_lea.vmem %s0, %s561
      $region96: #{discriminator_forward.1} parent=91 // pred_fallthru
        _
    $region92: #{discriminator_forward.1} parent=5 // pred_fallthru
      _
    %p563 = scmp.le.s32.totalorder 1, %s28
    %p564 = scmp.lt.s32.totalorder %s28, 3
    %p565 = pnand %p563, %p564
    %p566 = pneg %p565
    // Predicated region
    $region97: #{discriminator_forward.1} parent=5 // pred_check
      _
    $region98: #{discriminator_forward.1} parent=5 // pred_check_branch
      %568 = sbr.rel (%p565) target = $region100
    $region99: #{discriminator_forward.1} parent=5 // pred_region
      %s569 = ssub.s32 %s28, 1
      %p570 = scmp.lt.s32.totalorder %s33, 1
      %s571 = scalar_select %p570, %s33, 1
      %s572 = smul.addr %s571, 48
      %s573 = smul.addr %s572, 4
      %s574 = scalar_lea.vmem %s0, %s573
      %p575 = pneg %p54
      %p576 = pneg %p51
      %p577 = pneg %p75
      %p578 = pneg %p72
      %p579 = pneg %p96
      %p580 = pneg %p93
      %p581 = pneg %p117
      %p582 = pneg %p114
      %p583 = pneg %p138
      %p584 = pneg %p135
      %p585 = pneg %p159
      %p586 = pneg %p156
      %p587 = pneg %p180
      %p588 = pneg %p177
      %p589 = pneg %p201
      %p590 = pneg %p198
      %p591 = pneg %p222
      %p592 = pneg %p219
      %p593 = pneg %p243
      %p594 = pneg %p240
      %p595 = pneg %p264
      %p596 = pneg %p261
      %p597 = pneg %p285
      %p598 = pneg %p282
      %p599 = pneg %p306
      %p600 = pneg %p303
      %p601 = pneg %p327
      %p602 = pneg %p324
      %p603 = pneg %p348
      %p604 = pneg %p345
      %p605 = pneg %p369
      %p606 = pneg %p366
      %p607 = pneg %p390
      %p608 = pneg %p387
      %p609 = pneg %p411
      %p610 = pneg %p408
      %p611 = pneg %p432
      %p612 = pneg %p429
      %p613 = pneg %p453
      %p614 = pneg %p450
      %p615 = pneg %p479
      %p616 = pneg %p476
      %p617 = scmp.lt.s32.totalorder %s33, 1
      %s618 = scalar_select %p617, %s33, 1
      %s619 = scalar_lea.vmem %s20, %s618
      %p620 = scmp.lt.s32.totalorder %s33, 1
      %s621 = scalar_select %p620, %s33, 1
      %s622 = smul.addr %s621, 48
      %s623 = smul.addr %s622, 4
      %s624 = scalar_lea.vmem %s0, %s623
      %p625 = scmp.lt.s32.totalorder %s33, 1
      %s626 = scalar_select %p625, %s33, 1
      %s627 = scalar_lea.vmem %s20, %s626
      %v629 = vld [vmem:[%s1] sm:$0xf]
      %v630 = vld [vmem:[%s624] sm:$0xff]
      %v631 = vld [vmem:[%s624 + $0x8] sm:$0xf]
      %v632 = vld [vmem:[%s624 + $0xc] sm:$0xff]
      %v633 = vld [vmem:[%s624 + $0x14] sm:$0xf]
      %v634 = vld [vmem:[%s624 + $0x18] sm:$0xff]
      %v635 = vld [vmem:[%s624 + $0x20] sm:$0xf]
      %v636 = vld [vmem:[%s624 + $0x24] sm:$0xff]
      %v637 = vld [vmem:[%s624 + $0x2c] sm:$0xf]
      %v638 = vld [vmem:[%s2] sm:$0xff]
      %640 = vset.pattern.permute.xlu0 0
      %641 = vperm.xlu0 %640, %v638
      %v642 = vpop.permute.xlu0 %641
      %v652 = vunpack.c.l.b16 %v630
      %v653 = vunpack.c.h.b16 %v630
      %v654 = vunpack.c.l.b16 %v631
      %v655 = vunpack.c.l.b16 %v632
      %v656 = vunpack.c.h.b16 %v632
      %v657 = vunpack.c.l.b16 %v633
      %v658 = vunpack.c.l.b16 %v634
      %v659 = vunpack.c.h.b16 %v634
      %v660 = vunpack.c.l.b16 %v635
      %v661 = vunpack.c.l.b16 %v636
      %v662 = vunpack.c.h.b16 %v636
      %v663 = vunpack.c.l.b16 %v637
      %v664 = vpack.c.b16 %v655, %v652
      %v665 = vpack.c.b16 %v656, %v653
      %v666 = vpack.c.b16 %v657, %v654
      %v667 = vpack.c.b16 %v661, %v658
      %v668 = vpack.c.b16 %v662, %v659
      %v669 = vpack.c.b16 %v663, %v660
      %vm676 = vcmask 261120
      %v678 = vsel %vm676, %v629, 0
      %680 = vmatpush.bf16.msra.mxu0 0
      %681 = vmatpush.bf16.msra.mxu0 0
      %682 = vmatpush.bf16.msra.mxu0 0
      %683 = vmatpush.bf16.msra.mxu0 0
      %684 = vmatpush.bf16.msra.mxu0 0
      %685 = vmatpush.bf16.msra.mxu0 0
      %686 = vmatpush.bf16.msra.mxu0 %v667
      %687 = vmatpush.bf16.msra.mxu0 %v664
      %688 = vmatmul.bf16.gmra.mxu0 %v678
      %v689 = vpop.f32.mrf.mxu0
      %v690 = vadd.f32 %v642, %v689
      %v691 = vpop.f32.mrf.mxu0
      %692 = vdwg.mxu0
      %693 = vmatpush.bf16.msra.mxu0 0
      %694 = vmatpush.bf16.msra.mxu0 0
      %695 = vmatpush.bf16.msra.mxu0 0
      %696 = vmatpush.bf16.msra.mxu0 0
      %697 = vmatpush.bf16.msra.mxu0 0
      %698 = vmatpush.bf16.msra.mxu0 0
      %699 = vmatpush.bf16.msra.mxu0 %v668
      %700 = vmatpush.bf16.msra.mxu0 %v665
      %701 = vmatmul.bf16.gmra.mxu0 %v678
      %v702 = vpop.f32.mrf.mxu0
      %v703 = vadd.f32 %v642, %v702
      %v704 = vpop.f32.mrf.mxu0
      %705 = vdwg.mxu0
      %706 = vmatpush.bf16.msra.mxu0 0
      %707 = vmatpush.bf16.msra.mxu0 0
      %708 = vmatpush.bf16.msra.mxu0 0
      %709 = vmatpush.bf16.msra.mxu0 0
      %710 = vmatpush.bf16.msra.mxu0 0
      %711 = vmatpush.bf16.msra.mxu0 0
      %712 = vmatpush.bf16.msra.mxu0 %v669
      %713 = vmatpush.bf16.msra.mxu0 %v666
      %714 = vmatmul.bf16.gmra.mxu0 %v678
      %v715 = vpop.f32.mrf.mxu0
      %v716 = vadd.f32 %v642, %v715
      %v717 = vpop.f32.mrf.mxu0
      %718 = vdwg.mxu0
      %vm719 = vcmp.ge.f32.partialorder %v690, 0.0
      %vm720 = vcmp.ge.f32.partialorder %v703, 0.0
      %vm721 = vcmp.ge.f32.partialorder %v716, 0.0
      %v722 = vmul.f32 %v690, 0.2
      %v723 = vmul.f32 %v703, 0.2
      %v724 = vmul.f32 %v716, 0.2
      %v725 = vsel %vm719, %v690, %v722
      %v726 = vsel %vm720, %v703, %v723
      %v727 = vsel %vm721, %v716, %v724
      %v728 = vld [vmem:[%s3] ss:$4 sm:$0x7]
      %v730 = vperm.slane %v728, 0
      %v731 = vperm.slane %v728, 1
      %v732 = vperm.slane %v728, 2
      %v736 = vmul.f32 %v725, %v730
      %v737 = vmul.f32 %v726, %v731
      %v738 = vmul.f32 %v727, %v732
      %739 = vst [vmem:[#allocation2] sm:$0xff] %v736
      %740 = vst [vmem:[#allocation2 + $0x8] sm:$0xff] %v737
      %741 = vst [vmem:[#allocation2 + $0x10] sm:$0xff] %v738
      %v742 = vld [vmem:[%s1] sm:$0xf]
      %s743 = scalar_lea.vmem %s624, 48
      %v744 = vld [vmem:[%s743] sm:$0xff]
      %v745 = vld [vmem:[%s743 + $0x8] sm:$0xf]
      %v746 = vld [vmem:[%s743 + $0xc] sm:$0xff]
      %v747 = vld [vmem:[%s743 + $0x14] sm:$0xf]
      %v748 = vld [vmem:[%s743 + $0x18] sm:$0xff]
      %v749 = vld [vmem:[%s743 + $0x20] sm:$0xf]
      %v750 = vld [vmem:[%s743 + $0x24] sm:$0xff]
      %v751 = vld [vmem:[%s743 + $0x2c] sm:$0xf]
      %v752 = vld [vmem:[%s2] sm:$0xff]
      %754 = vset.pattern.permute.xlu0 0
      %755 = vperm.xlu0 %754, %v752
      %v756 = vpop.permute.xlu0 %755
      %v766 = vunpack.c.l.b16 %v744
      %v767 = vunpack.c.h.b16 %v744
      %v768 = vunpack.c.l.b16 %v745
      %v769 = vunpack.c.l.b16 %v746
      %v770 = vunpack.c.h.b16 %v746
      %v771 = vunpack.c.l.b16 %v747
      %v772 = vunpack.c.l.b16 %v748
      %v773 = vunpack.c.h.b16 %v748
      %v774 = vunpack.c.l.b16 %v749
      %v775 = vunpack.c.l.b16 %v750
      %v776 = vunpack.c.h.b16 %v750
      %v777 = vunpack.c.l.b16 %v751
      %v778 = vpack.c.b16 %v769, %v766
      %v779 = vpack.c.b16 %v770, %v767
      %v780 = vpack.c.b16 %v771, %v768
      %v781 = vpack.c.b16 %v775, %v772
      %v782 = vpack.c.b16 %v776, %v773
      %v783 = vpack.c.b16 %v777, %v774
      %v791 = vsel %vm676, %v742, 0
      %793 = vmatpush.bf16.msra.mxu0 0
      %794 = vmatpush.bf16.msra.mxu0 0
      %795 = vmatpush.bf16.msra.mxu0 0
      %796 = vmatpush.bf16.msra.mxu0 0
      %797 = vmatpush.bf16.msra.mxu0 0
      %798 = vmatpush.bf16.msra.mxu0 0
      %799 = vmatpush.bf16.msra.mxu0 %v781
      %800 = vmatpush.bf16.msra.mxu0 %v778
      %801 = vmatmul.bf16.gmra.mxu0 %v791
      %v802 = vpop.f32.mrf.mxu0
      %v803 = vadd.f32 %v756, %v802
      %v804 = vpop.f32.mrf.mxu0
      %805 = vdwg.mxu0
      %806 = vmatpush.bf16.msra.mxu0 0
      %807 = vmatpush.bf16.msra.mxu0 0
      %808 = vmatpush.bf16.msra.mxu0 0
      %809 = vmatpush.bf16.msra.mxu0 0
      %810 = vmatpush.bf16.msra.mxu0 0
      %811 = vmatpush.bf16.msra.mxu0 0
      %812 = vmatpush.bf16.msra.mxu0 %v782
      %813 = vmatpush.bf16.msra.mxu0 %v779
      %814 = vmatmul.bf16.gmra.mxu0 %v791
      %v815 = vpop.f32.mrf.mxu0
      %v816 = vadd.f32 %v756, %v815
      %v817 = vpop.f32.mrf.mxu0
      %818 = vdwg.mxu0
      %819 = vmatpush.bf16.msra.mxu0 0
      %820 = vmatpush.bf16.msra.mxu0 0
      %821 = vmatpush.bf16.msra.mxu0 0
      %822 = vmatpush.bf16.msra.mxu0 0
      %823 = vmatpush.bf16.msra.mxu0 0
      %824 = vmatpush.bf16.msra.mxu0 0
      %825 = vmatpush.bf16.msra.mxu0 %v783
      %826 = vmatpush.bf16.msra.mxu0 %v780
      %827 = vmatmul.bf16.gmra.mxu0 %v791
      %v828 = vpop.f32.mrf.mxu0
      %v829 = vadd.f32 %v756, %v828
      %v830 = vpop.f32.mrf.mxu0
      %831 = vdwg.mxu0
      %vm832 = vcmp.ge.f32.partialorder %v803, 0.0
      %vm833 = vcmp.ge.f32.partialorder %v816, 0.0
      %vm834 = vcmp.ge.f32.partialorder %v829, 0.0
      %v835 = vmul.f32 %v803, 0.2
      %v836 = vmul.f32 %v816, 0.2
      %v837 = vmul.f32 %v829, 0.2
      %v838 = vsel %vm832, %v803, %v835
      %v839 = vsel %vm833, %v816, %v836
      %v840 = vsel %vm834, %v829, %v837
      %s841 = scalar_lea.vmem %s3, 1
      %v842 = vld [vmem:[%s841] ss:$4 sm:$0x7]
      %v844 = vperm.slane %v842, 0
      %v845 = vperm.slane %v842, 1
      %v846 = vperm.slane %v842, 2
      %v850 = vmul.f32 %v838, %v844
      %v851 = vmul.f32 %v839, %v845
      %v852 = vmul.f32 %v840, %v846
      %853 = vst [vmem:[#allocation2 + $0x18] sm:$0xff] %v850
      %854 = vst [vmem:[#allocation2 + $0x20] sm:$0xff] %v851
      %855 = vst [vmem:[#allocation2 + $0x28] sm:$0xff] %v852
      %v856 = vld [vmem:[%s1] sm:$0xf]
      %s857 = scalar_lea.vmem %s624, 96
      %v858 = vld [vmem:[%s857] sm:$0xff]
      %v859 = vld [vmem:[%s857 + $0x8] sm:$0xf]
      %v860 = vld [vmem:[%s857 + $0xc] sm:$0xff]
      %v861 = vld [vmem:[%s857 + $0x14] sm:$0xf]
      %v862 = vld [vmem:[%s857 + $0x18] sm:$0xff]
      %v863 = vld [vmem:[%s857 + $0x20] sm:$0xf]
      %v864 = vld [vmem:[%s857 + $0x24] sm:$0xff]
      %v865 = vld [vmem:[%s857 + $0x2c] sm:$0xf]
      %v866 = vld [vmem:[%s2] sm:$0xff]
      %868 = vset.pattern.permute.xlu0 0
      %869 = vperm.xlu0 %868, %v866
      %v870 = vpop.permute.xlu0 %869
      %v880 = vunpack.c.l.b16 %v858
      %v881 = vunpack.c.h.b16 %v858
      %v882 = vunpack.c.l.b16 %v859
      %v883 = vunpack.c.l.b16 %v860
      %v884 = vunpack.c.h.b16 %v860
      %v885 = vunpack.c.l.b16 %v861
      %v886 = vunpack.c.l.b16 %v862
      %v887 = vunpack.c.h.b16 %v862
      %v888 = vunpack.c.l.b16 %v863
      %v889 = vunpack.c.l.b16 %v864
      %v890 = vunpack.c.h.b16 %v864
      %v891 = vunpack.c.l.b16 %v865
      %v892 = vpack.c.b16 %v883, %v880
      %v893 = vpack.c.b16 %v884, %v881
      %v894 = vpack.c.b16 %v885, %v882
      %v895 = vpack.c.b16 %v889, %v886
      %v896 = vpack.c.b16 %v890, %v887
      %v897 = vpack.c.b16 %v891, %v888
      %v905 = vsel %vm676, %v856, 0
      %907 = vmatpush.bf16.msra.mxu0 0
      %908 = vmatpush.bf16.msra.mxu0 0
      %909 = vmatpush.bf16.msra.mxu0 0
      %910 = vmatpush.bf16.msra.mxu0 0
      %911 = vmatpush.bf16.msra.mxu0 0
      %912 = vmatpush.bf16.msra.mxu0 0
      %913 = vmatpush.bf16.msra.mxu0 %v895
      %914 = vmatpush.bf16.msra.mxu0 %v892
      %915 = vmatmul.bf16.gmra.mxu0 %v905
      %v916 = vpop.f32.mrf.mxu0
      %v917 = vadd.f32 %v870, %v916
      %v918 = vpop.f32.mrf.mxu0
      %919 = vdwg.mxu0
      %920 = vmatpush.bf16.msra.mxu0 0
      %921 = vmatpush.bf16.msra.mxu0 0
      %922 = vmatpush.bf16.msra.mxu0 0
      %923 = vmatpush.bf16.msra.mxu0 0
      %924 = vmatpush.bf16.msra.mxu0 0
      %925 = vmatpush.bf16.msra.mxu0 0
      %926 = vmatpush.bf16.msra.mxu0 %v896
      %927 = vmatpush.bf16.msra.mxu0 %v893
      %928 = vmatmul.bf16.gmra.mxu0 %v905
      %v929 = vpop.f32.mrf.mxu0
      %v930 = vadd.f32 %v870, %v929
      %v931 = vpop.f32.mrf.mxu0
      %932 = vdwg.mxu0
      %933 = vmatpush.bf16.msra.mxu0 0
      %934 = vmatpush.bf16.msra.mxu0 0
      %935 = vmatpush.bf16.msra.mxu0 0
      %936 = vmatpush.bf16.msra.mxu0 0
      %937 = vmatpush.bf16.msra.mxu0 0
      %938 = vmatpush.bf16.msra.mxu0 0
      %939 = vmatpush.bf16.msra.mxu0 %v897
      %940 = vmatpush.bf16.msra.mxu0 %v894
      %941 = vmatmul.bf16.gmra.mxu0 %v905
      %v942 = vpop.f32.mrf.mxu0
      %v943 = vadd.f32 %v870, %v942
      %v944 = vpop.f32.mrf.mxu0
      %945 = vdwg.mxu0
      %vm946 = vcmp.ge.f32.partialorder %v917, 0.0
      %vm947 = vcmp.ge.f32.partialorder %v930, 0.0
      %vm948 = vcmp.ge.f32.partialorder %v943, 0.0
      %v949 = vmul.f32 %v917, 0.2
      %v950 = vmul.f32 %v930, 0.2
      %v951 = vmul.f32 %v943, 0.2
      %v952 = vsel %vm946, %v917, %v949
      %v953 = vsel %vm947, %v930, %v950
      %v954 = vsel %vm948, %v943, %v951
      %s955 = scalar_lea.vmem %s3, 2
      %v956 = vld [vmem:[%s955] ss:$4 sm:$0x7]
      %v958 = vperm.slane %v956, 0
      %v959 = vperm.slane %v956, 1
      %v960 = vperm.slane %v956, 2
      %v964 = vmul.f32 %v952, %v958
      %v965 = vmul.f32 %v953, %v959
      %v966 = vmul.f32 %v954, %v960
      %967 = vst [vmem:[#allocation2 + $0x30] sm:$0xff] %v964
      %968 = vst [vmem:[#allocation2 + $0x38] sm:$0xff] %v965
      %969 = vst [vmem:[#allocation2 + $0x40] sm:$0xff] %v966
      %v970 = vld [vmem:[%s1] sm:$0xf]
      %s971 = scalar_lea.vmem %s624, 144
      %v972 = vld [vmem:[%s971] sm:$0xff]
      %v973 = vld [vmem:[%s971 + $0x8] sm:$0xf]
      %v974 = vld [vmem:[%s971 + $0xc] sm:$0xff]
      %v975 = vld [vmem:[%s971 + $0x14] sm:$0xf]
      %v976 = vld [vmem:[%s971 + $0x18] sm:$0xff]
      %v977 = vld [vmem:[%s971 + $0x20] sm:$0xf]
      %v978 = vld [vmem:[%s971 + $0x24] sm:$0xff]
      %v979 = vld [vmem:[%s971 + $0x2c] sm:$0xf]
      %v980 = vld [vmem:[%s2] sm:$0xff]
      %982 = vset.pattern.permute.xlu0 0
      %983 = vperm.xlu0 %982, %v980
      %v984 = vpop.permute.xlu0 %983
      %v994 = vunpack.c.l.b16 %v972
      %v995 = vunpack.c.h.b16 %v972
      %v996 = vunpack.c.l.b16 %v973
      %v997 = vunpack.c.l.b16 %v974
      %v998 = vunpack.c.h.b16 %v974
      %v999 = vunpack.c.l.b16 %v975
      %v1000 = vunpack.c.l.b16 %v976
      %v1001 = vunpack.c.h.b16 %v976
      %v1002 = vunpack.c.l.b16 %v977
      %v1003 = vunpack.c.l.b16 %v978
      %v1004 = vunpack.c.h.b16 %v978
      %v1005 = vunpack.c.l.b16 %v979
      %v1006 = vpack.c.b16 %v997, %v994
      %v1007 = vpack.c.b16 %v998, %v995
      %v1008 = vpack.c.b16 %v999, %v996
      %v1009 = vpack.c.b16 %v1003, %v1000
      %v1010 = vpack.c.b16 %v1004, %v1001
      %v1011 = vpack.c.b16 %v1005, %v1002
      %v1019 = vsel %vm676, %v970, 0
      %1021 = vmatpush.bf16.msra.mxu0 0
      %1022 = vmatpush.bf16.msra.mxu0 0
      %1023 = vmatpush.bf16.msra.mxu0 0
      %1024 = vmatpush.bf16.msra.mxu0 0
      %1025 = vmatpush.bf16.msra.mxu0 0
      %1026 = vmatpush.bf16.msra.mxu0 0
      %1027 = vmatpush.bf16.msra.mxu0 %v1009
      %1028 = vmatpush.bf16.msra.mxu0 %v1006
      %1029 = vmatmul.bf16.gmra.mxu0 %v1019
      %v1030 = vpop.f32.mrf.mxu0
      %v1031 = vadd.f32 %v984, %v1030
      %v1032 = vpop.f32.mrf.mxu0
      %1033 = vdwg.mxu0
      %1034 = vmatpush.bf16.msra.mxu0 0
      %1035 = vmatpush.bf16.msra.mxu0 0
      %1036 = vmatpush.bf16.msra.mxu0 0
      %1037 = vmatpush.bf16.msra.mxu0 0
      %1038 = vmatpush.bf16.msra.mxu0 0
      %1039 = vmatpush.bf16.msra.mxu0 0
      %1040 = vmatpush.bf16.msra.mxu0 %v1010
      %1041 = vmatpush.bf16.msra.mxu0 %v1007
      %1042 = vmatmul.bf16.gmra.mxu0 %v1019
      %v1043 = vpop.f32.mrf.mxu0
      %v1044 = vadd.f32 %v984, %v1043
      %v1045 = vpop.f32.mrf.mxu0
      %1046 = vdwg.mxu0
      %1047 = vmatpush.bf16.msra.mxu0 0
      %1048 = vmatpush.bf16.msra.mxu0 0
      %1049 = vmatpush.bf16.msra.mxu0 0
      %1050 = vmatpush.bf16.msra.mxu0 0
      %1051 = vmatpush.bf16.msra.mxu0 0
      %1052 = vmatpush.bf16.msra.mxu0 0
      %1053 = vmatpush.bf16.msra.mxu0 %v1011
      %1054 = vmatpush.bf16.msra.mxu0 %v1008
      %1055 = vmatmul.bf16.gmra.mxu0 %v1019
      %v1056 = vpop.f32.mrf.mxu0
      %v1057 = vadd.f32 %v984, %v1056
      %v1058 = vpop.f32.mrf.mxu0
      %1059 = vdwg.mxu0
      %vm1060 = vcmp.ge.f32.partialorder %v1031, 0.0
      %vm1061 = vcmp.ge.f32.partialorder %v1044, 0.0
      %vm1062 = vcmp.ge.f32.partialorder %v1057, 0.0
      %v1063 = vmul.f32 %v1031, 0.2
      %v1064 = vmul.f32 %v1044, 0.2
      %v1065 = vmul.f32 %v1057, 0.2
      %v1066 = vsel %vm1060, %v1031, %v1063
      %v1067 = vsel %vm1061, %v1044, %v1064
      %v1068 = vsel %vm1062, %v1057, %v1065
      %s1069 = scalar_lea.vmem %s3, 3
      %v1070 = vld [vmem:[%s1069] ss:$4 sm:$0x7]
      %v1072 = vperm.slane %v1070, 0
      %v1073 = vperm.slane %v1070, 1
      %v1074 = vperm.slane %v1070, 2
      %v1078 = vmul.f32 %v1066, %v1072
      %v1079 = vmul.f32 %v1067, %v1073
      %v1080 = vmul.f32 %v1068, %v1074
      %1081 = vst [vmem:[#allocation2 + $0x48] sm:$0xff] %v1078
      %1082 = vst [vmem:[#allocation2 + $0x50] sm:$0xff] %v1079
      %1083 = vst [vmem:[#allocation2 + $0x58] sm:$0xff] %v1080
      %v1084 = vld [vmem:[%s4] sm:$0xf]
      %v1085 = vld [vmem:[%s4 + $0x4] sm:$0xf]
      %v1086 = vld [vmem:[#allocation2] sm:$0xff]
      %v1087 = vld [vmem:[#allocation2 + $0x8] sm:$0xff]
      %v1088 = vld [vmem:[#allocation2 + $0x10] sm:$0xff]
      %v1089 = vld [vmem:[#allocation2 + $0x18] sm:$0xff]
      %v1090 = vld [vmem:[#allocation2 + $0x20] sm:$0xff]
      %v1091 = vld [vmem:[#allocation2 + $0x28] sm:$0xff]
      %v1092 = vld [vmem:[#allocation2 + $0x30] sm:$0xff]
      %v1093 = vld [vmem:[#allocation2 + $0x38] sm:$0xff]
      %v1094 = vld [vmem:[#allocation2 + $0x40] sm:$0xff]
      %v1095 = vld [vmem:[#allocation2 + $0x48] sm:$0xff]
      %v1096 = vld [vmem:[#allocation2 + $0x50] sm:$0xff]
      %v1097 = vld [vmem:[#allocation2 + $0x58] sm:$0xff]
      %v1098 = vpack.c.bf16 %v1089, %v1086
      %v1099 = vpack.c.bf16 %v1090, %v1087
      %v1100 = vpack.c.bf16 %v1091, %v1088
      %v1101 = vpack.c.bf16 %v1095, %v1092
      %v1102 = vpack.c.bf16 %v1096, %v1093
      %v1103 = vpack.c.bf16 %v1097, %v1094
      %s1104 = scalar_lea.vmem %s4, 8
      %v1105 = vld [vmem:[%s1104] sm:$0xf]
      %v1106 = vld [vmem:[%s1104 + $0x4] sm:$0xf]
      %v1109 = vunpack.c.l.b16 %v1105
      %v1110 = vunpack.c.l.b16 %v1106
      %v1111 = vpack.c.b16 %v1110, %v1109
      %1118 = vrot.lane.b32.xlu0 %v1098, 127
      %v1119 = vpop.permute.xlu0 %1118
      %1120 = vrot.lane.b32.xlu0 %v1099, 127
      %v1121 = vpop.permute.xlu0 %1120
      %1122 = vrot.lane.b32.xlu0 %v1100, 127
      %v1123 = vpop.permute.xlu0 %1122
      %1124 = vrot.lane.b32.xlu0 %v1101, 127
      %v1125 = vpop.permute.xlu0 %1124
      %1126 = vrot.lane.b32.xlu0 %v1102, 127
      %v1127 = vpop.permute.xlu0 %1126
      %1128 = vrot.lane.b32.xlu0 %v1103, 127
      %v1129 = vpop.permute.xlu0 %1128
      %vm1130 = vcmask 1039360
      %v1131 = vsel %vm1130, %v1119, %v1121
      %v1132 = vsel %vm1130, %v1121, %v1123
      %v1133 = vsel %vm1130, %v1125, %v1127
      %v1134 = vsel %vm1130, %v1127, %v1129
      %v1142 = vsel %vm676, %v1111, 0
      %1144 = vmatpush.bf16.msra.mxu0 0
      %1145 = vmatpush.bf16.msra.mxu0 0
      %1146 = vmatpush.bf16.msra.mxu0 0
      %1147 = vmatpush.bf16.msra.mxu0 0
      %1148 = vmatpush.bf16.msra.mxu0 0
      %1149 = vmatpush.bf16.msra.mxu0 0
      %1150 = vmatpush.bf16.msra.mxu0 %v1133
      %1151 = vmatpush.bf16.msra.mxu0 %v1131
      %1152 = vmatmul.bf16.gmra.mxu0 %v1142
      %v1153 = vpop.f32.mrf.mxu0
      %v1154 = vadd.f32 0.0, %v1153
      %v1155 = vpop.f32.mrf.mxu0
      %v1156 = vadd.f32 0.0, %v1155
      %1157 = vdwg.mxu0
      %1158 = vmatpush.bf16.msra.mxu0 0
      %1159 = vmatpush.bf16.msra.mxu0 0
      %1160 = vmatpush.bf16.msra.mxu0 0
      %1161 = vmatpush.bf16.msra.mxu0 0
      %1162 = vmatpush.bf16.msra.mxu0 0
      %1163 = vmatpush.bf16.msra.mxu0 0
      %1164 = vmatpush.bf16.msra.mxu0 %v1134
      %1165 = vmatpush.bf16.msra.mxu0 %v1132
      %1166 = vmatmul.bf16.gmra.mxu0 %v1142
      %v1167 = vpop.f32.mrf.mxu0
      %v1168 = vadd.f32 0.0, %v1167
      %v1169 = vpop.f32.mrf.mxu0
      %v1170 = vadd.f32 0.0, %v1169
      %1171 = vdwg.mxu0
      %1172 = vmatpush.bf16.msra.mxu0 0
      %1173 = vmatpush.bf16.msra.mxu0 0
      %1174 = vmatpush.bf16.msra.mxu0 0
      %1175 = vmatpush.bf16.msra.mxu0 0
      %1176 = vmatpush.bf16.msra.mxu0 0
      %1177 = vmatpush.bf16.msra.mxu0 0
      %1178 = vmatpush.bf16.msra.mxu0 %v1129
      %1179 = vmatpush.bf16.msra.mxu0 %v1123
      %1180 = vmatmul.bf16.gmra.mxu0 %v1142
      %v1181 = vpop.f32.mrf.mxu0
      %v1182 = vadd.f32 0.0, %v1181
      %v1183 = vpop.f32.mrf.mxu0
      %v1184 = vadd.f32 0.0, %v1183
      %1185 = vdwg.mxu0
      %v1188 = vunpack.c.l.b16 %v1084
      %v1189 = vunpack.c.l.b16 %v1085
      %v1190 = vpack.c.b16 %v1189, %v1188
      %v1192 = vsel %vm676, %v1190, 0
      %1194 = vmatpush.bf16.msra.mxu0 0
      %1195 = vmatpush.bf16.msra.mxu0 0
      %1196 = vmatpush.bf16.msra.mxu0 0
      %1197 = vmatpush.bf16.msra.mxu0 0
      %1198 = vmatpush.bf16.msra.mxu0 0
      %1199 = vmatpush.bf16.msra.mxu0 0
      %1200 = vmatpush.bf16.msra.mxu0 %v1101
      %1201 = vmatpush.bf16.msra.mxu0 %v1098
      %1202 = vmatmul.bf16.gmra.mxu0 %v1192
      %v1203 = vpop.f32.mrf.mxu0
      %v1204 = vadd.f32 %v1154, %v1203
      %v1205 = vpop.f32.mrf.mxu0
      %v1206 = vadd.f32 %v1156, %v1205
      %1207 = vdwg.mxu0
      %1208 = vmatpush.bf16.msra.mxu0 0
      %1209 = vmatpush.bf16.msra.mxu0 0
      %1210 = vmatpush.bf16.msra.mxu0 0
      %1211 = vmatpush.bf16.msra.mxu0 0
      %1212 = vmatpush.bf16.msra.mxu0 0
      %1213 = vmatpush.bf16.msra.mxu0 0
      %1214 = vmatpush.bf16.msra.mxu0 %v1102
      %1215 = vmatpush.bf16.msra.mxu0 %v1099
      %1216 = vmatmul.bf16.gmra.mxu0 %v1192
      %v1217 = vpop.f32.mrf.mxu0
      %v1218 = vadd.f32 %v1168, %v1217
      %v1219 = vpop.f32.mrf.mxu0
      %v1220 = vadd.f32 %v1170, %v1219
      %1221 = vdwg.mxu0
      %1222 = vmatpush.bf16.msra.mxu0 0
      %1223 = vmatpush.bf16.msra.mxu0 0
      %1224 = vmatpush.bf16.msra.mxu0 0
      %1225 = vmatpush.bf16.msra.mxu0 0
      %1226 = vmatpush.bf16.msra.mxu0 0
      %1227 = vmatpush.bf16.msra.mxu0 0
      %1228 = vmatpush.bf16.msra.mxu0 %v1103
      %1229 = vmatpush.bf16.msra.mxu0 %v1100
      %1230 = vmatmul.bf16.gmra.mxu0 %v1192
      %v1231 = vpop.f32.mrf.mxu0
      %v1232 = vadd.f32 %v1182, %v1231
      %v1233 = vpop.f32.mrf.mxu0
      %v1234 = vadd.f32 %v1184, %v1233
      %1235 = vdwg.mxu0
      %s1236 = scalar_lea.vmem %s4, 16
      %v1237 = vld [vmem:[%s1236] sm:$0xf]
      %v1238 = vld [vmem:[%s1236 + $0x4] sm:$0xf]
      %v1241 = vunpack.c.l.b16 %v1237
      %v1242 = vunpack.c.l.b16 %v1238
      %v1243 = vpack.c.b16 %v1242, %v1241
      %1244 = vrot.lane.b32.xlu0 %v1098, 111
      %v1245 = vpop.permute.xlu0 %1244
      %1246 = vrot.lane.b32.xlu0 %v1099, 111
      %v1247 = vpop.permute.xlu0 %1246
      %1248 = vrot.lane.b32.xlu0 %v1100, 111
      %v1249 = vpop.permute.xlu0 %1248
      %1250 = vrot.lane.b32.xlu0 %v1101, 111
      %v1251 = vpop.permute.xlu0 %1250
      %1252 = vrot.lane.b32.xlu0 %v1102, 111
      %v1253 = vpop.permute.xlu0 %1252
      %1254 = vrot.lane.b32.xlu0 %v1103, 111
      %v1255 = vpop.permute.xlu0 %1254
      %vm1256 = vcmask 908288
      %v1257 = vsel %vm1256, %v1245, %v1247
      %v1258 = vsel %vm1256, %v1247, %v1249
      %v1259 = vsel %vm1256, %v1251, %v1253
      %v1260 = vsel %vm1256, %v1253, %v1255
      %v1268 = vsel %vm676, %v1243, 0
      %1270 = vmatpush.bf16.msra.mxu0 0
      %1271 = vmatpush.bf16.msra.mxu0 0
      %1272 = vmatpush.bf16.msra.mxu0 0
      %1273 = vmatpush.bf16.msra.mxu0 0
      %1274 = vmatpush.bf16.msra.mxu0 0
      %1275 = vmatpush.bf16.msra.mxu0 0
      %1276 = vmatpush.bf16.msra.mxu0 %v1259
      %1277 = vmatpush.bf16.msra.mxu0 %v1257
      %1278 = vmatmul.bf16.gmra.mxu0 %v1268
      %v1279 = vpop.f32.mrf.mxu0
      %v1280 = vadd.f32 0.0, %v1279
      %v1281 = vpop.f32.mrf.mxu0
      %v1282 = vadd.f32 0.0, %v1281
      %1283 = vdwg.mxu0
      %1284 = vmatpush.bf16.msra.mxu0 0
      %1285 = vmatpush.bf16.msra.mxu0 0
      %1286 = vmatpush.bf16.msra.mxu0 0
      %1287 = vmatpush.bf16.msra.mxu0 0
      %1288 = vmatpush.bf16.msra.mxu0 0
      %1289 = vmatpush.bf16.msra.mxu0 0
      %1290 = vmatpush.bf16.msra.mxu0 %v1260
      %1291 = vmatpush.bf16.msra.mxu0 %v1258
      %1292 = vmatmul.bf16.gmra.mxu0 %v1268
      %v1293 = vpop.f32.mrf.mxu0
      %v1294 = vadd.f32 0.0, %v1293
      %v1295 = vpop.f32.mrf.mxu0
      %v1296 = vadd.f32 0.0, %v1295
      %1297 = vdwg.mxu0
      %1298 = vmatpush.bf16.msra.mxu0 0
      %1299 = vmatpush.bf16.msra.mxu0 0
      %1300 = vmatpush.bf16.msra.mxu0 0
      %1301 = vmatpush.bf16.msra.mxu0 0
      %1302 = vmatpush.bf16.msra.mxu0 0
      %1303 = vmatpush.bf16.msra.mxu0 0
      %1304 = vmatpush.bf16.msra.mxu0 %v1255
      %1305 = vmatpush.bf16.msra.mxu0 %v1249
      %1306 = vmatmul.bf16.gmra.mxu0 %v1268
      %v1307 = vpop.f32.mrf.mxu0
      %v1308 = vadd.f32 0.0, %v1307
      %v1309 = vpop.f32.mrf.mxu0
      %v1310 = vadd.f32 0.0, %v1309
      %1311 = vdwg.mxu0
      %v1312 = vadd.f32 %v1204, %v1280
      %v1313 = vadd.f32 %v1218, %v1294
      %v1314 = vadd.f32 %v1232, %v1308
      %v1315 = vadd.f32 %v1206, %v1282
      %v1316 = vadd.f32 %v1220, %v1296
      %v1317 = vadd.f32 %v1234, %v1310
      %s1318 = scalar_lea.vmem %s4, 24
      %v1319 = vld [vmem:[%s1318] sm:$0xf]
      %v1320 = vld [vmem:[%s1318 + $0x4] sm:$0xf]
      %v1323 = vunpack.c.l.b16 %v1319
      %v1324 = vunpack.c.l.b16 %v1320
      %v1325 = vpack.c.b16 %v1324, %v1323
      %1326 = vrot.lane.b32.xlu0 %v1098, 110
      %v1327 = vpop.permute.xlu0 %1326
      %1328 = vrot.lane.b32.xlu0 %v1099, 110
      %v1329 = vpop.permute.xlu0 %1328
      %1330 = vrot.lane.b32.xlu0 %v1100, 110
      %v1331 = vpop.permute.xlu0 %1330
      %1332 = vrot.lane.b32.xlu0 %v1101, 110
      %v1333 = vpop.permute.xlu0 %1332
      %1334 = vrot.lane.b32.xlu0 %v1102, 110
      %v1335 = vpop.permute.xlu0 %1334
      %1336 = vrot.lane.b32.xlu0 %v1103, 110
      %v1337 = vpop.permute.xlu0 %1336
      %vm1338 = vcmask 900096
      %v1339 = vsel %vm1338, %v1327, %v1329
      %v1340 = vsel %vm1338, %v1329, %v1331
      %v1341 = vsel %vm1338, %v1333, %v1335
      %v1342 = vsel %vm1338, %v1335, %v1337
      %v1350 = vsel %vm676, %v1325, 0
      %1352 = vmatpush.bf16.msra.mxu0 0
      %1353 = vmatpush.bf16.msra.mxu0 0
      %1354 = vmatpush.bf16.msra.mxu0 0
      %1355 = vmatpush.bf16.msra.mxu0 0
      %1356 = vmatpush.bf16.msra.mxu0 0
      %1357 = vmatpush.bf16.msra.mxu0 0
      %1358 = vmatpush.bf16.msra.mxu0 %v1341
      %1359 = vmatpush.bf16.msra.mxu0 %v1339
      %1360 = vmatmul.bf16.gmra.mxu0 %v1350
      %v1361 = vpop.f32.mrf.mxu0
      %v1362 = vadd.f32 0.0, %v1361
      %v1363 = vpop.f32.mrf.mxu0
      %v1364 = vadd.f32 0.0, %v1363
      %1365 = vdwg.mxu0
      %1366 = vmatpush.bf16.msra.mxu0 0
      %1367 = vmatpush.bf16.msra.mxu0 0
      %1368 = vmatpush.bf16.msra.mxu0 0
      %1369 = vmatpush.bf16.msra.mxu0 0
      %1370 = vmatpush.bf16.msra.mxu0 0
      %1371 = vmatpush.bf16.msra.mxu0 0
      %1372 = vmatpush.bf16.msra.mxu0 %v1342
      %1373 = vmatpush.bf16.msra.mxu0 %v1340
      %1374 = vmatmul.bf16.gmra.mxu0 %v1350
      %v1375 = vpop.f32.mrf.mxu0
      %v1376 = vadd.f32 0.0, %v1375
      %v1377 = vpop.f32.mrf.mxu0
      %v1378 = vadd.f32 0.0, %v1377
      %1379 = vdwg.mxu0
      %1380 = vmatpush.bf16.msra.mxu0 0
      %1381 = vmatpush.bf16.msra.mxu0 0
      %1382 = vmatpush.bf16.msra.mxu0 0
      %1383 = vmatpush.bf16.msra.mxu0 0
      %1384 = vmatpush.bf16.msra.mxu0 0
      %1385 = vmatpush.bf16.msra.mxu0 0
      %1386 = vmatpush.bf16.msra.mxu0 %v1337
      %1387 = vmatpush.bf16.msra.mxu0 %v1331
      %1388 = vmatmul.bf16.gmra.mxu0 %v1350
      %v1389 = vpop.f32.mrf.mxu0
      %v1390 = vadd.f32 0.0, %v1389
      %v1391 = vpop.f32.mrf.mxu0
      %v1392 = vadd.f32 0.0, %v1391
      %1393 = vdwg.mxu0
      %v1394 = vadd.f32 %v1312, %v1362
      %v1395 = vadd.f32 %v1313, %v1376
      %v1396 = vadd.f32 %v1314, %v1390
      %v1397 = vadd.f32 %v1315, %v1364
      %v1398 = vadd.f32 %v1316, %v1378
      %v1399 = vadd.f32 %v1317, %v1392
      %v1400 = vld [vmem:[%s7] sm:$0x7]
      %v1402 = vperm.slane %v1400, 0
      %v1403 = vperm.slane %v1400, 1
      %v1404 = vperm.slane %v1400, 2
      %v1408 = vmul.f32 %v1394, %v1402
      %v1409 = vmul.f32 %v1395, %v1403
      %v1410 = vmul.f32 %v1396, %v1404
      %v1411 = vmul.f32 %v1397, %v1402
      %v1412 = vmul.f32 %v1398, %v1403
      %v1413 = vmul.f32 %v1399, %v1404
      %v1414 = vadd.f32 %v1408, %v1409
      %vm1415 = vcmask 130048
      %v1416 = vsel %vm1415, %v1410, 0.0
      %v1417 = vadd.f32 %v1414, %v1416
      %1418 = vadd.xlane.f32.xlu0 %v1417
      %v1419 = vpop.xlane.xlu0 %1418
      %v1420 = vadd.f32 %v1411, %v1412
      %v1421 = vsel %vm1415, %v1413, 0.0
      %v1422 = vadd.f32 %v1420, %v1421
      %1423 = vadd.xlane.f32.xlu0 %v1422
      %v1424 = vpop.xlane.xlu0 %1423
      %v1425 = vmul.f32 %v1419, 0.00390625
      %v1426 = vmul.f32 %v1424, 0.00390625
      %v1427 = vsub.f32 %v1394, %v1425
      %v1428 = vsub.f32 %v1395, %v1425
      %v1429 = vsub.f32 %v1396, %v1425
      %v1430 = vsub.f32 %v1397, %v1426
      %v1431 = vsub.f32 %v1398, %v1426
      %v1432 = vsub.f32 %v1399, %v1426
      %v1433 = vmul.f32 %v1427, %v1427
      %v1434 = vmul.f32 %v1428, %v1428
      %v1435 = vmul.f32 %v1429, %v1429
      %v1436 = vmul.f32 %v1430, %v1430
      %v1437 = vmul.f32 %v1431, %v1431
      %v1438 = vmul.f32 %v1432, %v1432
      %v1439 = vmul.f32 %v1433, %v1402
      %v1440 = vmul.f32 %v1434, %v1403
      %v1441 = vmul.f32 %v1435, %v1404
      %v1442 = vmul.f32 %v1436, %v1402
      %v1443 = vmul.f32 %v1437, %v1403
      %v1444 = vmul.f32 %v1438, %v1404
      %v1445 = vadd.f32 %v1439, %v1440
      %v1446 = vsel %vm1415, %v1441, 0.0
      %v1447 = vadd.f32 %v1445, %v1446
      %1448 = vadd.xlane.f32.xlu0 %v1447
      %v1449 = vpop.xlane.xlu0 %1448
      %v1450 = vadd.f32 %v1442, %v1443
      %v1451 = vsel %vm1415, %v1444, 0.0
      %v1452 = vadd.f32 %v1450, %v1451
      %1453 = vadd.xlane.f32.xlu0 %v1452
      %v1454 = vpop.xlane.xlu0 %1453
      %v1455 = vmul.f32 %v1449, 0.00390625
      %v1456 = vmul.f32 %v1454, 0.00390625
      %v1457 = vadd.f32 %v1455, 1e-05
      %v1458 = vadd.f32 %v1456, 1e-05
      %v1459 = vrsqrt.pop %v1457
      %v1460 = vmul.f32 %v1459, %v1457
      %v1461 = vmul.f32 %v1460, %v1459
      %v1462 = vmul.f32 0.5, %v1461
      %v1463 = vsub.f32 1.5, %v1462
      %v1464 = vmul.f32 %v1459, %v1463
      %vm1465 = vweird.f32 %v1457
      %vm1466 = vweird.f32 %v1459
      %vm1467 = vmor %vm1465, %vm1466
      %v1468 = vsel %vm1467, %v1459, %v1464
      %v1469 = vrsqrt.pop %v1458
      %v1470 = vmul.f32 %v1469, %v1458
      %v1471 = vmul.f32 %v1470, %v1469
      %v1472 = vmul.f32 0.5, %v1471
      %v1473 = vsub.f32 1.5, %v1472
      %v1474 = vmul.f32 %v1469, %v1473
      %vm1475 = vweird.f32 %v1458
      %vm1476 = vweird.f32 %v1469
      %vm1477 = vmor %vm1475, %vm1476
      %v1478 = vsel %vm1477, %v1469, %v1474
      %v1479 = vmul.f32 %v1427, %v1468
      %v1480 = vmul.f32 %v1428, %v1468
      %v1481 = vmul.f32 %v1429, %v1468
      %v1482 = vmul.f32 %v1430, %v1478
      %v1483 = vmul.f32 %v1431, %v1478
      %v1484 = vmul.f32 %v1432, %v1478
      %v1485 = vld [vmem:[%s5] sm:$0xff]
      %v1486 = vld [vmem:[%s5 + $0x8] sm:$0xff]
      %1488 = vset.pattern.permute.xlu0 0
      %1489 = vperm.xlu0 %1488, %v1485
      %v1490 = vpop.permute.xlu0 %1489
      %1493 = vset.pattern.permute.xlu0 0
      %1494 = vperm.xlu0 %1493, %v1486
      %v1495 = vpop.permute.xlu0 %1494
      %v1497 = vmul.f32 %v1479, %v1490
      %v1498 = vmul.f32 %v1480, %v1490
      %v1499 = vmul.f32 %v1481, %v1490
      %v1500 = vmul.f32 %v1482, %v1495
      %v1501 = vmul.f32 %v1483, %v1495
      %v1502 = vmul.f32 %v1484, %v1495
      %v1503 = vld [vmem:[%s6] sm:$0xff]
      %v1504 = vld [vmem:[%s6 + $0x8] sm:$0xff]
      %1506 = vset.pattern.permute.xlu0 0
      %1507 = vperm.xlu0 %1506, %v1503
      %v1508 = vpop.permute.xlu0 %1507
      %1511 = vset.pattern.permute.xlu0 0
      %1512 = vperm.xlu0 %1511, %v1504
      %v1513 = vpop.permute.xlu0 %1512
      %v1515 = vadd.f32 %v1497, %v1508
      %v1516 = vadd.f32 %v1498, %v1508
      %v1517 = vadd.f32 %v1499, %v1508
      %v1518 = vadd.f32 %v1500, %v1513
      %v1519 = vadd.f32 %v1501, %v1513
      %v1520 = vadd.f32 %v1502, %v1513
      %vm1521 = vcmp.ge.f32.partialorder %v1515, 0.0
      %vm1522 = vcmp.ge.f32.partialorder %v1516, 0.0
      %vm1523 = vcmp.ge.f32.partialorder %v1517, 0.0
      %vm1524 = vcmp.ge.f32.partialorder %v1518, 0.0
      %vm1525 = vcmp.ge.f32.partialorder %v1519, 0.0
      %vm1526 = vcmp.ge.f32.partialorder %v1520, 0.0
      %v1527 = vmul.f32 %v1515, 0.2
      %v1528 = vmul.f32 %v1516, 0.2
      %v1529 = vmul.f32 %v1517, 0.2
      %v1530 = vmul.f32 %v1518, 0.2
      %v1531 = vmul.f32 %v1519, 0.2
      %v1532 = vmul.f32 %v1520, 0.2
      %v1533 = vsel %vm1521, %v1515, %v1527
      %v1534 = vsel %vm1522, %v1516, %v1528
      %v1535 = vsel %vm1523, %v1517, %v1529
      %v1536 = vsel %vm1524, %v1518, %v1530
      %v1537 = vsel %vm1525, %v1519, %v1531
      %v1538 = vsel %vm1526, %v1520, %v1532
      %v1539 = vpack.c.bf16 %v1536, %v1533
      %v1540 = vpack.c.bf16 %v1537, %v1534
      %v1541 = vpack.c.bf16 %v1538, %v1535
      %v1542 = vld [vmem:[%s8] sm:$0xf]
      %v1543 = vld [vmem:[%s8 + $0x4] sm:$0xf]
      %v1544 = vld [vmem:[%s8 + $0x8] sm:$0xf]
      %v1545 = vld [vmem:[%s8 + $0xc] sm:$0xf]
      %v1546 = vld [vmem:[%s8 + $0x10] sm:$0xf]
      %v1547 = vld [vmem:[%s8 + $0x14] sm:$0xf]
      %v1548 = vld [vmem:[%s8 + $0x18] sm:$0xf]
      %v1549 = vld [vmem:[%s8 + $0x1c] sm:$0xf]
      %v1550 = vld [vmem:[%s8 + $0x20] sm:$0xf]
      %v1551 = vld [vmem:[%s8 + $0x24] sm:$0xf]
      %v1552 = vld [vmem:[%s8 + $0x28] sm:$0xf]
      %v1553 = vld [vmem:[%s8 + $0x2c] sm:$0xf]
      %v1554 = vld [vmem:[%s8 + $0x30] sm:$0xf]
      %v1555 = vld [vmem:[%s8 + $0x34] sm:$0xf]
      %v1556 = vld [vmem:[%s8 + $0x38] sm:$0xf]
      %v1557 = vld [vmem:[%s8 + $0x3c] sm:$0xf]
      %v1558 = vld [vmem:[%s8 + $0x40] sm:$0xf]
      %v1559 = vld [vmem:[%s8 + $0x44] sm:$0xf]
      %v1560 = vld [vmem:[%s8 + $0x48] sm:$0xf]
      %v1561 = vld [vmem:[%s8 + $0x4c] sm:$0xf]
      %v1562 = vld [vmem:[%s8 + $0x50] sm:$0xf]
      %v1563 = vld [vmem:[%s8 + $0x54] sm:$0xf]
      %v1564 = vld [vmem:[%s8 + $0x58] sm:$0xf]
      %v1565 = vld [vmem:[%s8 + $0x5c] sm:$0xf]
      %v1566 = vld [vmem:[%s8 + $0x60] sm:$0xf]
      %v1567 = vld [vmem:[%s8 + $0x64] sm:$0xf]
      %v1568 = vld [vmem:[%s8 + $0x68] sm:$0xf]
      %v1569 = vld [vmem:[%s8 + $0x6c] sm:$0xf]
      %v1570 = vld [vmem:[%s8 + $0x70] sm:$0xf]
      %v1571 = vld [vmem:[%s8 + $0x74] sm:$0xf]
      %v1572 = vld [vmem:[%s8 + $0x78] sm:$0xf]
      %v1573 = vld [vmem:[%s8 + $0x7c] sm:$0xf]
      %v1574 = vld [vmem:[%s8 + $0x80] sm:$0xf]
      %v1575 = vld [vmem:[%s8 + $0x84] sm:$0xf]
      %v1610 = vunpack.c.l.b16 %v1542
      %v1611 = vunpack.c.l.b16 %v1543
      %v1612 = vunpack.c.l.b16 %v1544
      %v1613 = vunpack.c.l.b16 %v1545
      %v1614 = vunpack.c.l.b16 %v1546
      %v1615 = vunpack.c.l.b16 %v1547
      %v1616 = vunpack.c.l.b16 %v1548
      %v1617 = vunpack.c.l.b16 %v1549
      %v1618 = vunpack.c.l.b16 %v1550
      %v1619 = vunpack.c.l.b16 %v1551
      %v1620 = vunpack.c.l.b16 %v1552
      %v1621 = vunpack.c.l.b16 %v1553
      %v1622 = vunpack.c.l.b16 %v1554
      %v1623 = vunpack.c.l.b16 %v1555
      %v1624 = vunpack.c.l.b16 %v1556
      %v1625 = vunpack.c.l.b16 %v1557
      %v1626 = vunpack.c.l.b16 %v1558
      %v1627 = vunpack.c.l.b16 %v1559
      %v1628 = vunpack.c.l.b16 %v1560
      %v1629 = vunpack.c.l.b16 %v1561
      %v1630 = vunpack.c.l.b16 %v1562
      %v1631 = vunpack.c.l.b16 %v1563
      %v1632 = vunpack.c.l.b16 %v1564
      %v1633 = vunpack.c.l.b16 %v1565
      %v1634 = vunpack.c.l.b16 %v1566
      %v1635 = vunpack.c.l.b16 %v1567
      %v1636 = vunpack.c.l.b16 %v1568
      %v1637 = vunpack.c.l.b16 %v1569
      %v1638 = vunpack.c.l.b16 %v1570
      %v1639 = vunpack.c.l.b16 %v1571
      %v1640 = vunpack.c.l.b16 %v1572
      %v1641 = vunpack.c.l.b16 %v1573
      %v1642 = vunpack.c.l.b16 %v1574
      %v1643 = vunpack.c.l.b16 %v1575
      %v1644 = vpack.c.b16 %v1611, %v1610
      %v1645 = vpack.c.b16 %v1613, %v1612
      %v1646 = vpack.c.b16 %v1615, %v1614
      %v1647 = vpack.c.b16 %v1617, %v1616
      %v1648 = vpack.c.b16 %v1619, %v1618
      %v1649 = vpack.c.b16 %v1621, %v1620
      %v1650 = vpack.c.b16 %v1623, %v1622
      %v1651 = vpack.c.b16 %v1625, %v1624
      %v1652 = vpack.c.b16 %v1627, %v1626
      %v1653 = vpack.c.b16 %v1629, %v1628
      %v1654 = vpack.c.b16 %v1631, %v1630
      %v1655 = vpack.c.b16 %v1633, %v1632
      %v1656 = vpack.c.b16 %v1635, %v1634
      %v1657 = vpack.c.b16 %v1637, %v1636
      %v1658 = vpack.c.b16 %v1639, %v1638
      %v1659 = vpack.c.b16 %v1641, %v1640
      %v1660 = vpack.c.b16 %v1643, %v1642
      %v1679 = vsel %vm1415, %v1541, 0
      %1681 = vmatpush.bf16.msra.mxu0 %v1651
      %1682 = vmatpush.bf16.msra.mxu0 %v1650
      %1683 = vmatpush.bf16.msra.mxu0 %v1649
      %1684 = vmatpush.bf16.msra.mxu0 %v1648
      %1685 = vmatpush.bf16.msra.mxu0 %v1647
      %1686 = vmatpush.bf16.msra.mxu0 %v1646
      %1687 = vmatpush.bf16.msra.mxu0 %v1645
      %1688 = vmatpush.bf16.msra.mxu0 %v1644
      %1689 = vmatmul.bf16.gmra.mxu0 %v1539
      %v1690 = vpop.f32.mrf.mxu0
      %v1691 = vadd.f32 0.0, %v1690
      %v1692 = vpop.f32.mrf.mxu0
      %v1693 = vadd.f32 0.0, %v1692
      %1694 = vdwg.mxu0
      %1695 = vmatpush.bf16.msra.mxu0 %v1659
      %1696 = vmatpush.bf16.msra.mxu0 %v1658
      %1697 = vmatpush.bf16.msra.mxu0 %v1657
      %1698 = vmatpush.bf16.msra.mxu0 %v1656
      %1699 = vmatpush.bf16.msra.mxu0 %v1655
      %1700 = vmatpush.bf16.msra.mxu0 %v1654
      %1701 = vmatpush.bf16.msra.mxu0 %v1653
      %1702 = vmatpush.bf16.msra.mxu0 %v1652
      %1703 = vmatmul.bf16.gmra.mxu0 %v1540
      %v1704 = vpop.f32.mrf.mxu0
      %v1705 = vadd.f32 %v1691, %v1704
      %v1706 = vpop.f32.mrf.mxu0
      %v1707 = vadd.f32 %v1693, %v1706
      %1708 = vdwg.mxu0
      %1709 = vmatpush.bf16.msra.mxu0 0
      %1710 = vmatpush.bf16.msra.mxu0 0
      %1711 = vmatpush.bf16.msra.mxu0 0
      %1712 = vmatpush.bf16.msra.mxu0 0
      %1713 = vmatpush.bf16.msra.mxu0 0
      %1714 = vmatpush.bf16.msra.mxu0 0
      %1715 = vmatpush.bf16.msra.mxu0 0
      %1716 = vmatpush.bf16.msra.mxu0 %v1660
      %1717 = vmatmul.bf16.gmra.mxu0 %v1679
      %v1718 = vpop.f32.mrf.mxu0
      %v1719 = vadd.f32 %v1705, %v1718
      %v1720 = vpop.f32.mrf.mxu0
      %v1721 = vadd.f32 %v1707, %v1720
      %1722 = vdwg.mxu0
      %1723 = vst [vmem:[#allocation3] sm:$0xff] %v1719
      %1724 = vst [vmem:[#allocation3 + $0x8] sm:$0xff] %v1721
      %s1725 = scalar_lea.vmem %s8, 136
      %v1726 = vld [vmem:[%s1725] sm:$0xf]
      %v1727 = vld [vmem:[%s1725 + $0x4] sm:$0xf]
      %v1728 = vld [vmem:[%s1725 + $0x8] sm:$0xf]
      %v1729 = vld [vmem:[%s1725 + $0xc] sm:$0xf]
      %v1730 = vld [vmem:[%s1725 + $0x10] sm:$0xf]
      %v1731 = vld [vmem:[%s1725 + $0x14] sm:$0xf]
      %v1732 = vld [vmem:[%s1725 + $0x18] sm:$0xf]
      %v1733 = vld [vmem:[%s1725 + $0x1c] sm:$0xf]
      %v1734 = vld [vmem:[%s1725 + $0x20] sm:$0xf]
      %v1735 = vld [vmem:[%s1725 + $0x24] sm:$0xf]
      %v1736 = vld [vmem:[%s1725 + $0x28] sm:$0xf]
      %v1737 = vld [vmem:[%s1725 + $0x2c] sm:$0xf]
      %v1738 = vld [vmem:[%s1725 + $0x30] sm:$0xf]
      %v1739 = vld [vmem:[%s1725 + $0x34] sm:$0xf]
      %v1740 = vld [vmem:[%s1725 + $0x38] sm:$0xf]
      %v1741 = vld [vmem:[%s1725 + $0x3c] sm:$0xf]
      %v1742 = vld [vmem:[%s1725 + $0x40] sm:$0xf]
      %v1743 = vld [vmem:[%s1725 + $0x44] sm:$0xf]
      %v1744 = vld [vmem:[%s1725 + $0x48] sm:$0xf]
      %v1745 = vld [vmem:[%s1725 + $0x4c] sm:$0xf]
      %v1746 = vld [vmem:[%s1725 + $0x50] sm:$0xf]
      %v1747 = vld [vmem:[%s1725 + $0x54] sm:$0xf]
      %v1748 = vld [vmem:[%s1725 + $0x58] sm:$0xf]
      %v1749 = vld [vmem:[%s1725 + $0x5c] sm:$0xf]
      %v1750 = vld [vmem:[%s1725 + $0x60] sm:$0xf]
      %v1751 = vld [vmem:[%s1725 + $0x64] sm:$0xf]
      %v1752 = vld [vmem:[%s1725 + $0x68] sm:$0xf]
      %v1753 = vld [vmem:[%s1725 + $0x6c] sm:$0xf]
      %v1754 = vld [vmem:[%s1725 + $0x70] sm:$0xf]
      %v1755 = vld [vmem:[%s1725 + $0x74] sm:$0xf]
      %v1756 = vld [vmem:[%s1725 + $0x78] sm:$0xf]
      %v1757 = vld [vmem:[%s1725 + $0x7c] sm:$0xf]
      %v1758 = vld [vmem:[%s1725 + $0x80] sm:$0xf]
      %v1759 = vld [vmem:[%s1725 + $0x84] sm:$0xf]
      %v1794 = vunpack.c.l.b16 %v1726
      %v1795 = vunpack.c.l.b16 %v1727
      %v1796 = vunpack.c.l.b16 %v1728
      %v1797 = vunpack.c.l.b16 %v1729
      %v1798 = vunpack.c.l.b16 %v1730
      %v1799 = vunpack.c.l.b16 %v1731
      %v1800 = vunpack.c.l.b16 %v1732
      %v1801 = vunpack.c.l.b16 %v1733
      %v1802 = vunpack.c.l.b16 %v1734
      %v1803 = vunpack.c.l.b16 %v1735
      %v1804 = vunpack.c.l.b16 %v1736
      %v1805 = vunpack.c.l.b16 %v1737
      %v1806 = vunpack.c.l.b16 %v1738
      %v1807 = vunpack.c.l.b16 %v1739
      %v1808 = vunpack.c.l.b16 %v1740
      %v1809 = vunpack.c.l.b16 %v1741
      %v1810 = vunpack.c.l.b16 %v1742
      %v1811 = vunpack.c.l.b16 %v1743
      %v1812 = vunpack.c.l.b16 %v1744
      %v1813 = vunpack.c.l.b16 %v1745
      %v1814 = vunpack.c.l.b16 %v1746
      %v1815 = vunpack.c.l.b16 %v1747
      %v1816 = vunpack.c.l.b16 %v1748
      %v1817 = vunpack.c.l.b16 %v1749
      %v1818 = vunpack.c.l.b16 %v1750
      %v1819 = vunpack.c.l.b16 %v1751
      %v1820 = vunpack.c.l.b16 %v1752
      %v1821 = vunpack.c.l.b16 %v1753
      %v1822 = vunpack.c.l.b16 %v1754
      %v1823 = vunpack.c.l.b16 %v1755
      %v1824 = vunpack.c.l.b16 %v1756
      %v1825 = vunpack.c.l.b16 %v1757
      %v1826 = vunpack.c.l.b16 %v1758
      %v1827 = vunpack.c.l.b16 %v1759
      %v1828 = vpack.c.b16 %v1795, %v1794
      %v1829 = vpack.c.b16 %v1797, %v1796
      %v1830 = vpack.c.b16 %v1799, %v1798
      %v1831 = vpack.c.b16 %v1801, %v1800
      %v1832 = vpack.c.b16 %v1803, %v1802
      %v1833 = vpack.c.b16 %v1805, %v1804
      %v1834 = vpack.c.b16 %v1807, %v1806
      %v1835 = vpack.c.b16 %v1809, %v1808
      %v1836 = vpack.c.b16 %v1811, %v1810
      %v1837 = vpack.c.b16 %v1813, %v1812
      %v1838 = vpack.c.b16 %v1815, %v1814
      %v1839 = vpack.c.b16 %v1817, %v1816
      %v1840 = vpack.c.b16 %v1819, %v1818
      %v1841 = vpack.c.b16 %v1821, %v1820
      %v1842 = vpack.c.b16 %v1823, %v1822
      %v1843 = vpack.c.b16 %v1825, %v1824
      %v1844 = vpack.c.b16 %v1827, %v1826
      %1862 = vmatpush.bf16.msra.mxu0 %v1835
      %1863 = vmatpush.bf16.msra.mxu0 %v1834
      %1864 = vmatpush.bf16.msra.mxu0 %v1833
      %1865 = vmatpush.bf16.msra.mxu0 %v1832
      %1866 = vmatpush.bf16.msra.mxu0 %v1831
      %1867 = vmatpush.bf16.msra.mxu0 %v1830
      %1868 = vmatpush.bf16.msra.mxu0 %v1829
      %1869 = vmatpush.bf16.msra.mxu0 %v1828
      %1870 = vmatmul.bf16.gmra.mxu0 %v1539
      %v1871 = vpop.f32.mrf.mxu0
      %v1872 = vadd.f32 0.0, %v1871
      %v1873 = vpop.f32.mrf.mxu0
      %v1874 = vadd.f32 0.0, %v1873
      %1875 = vdwg.mxu0
      %1876 = vmatpush.bf16.msra.mxu0 %v1843
      %1877 = vmatpush.bf16.msra.mxu0 %v1842
      %1878 = vmatpush.bf16.msra.mxu0 %v1841
      %1879 = vmatpush.bf16.msra.mxu0 %v1840
      %1880 = vmatpush.bf16.msra.mxu0 %v1839
      %1881 = vmatpush.bf16.msra.mxu0 %v1838
      %1882 = vmatpush.bf16.msra.mxu0 %v1837
      %1883 = vmatpush.bf16.msra.mxu0 %v1836
      %1884 = vmatmul.bf16.gmra.mxu0 %v1540
      %v1885 = vpop.f32.mrf.mxu0
      %v1886 = vadd.f32 %v1872, %v1885
      %v1887 = vpop.f32.mrf.mxu0
      %v1888 = vadd.f32 %v1874, %v1887
      %1889 = vdwg.mxu0
      %1890 = vmatpush.bf16.msra.mxu0 0
      %1891 = vmatpush.bf16.msra.mxu0 0
      %1892 = vmatpush.bf16.msra.mxu0 0
      %1893 = vmatpush.bf16.msra.mxu0 0
      %1894 = vmatpush.bf16.msra.mxu0 0
      %1895 = vmatpush.bf16.msra.mxu0 0
      %1896 = vmatpush.bf16.msra.mxu0 0
      %1897 = vmatpush.bf16.msra.mxu0 %v1844
      %1898 = vmatmul.bf16.gmra.mxu0 %v1679
      %v1899 = vpop.f32.mrf.mxu0
      %v1900 = vadd.f32 %v1886, %v1899
      %v1901 = vpop.f32.mrf.mxu0
      %v1902 = vadd.f32 %v1888, %v1901
      %1903 = vdwg.mxu0
      %1904 = vst [vmem:[#allocation3 + $0x10] sm:$0xff] %v1900
      %1905 = vst [vmem:[#allocation3 + $0x18] sm:$0xff] %v1902
      %s1906 = scalar_lea.vmem %s8, 272
      %v1907 = vld [vmem:[%s1906] sm:$0xf]
      %v1908 = vld [vmem:[%s1906 + $0x4] sm:$0xf]
      %v1909 = vld [vmem:[%s1906 + $0x8] sm:$0xf]
      %v1910 = vld [vmem:[%s1906 + $0xc] sm:$0xf]
      %v1911 = vld [vmem:[%s1906 + $0x10] sm:$0xf]
      %v1912 = vld [vmem:[%s1906 + $0x14] sm:$0xf]
      %v1913 = vld [vmem:[%s1906 + $0x18] sm:$0xf]
      %v1914 = vld [vmem:[%s1906 + $0x1c] sm:$0xf]
      %v1915 = vld [vmem:[%s1906 + $0x20] sm:$0xf]
      %v1916 = vld [vmem:[%s1906 + $0x24] sm:$0xf]
      %v1917 = vld [vmem:[%s1906 + $0x28] sm:$0xf]
      %v1918 = vld [vmem:[%s1906 + $0x2c] sm:$0xf]
      %v1919 = vld [vmem:[%s1906 + $0x30] sm:$0xf]
      %v1920 = vld [vmem:[%s1906 + $0x34] sm:$0xf]
      %v1921 = vld [vmem:[%s1906 + $0x38] sm:$0xf]
      %v1922 = vld [vmem:[%s1906 + $0x3c] sm:$0xf]
      %v1923 = vld [vmem:[%s1906 + $0x40] sm:$0xf]
      %v1924 = vld [vmem:[%s1906 + $0x44] sm:$0xf]
      %v1925 = vld [vmem:[%s1906 + $0x48] sm:$0xf]
      %v1926 = vld [vmem:[%s1906 + $0x4c] sm:$0xf]
      %v1927 = vld [vmem:[%s1906 + $0x50] sm:$0xf]
      %v1928 = vld [vmem:[%s1906 + $0x54] sm:$0xf]
      %v1929 = vld [vmem:[%s1906 + $0x58] sm:$0xf]
      %v1930 = vld [vmem:[%s1906 + $0x5c] sm:$0xf]
      %v1931 = vld [vmem:[%s1906 + $0x60] sm:$0xf]
      %v1932 = vld [vmem:[%s1906 + $0x64] sm:$0xf]
      %v1933 = vld [vmem:[%s1906 + $0x68] sm:$0xf]
      %v1934 = vld [vmem:[%s1906 + $0x6c] sm:$0xf]
      %v1935 = vld [vmem:[%s1906 + $0x70] sm:$0xf]
      %v1936 = vld [vmem:[%s1906 + $0x74] sm:$0xf]
      %v1937 = vld [vmem:[%s1906 + $0x78] sm:$0xf]
      %v1938 = vld [vmem:[%s1906 + $0x7c] sm:$0xf]
      %v1939 = vld [vmem:[%s1906 + $0x80] sm:$0xf]
      %v1940 = vld [vmem:[%s1906 + $0x84] sm:$0xf]
      %v1975 = vunpack.c.l.b16 %v1907
      %v1976 = vunpack.c.l.b16 %v1908
      %v1977 = vunpack.c.l.b16 %v1909
      %v1978 = vunpack.c.l.b16 %v1910
      %v1979 = vunpack.c.l.b16 %v1911
      %v1980 = vunpack.c.l.b16 %v1912
      %v1981 = vunpack.c.l.b16 %v1913
      %v1982 = vunpack.c.l.b16 %v1914
      %v1983 = vunpack.c.l.b16 %v1915
      %v1984 = vunpack.c.l.b16 %v1916
      %v1985 = vunpack.c.l.b16 %v1917
      %v1986 = vunpack.c.l.b16 %v1918
      %v1987 = vunpack.c.l.b16 %v1919
      %v1988 = vunpack.c.l.b16 %v1920
      %v1989 = vunpack.c.l.b16 %v1921
      %v1990 = vunpack.c.l.b16 %v1922
      %v1991 = vunpack.c.l.b16 %v1923
      %v1992 = vunpack.c.l.b16 %v1924
      %v1993 = vunpack.c.l.b16 %v1925
      %v1994 = vunpack.c.l.b16 %v1926
      %v1995 = vunpack.c.l.b16 %v1927
      %v1996 = vunpack.c.l.b16 %v1928
      %v1997 = vunpack.c.l.b16 %v1929
      %v1998 = vunpack.c.l.b16 %v1930
      %v1999 = vunpack.c.l.b16 %v1931
      %v2000 = vunpack.c.l.b16 %v1932
      %v2001 = vunpack.c.l.b16 %v1933
      %v2002 = vunpack.c.l.b16 %v1934
      %v2003 = vunpack.c.l.b16 %v1935
      %v2004 = vunpack.c.l.b16 %v1936
      %v2005 = vunpack.c.l.b16 %v1937
      %v2006 = vunpack.c.l.b16 %v1938
      %v2007 = vunpack.c.l.b16 %v1939
      %v2008 = vunpack.c.l.b16 %v1940
      %v2009 = vpack.c.b16 %v1976, %v1975
      %v2010 = vpack.c.b16 %v1978, %v1977
      %v2011 = vpack.c.b16 %v1980, %v1979
      %v2012 = vpack.c.b16 %v1982, %v1981
      %v2013 = vpack.c.b16 %v1984, %v1983
      %v2014 = vpack.c.b16 %v1986, %v1985
      %v2015 = vpack.c.b16 %v1988, %v1987
      %v2016 = vpack.c.b16 %v1990, %v1989
      %v2017 = vpack.c.b16 %v1992, %v1991
      %v2018 = vpack.c.b16 %v1994, %v1993
      %v2019 = vpack.c.b16 %v1996, %v1995
      %v2020 = vpack.c.b16 %v1998, %v1997
      %v2021 = vpack.c.b16 %v2000, %v1999
      %v2022 = vpack.c.b16 %v2002, %v2001
      %v2023 = vpack.c.b16 %v2004, %v2003
      %v2024 = vpack.c.b16 %v2006, %v2005
      %v2025 = vpack.c.b16 %v2008, %v2007
      %2043 = vmatpush.bf16.msra.mxu0 %v2016
      %2044 = vmatpush.bf16.msra.mxu0 %v2015
      %2045 = vmatpush.bf16.msra.mxu0 %v2014
      %2046 = vmatpush.bf16.msra.mxu0 %v2013
      %2047 = vmatpush.bf16.msra.mxu0 %v2012
      %2048 = vmatpush.bf16.msra.mxu0 %v2011
      %2049 = vmatpush.bf16.msra.mxu0 %v2010
      %2050 = vmatpush.bf16.msra.mxu0 %v2009
      %2051 = vmatmul.bf16.gmra.mxu0 %v1539
      %v2052 = vpop.f32.mrf.mxu0
      %v2053 = vadd.f32 0.0, %v2052
      %v2054 = vpop.f32.mrf.mxu0
      %v2055 = vadd.f32 0.0, %v2054
      %2056 = vdwg.mxu0
      %2057 = vmatpush.bf16.msra.mxu0 %v2024
      %2058 = vmatpush.bf16.msra.mxu0 %v2023
      %2059 = vmatpush.bf16.msra.mxu0 %v2022
      %2060 = vmatpush.bf16.msra.mxu0 %v2021
      %2061 = vmatpush.bf16.msra.mxu0 %v2020
      %2062 = vmatpush.bf16.msra.mxu0 %v2019
      %2063 = vmatpush.bf16.msra.mxu0 %v2018
      %2064 = vmatpush.bf16.msra.mxu0 %v2017
      %2065 = vmatmul.bf16.gmra.mxu0 %v1540
      %v2066 = vpop.f32.mrf.mxu0
      %v2067 = vadd.f32 %v2053, %v2066
      %v2068 = vpop.f32.mrf.mxu0
      %v2069 = vadd.f32 %v2055, %v2068
      %2070 = vdwg.mxu0
      %2071 = vmatpush.bf16.msra.mxu0 0
      %2072 = vmatpush.bf16.msra.mxu0 0
      %2073 = vmatpush.bf16.msra.mxu0 0
      %2074 = vmatpush.bf16.msra.mxu0 0
      %2075 = vmatpush.bf16.msra.mxu0 0
      %2076 = vmatpush.bf16.msra.mxu0 0
      %2077 = vmatpush.bf16.msra.mxu0 0
      %2078 = vmatpush.bf16.msra.mxu0 %v2025
      %2079 = vmatmul.bf16.gmra.mxu0 %v1679
      %v2080 = vpop.f32.mrf.mxu0
      %v2081 = vadd.f32 %v2067, %v2080
      %v2082 = vpop.f32.mrf.mxu0
      %v2083 = vadd.f32 %v2069, %v2082
      %2084 = vdwg.mxu0
      %2085 = vst [vmem:[#allocation3 + $0x20] sm:$0xff] %v2081
      %2086 = vst [vmem:[#allocation3 + $0x28] sm:$0xff] %v2083
      %s2087 = scalar_lea.vmem %s8, 408
      %v2088 = vld [vmem:[%s2087] sm:$0xf]
      %v2089 = vld [vmem:[%s2087 + $0x4] sm:$0xf]
      %v2090 = vld [vmem:[%s2087 + $0x8] sm:$0xf]
      %v2091 = vld [vmem:[%s2087 + $0xc] sm:$0xf]
      %v2092 = vld [vmem:[%s2087 + $0x10] sm:$0xf]
      %v2093 = vld [vmem:[%s2087 + $0x14] sm:$0xf]
      %v2094 = vld [vmem:[%s2087 + $0x18] sm:$0xf]
      %v2095 = vld [vmem:[%s2087 + $0x1c] sm:$0xf]
      %v2096 = vld [vmem:[%s2087 + $0x20] sm:$0xf]
      %v2097 = vld [vmem:[%s2087 + $0x24] sm:$0xf]
      %v2098 = vld [vmem:[%s2087 + $0x28] sm:$0xf]
      %v2099 = vld [vmem:[%s2087 + $0x2c] sm:$0xf]
      %v2100 = vld [vmem:[%s2087 + $0x30] sm:$0xf]
      %v2101 = vld [vmem:[%s2087 + $0x34] sm:$0xf]
      %v2102 = vld [vmem:[%s2087 + $0x38] sm:$0xf]
      %v2103 = vld [vmem:[%s2087 + $0x3c] sm:$0xf]
      %v2104 = vld [vmem:[%s2087 + $0x40] sm:$0xf]
      %v2105 = vld [vmem:[%s2087 + $0x44] sm:$0xf]
      %v2106 = vld [vmem:[%s2087 + $0x48] sm:$0xf]
      %v2107 = vld [vmem:[%s2087 + $0x4c] sm:$0xf]
      %v2108 = vld [vmem:[%s2087 + $0x50] sm:$0xf]
      %v2109 = vld [vmem:[%s2087 + $0x54] sm:$0xf]
      %v2110 = vld [vmem:[%s2087 + $0x58] sm:$0xf]
      %v2111 = vld [vmem:[%s2087 + $0x5c] sm:$0xf]
      %v2112 = vld [vmem:[%s2087 + $0x60] sm:$0xf]
      %v2113 = vld [vmem:[%s2087 + $0x64] sm:$0xf]
      %v2114 = vld [vmem:[%s2087 + $0x68] sm:$0xf]
      %v2115 = vld [vmem:[%s2087 + $0x6c] sm:$0xf]
      %v2116 = vld [vmem:[%s2087 + $0x70] sm:$0xf]
      %v2117 = vld [vmem:[%s2087 + $0x74] sm:$0xf]
      %v2118 = vld [vmem:[%s2087 + $0x78] sm:$0xf]
      %v2119 = vld [vmem:[%s2087 + $0x7c] sm:$0xf]
      %v2120 = vld [vmem:[%s2087 + $0x80] sm:$0xf]
      %v2121 = vld [vmem:[%s2087 + $0x84] sm:$0xf]
      %v2156 = vunpack.c.l.b16 %v2088
      %v2157 = vunpack.c.l.b16 %v2089
      %v2158 = vunpack.c.l.b16 %v2090
      %v2159 = vunpack.c.l.b16 %v2091
      %v2160 = vunpack.c.l.b16 %v2092
      %v2161 = vunpack.c.l.b16 %v2093
      %v2162 = vunpack.c.l.b16 %v2094
      %v2163 = vunpack.c.l.b16 %v2095
      %v2164 = vunpack.c.l.b16 %v2096
      %v2165 = vunpack.c.l.b16 %v2097
      %v2166 = vunpack.c.l.b16 %v2098
      %v2167 = vunpack.c.l.b16 %v2099
      %v2168 = vunpack.c.l.b16 %v2100
      %v2169 = vunpack.c.l.b16 %v2101
      %v2170 = vunpack.c.l.b16 %v2102
      %v2171 = vunpack.c.l.b16 %v2103
      %v2172 = vunpack.c.l.b16 %v2104
      %v2173 = vunpack.c.l.b16 %v2105
      %v2174 = vunpack.c.l.b16 %v2106
      %v2175 = vunpack.c.l.b16 %v2107
      %v2176 = vunpack.c.l.b16 %v2108
      %v2177 = vunpack.c.l.b16 %v2109
      %v2178 = vunpack.c.l.b16 %v2110
      %v2179 = vunpack.c.l.b16 %v2111
      %v2180 = vunpack.c.l.b16 %v2112
      %v2181 = vunpack.c.l.b16 %v2113
      %v2182 = vunpack.c.l.b16 %v2114
      %v2183 = vunpack.c.l.b16 %v2115
      %v2184 = vunpack.c.l.b16 %v2116
      %v2185 = vunpack.c.l.b16 %v2117
      %v2186 = vunpack.c.l.b16 %v2118
      %v2187 = vunpack.c.l.b16 %v2119
      %v2188 = vunpack.c.l.b16 %v2120
      %v2189 = vunpack.c.l.b16 %v2121
      %v2190 = vpack.c.b16 %v2157, %v2156
      %v2191 = vpack.c.b16 %v2159, %v2158
      %v2192 = vpack.c.b16 %v2161, %v2160
      %v2193 = vpack.c.b16 %v2163, %v2162
      %v2194 = vpack.c.b16 %v2165, %v2164
      %v2195 = vpack.c.b16 %v2167, %v2166
      %v2196 = vpack.c.b16 %v2169, %v2168
      %v2197 = vpack.c.b16 %v2171, %v2170
      %v2198 = vpack.c.b16 %v2173, %v2172
      %v2199 = vpack.c.b16 %v2175, %v2174
      %v2200 = vpack.c.b16 %v2177, %v2176
      %v2201 = vpack.c.b16 %v2179, %v2178
      %v2202 = vpack.c.b16 %v2181, %v2180
      %v2203 = vpack.c.b16 %v2183, %v2182
      %v2204 = vpack.c.b16 %v2185, %v2184
      %v2205 = vpack.c.b16 %v2187, %v2186
      %v2206 = vpack.c.b16 %v2189, %v2188
      %2224 = vmatpush.bf16.msra.mxu0 %v2197
      %2225 = vmatpush.bf16.msra.mxu0 %v2196
      %2226 = vmatpush.bf16.msra.mxu0 %v2195
      %2227 = vmatpush.bf16.msra.mxu0 %v2194
      %2228 = vmatpush.bf16.msra.mxu0 %v2193
      %2229 = vmatpush.bf16.msra.mxu0 %v2192
      %2230 = vmatpush.bf16.msra.mxu0 %v2191
      %2231 = vmatpush.bf16.msra.mxu0 %v2190
      %2232 = vmatmul.bf16.gmra.mxu0 %v1539
      %v2233 = vpop.f32.mrf.mxu0
      %v2234 = vadd.f32 0.0, %v2233
      %v2235 = vpop.f32.mrf.mxu0
      %v2236 = vadd.f32 0.0, %v2235
      %2237 = vdwg.mxu0
      %2238 = vmatpush.bf16.msra.mxu0 %v2205
      %2239 = vmatpush.bf16.msra.mxu0 %v2204
      %2240 = vmatpush.bf16.msra.mxu0 %v2203
      %2241 = vmatpush.bf16.msra.mxu0 %v2202
      %2242 = vmatpush.bf16.msra.mxu0 %v2201
      %2243 = vmatpush.bf16.msra.mxu0 %v2200
      %2244 = vmatpush.bf16.msra.mxu0 %v2199
      %2245 = vmatpush.bf16.msra.mxu0 %v2198
      %2246 = vmatmul.bf16.gmra.mxu0 %v1540
      %v2247 = vpop.f32.mrf.mxu0
      %v2248 = vadd.f32 %v2234, %v2247
      %v2249 = vpop.f32.mrf.mxu0
      %v2250 = vadd.f32 %v2236, %v2249
      %2251 = vdwg.mxu0
      %2252 = vmatpush.bf16.msra.mxu0 0
      %2253 = vmatpush.bf16.msra.mxu0 0
      %2254 = vmatpush.bf16.msra.mxu0 0
      %2255 = vmatpush.bf16.msra.mxu0 0
      %2256 = vmatpush.bf16.msra.mxu0 0
      %2257 = vmatpush.bf16.msra.mxu0 0
      %2258 = vmatpush.bf16.msra.mxu0 0
      %2259 = vmatpush.bf16.msra.mxu0 %v2206
      %2260 = vmatmul.bf16.gmra.mxu0 %v1679
      %v2261 = vpop.f32.mrf.mxu0
      %v2262 = vadd.f32 %v2248, %v2261
      %v2263 = vpop.f32.mrf.mxu0
      %v2264 = vadd.f32 %v2250, %v2263
      %2265 = vdwg.mxu0
      %2266 = vst [vmem:[#allocation3 + $0x30] sm:$0xff] %v2262
      %2267 = vst [vmem:[#allocation3 + $0x38] sm:$0xff] %v2264
      %v2268 = vld [vmem:[%s9] sm:$0xf]
      %v2269 = vld [vmem:[%s9 + $0x4] sm:$0xf]
      %v2270 = vld [vmem:[%s9 + $0x8] sm:$0xf]
      %v2271 = vld [vmem:[%s9 + $0xc] sm:$0xf]
      %v2272 = vld [vmem:[#allocation3] sm:$0xff]
      %v2273 = vld [vmem:[#allocation3 + $0x8] sm:$0xff]
      %v2274 = vld [vmem:[#allocation3 + $0x10] sm:$0xff]
      %v2275 = vld [vmem:[#allocation3 + $0x18] sm:$0xff]
      %v2276 = vld [vmem:[#allocation3 + $0x20] sm:$0xff]
      %v2277 = vld [vmem:[#allocation3 + $0x28] sm:$0xff]
      %v2278 = vld [vmem:[#allocation3 + $0x30] sm:$0xff]
      %v2279 = vld [vmem:[#allocation3 + $0x38] sm:$0xff]
      %v2280 = vpack.c.bf16 %v2273, %v2272
      %v2281 = vpack.c.bf16 %v2275, %v2274
      %v2282 = vpack.c.bf16 %v2277, %v2276
      %v2283 = vpack.c.bf16 %v2279, %v2278
      %s2284 = scalar_lea.vmem %s9, 16
      %v2285 = vld [vmem:[%s2284] sm:$0xf]
      %v2286 = vld [vmem:[%s2284 + $0x4] sm:$0xf]
      %v2287 = vld [vmem:[%s2284 + $0x8] sm:$0xf]
      %v2288 = vld [vmem:[%s2284 + $0xc] sm:$0xf]
      %v2293 = vunpack.c.l.b16 %v2285
      %v2294 = vunpack.c.l.b16 %v2286
      %v2295 = vunpack.c.l.b16 %v2287
      %v2296 = vunpack.c.l.b16 %v2288
      %v2297 = vpack.c.b16 %v2294, %v2293
      %v2298 = vpack.c.b16 %v2296, %v2295
      %2303 = vrot.lane.b32.xlu0 %v2280, 127
      %v2304 = vpop.permute.xlu0 %2303
      %2305 = vrot.lane.b32.xlu0 %v2281, 127
      %v2306 = vpop.permute.xlu0 %2305
      %2307 = vrot.lane.b32.xlu0 %v2282, 127
      %v2308 = vpop.permute.xlu0 %2307
      %2309 = vrot.lane.b32.xlu0 %v2283, 127
      %v2310 = vpop.permute.xlu0 %2309
      %vm2315 = vcmask 523264
      %v2317 = vsel %vm2315, %v2297, 0
      %v2320 = vsel %vm2315, %v2298, 0
      %2322 = vmatpush.bf16.msra.mxu0 0
      %2323 = vmatpush.bf16.msra.mxu0 0
      %2324 = vmatpush.bf16.msra.mxu0 0
      %2325 = vmatpush.bf16.msra.mxu0 0
      %2326 = vmatpush.bf16.msra.mxu0 %v2310
      %2327 = vmatpush.bf16.msra.mxu0 %v2308
      %2328 = vmatpush.bf16.msra.mxu0 %v2306
      %2329 = vmatpush.bf16.msra.mxu0 %v2304
      %2330 = vmatmul.bf16.gmra.mxu0 %v2317
      %v2331 = vpop.f32.mrf.mxu0
      %v2332 = vadd.f32 0.0, %v2331
      %v2333 = vpop.f32.mrf.mxu0
      %v2334 = vadd.f32 0.0, %v2333
      %2335 = vmatmul.bf16.gmra.mxu0 %v2320
      %v2336 = vpop.f32.mrf.mxu0
      %v2337 = vadd.f32 0.0, %v2336
      %v2338 = vpop.f32.mrf.mxu0
      %v2339 = vadd.f32 0.0, %v2338
      %2340 = vdwg.mxu0
      %v2345 = vunpack.c.l.b16 %v2268
      %v2346 = vunpack.c.l.b16 %v2269
      %v2347 = vunpack.c.l.b16 %v2270
      %v2348 = vunpack.c.l.b16 %v2271
      %v2349 = vpack.c.b16 %v2346, %v2345
      %v2350 = vpack.c.b16 %v2348, %v2347
      %v2352 = vsel %vm2315, %v2349, 0
      %v2355 = vsel %vm2315, %v2350, 0
      %2357 = vmatpush.bf16.msra.mxu0 0
      %2358 = vmatpush.bf16.msra.mxu0 0
      %2359 = vmatpush.bf16.msra.mxu0 0
      %2360 = vmatpush.bf16.msra.mxu0 0
      %2361 = vmatpush.bf16.msra.mxu0 %v2283
      %2362 = vmatpush.bf16.msra.mxu0 %v2282
      %2363 = vmatpush.bf16.msra.mxu0 %v2281
      %2364 = vmatpush.bf16.msra.mxu0 %v2280
      %2365 = vmatmul.bf16.gmra.mxu0 %v2352
      %v2366 = vpop.f32.mrf.mxu0
      %v2367 = vadd.f32 %v2332, %v2366
      %v2368 = vpop.f32.mrf.mxu0
      %v2369 = vadd.f32 %v2334, %v2368
      %2370 = vmatmul.bf16.gmra.mxu0 %v2355
      %v2371 = vpop.f32.mrf.mxu0
      %v2372 = vadd.f32 %v2337, %v2371
      %v2373 = vpop.f32.mrf.mxu0
      %v2374 = vadd.f32 %v2339, %v2373
      %2375 = vdwg.mxu0
      %s2376 = scalar_lea.vmem %s9, 32
      %v2377 = vld [vmem:[%s2376] sm:$0xf]
      %v2378 = vld [vmem:[%s2376 + $0x4] sm:$0xf]
      %v2379 = vld [vmem:[%s2376 + $0x8] sm:$0xf]
      %v2380 = vld [vmem:[%s2376 + $0xc] sm:$0xf]
      %v2385 = vunpack.c.l.b16 %v2377
      %v2386 = vunpack.c.l.b16 %v2378
      %v2387 = vunpack.c.l.b16 %v2379
      %v2388 = vunpack.c.l.b16 %v2380
      %v2389 = vpack.c.b16 %v2386, %v2385
      %v2390 = vpack.c.b16 %v2388, %v2387
      %2391 = vrot.lane.b32.xlu0 %v2280, 119
      %v2392 = vpop.permute.xlu0 %2391
      %2393 = vrot.lane.b32.xlu0 %v2281, 119
      %v2394 = vpop.permute.xlu0 %2393
      %2395 = vrot.lane.b32.xlu0 %v2282, 119
      %v2396 = vpop.permute.xlu0 %2395
      %2397 = vrot.lane.b32.xlu0 %v2283, 119
      %v2398 = vpop.permute.xlu0 %2397
      %v2404 = vsel %vm2315, %v2389, 0
      %v2407 = vsel %vm2315, %v2390, 0
      %2409 = vmatpush.bf16.msra.mxu0 0
      %2410 = vmatpush.bf16.msra.mxu0 0
      %2411 = vmatpush.bf16.msra.mxu0 0
      %2412 = vmatpush.bf16.msra.mxu0 0
      %2413 = vmatpush.bf16.msra.mxu0 %v2398
      %2414 = vmatpush.bf16.msra.mxu0 %v2396
      %2415 = vmatpush.bf16.msra.mxu0 %v2394
      %2416 = vmatpush.bf16.msra.mxu0 %v2392
      %2417 = vmatmul.bf16.gmra.mxu0 %v2404
      %v2418 = vpop.f32.mrf.mxu0
      %v2419 = vadd.f32 0.0, %v2418
      %v2420 = vpop.f32.mrf.mxu0
      %v2421 = vadd.f32 0.0, %v2420
      %2422 = vmatmul.bf16.gmra.mxu0 %v2407
      %v2423 = vpop.f32.mrf.mxu0
      %v2424 = vadd.f32 0.0, %v2423
      %v2425 = vpop.f32.mrf.mxu0
      %v2426 = vadd.f32 0.0, %v2425
      %2427 = vdwg.mxu0
      %v2428 = vadd.f32 %v2367, %v2419
      %v2429 = vadd.f32 %v2369, %v2421
      %v2430 = vadd.f32 %v2372, %v2424
      %v2431 = vadd.f32 %v2374, %v2426
      %s2432 = scalar_lea.vmem %s9, 48
      %v2433 = vld [vmem:[%s2432] sm:$0xf]
      %v2434 = vld [vmem:[%s2432 + $0x4] sm:$0xf]
      %v2435 = vld [vmem:[%s2432 + $0x8] sm:$0xf]
      %v2436 = vld [vmem:[%s2432 + $0xc] sm:$0xf]
      %v2441 = vunpack.c.l.b16 %v2433
      %v2442 = vunpack.c.l.b16 %v2434
      %v2443 = vunpack.c.l.b16 %v2435
      %v2444 = vunpack.c.l.b16 %v2436
      %v2445 = vpack.c.b16 %v2442, %v2441
      %v2446 = vpack.c.b16 %v2444, %v2443
      %2447 = vrot.lane.b32.xlu0 %v2280, 118
      %v2448 = vpop.permute.xlu0 %2447
      %2449 = vrot.lane.b32.xlu0 %v2281, 118
      %v2450 = vpop.permute.xlu0 %2449
      %2451 = vrot.lane.b32.xlu0 %v2282, 118
      %v2452 = vpop.permute.xlu0 %2451
      %2453 = vrot.lane.b32.xlu0 %v2283, 118
      %v2454 = vpop.permute.xlu0 %2453
      %v2460 = vsel %vm2315, %v2445, 0
      %v2463 = vsel %vm2315, %v2446, 0
      %2465 = vmatpush.bf16.msra.mxu0 0
      %2466 = vmatpush.bf16.msra.mxu0 0
      %2467 = vmatpush.bf16.msra.mxu0 0
      %2468 = vmatpush.bf16.msra.mxu0 0
      %2469 = vmatpush.bf16.msra.mxu0 %v2454
      %2470 = vmatpush.bf16.msra.mxu0 %v2452
      %2471 = vmatpush.bf16.msra.mxu0 %v2450
      %2472 = vmatpush.bf16.msra.mxu0 %v2448
      %2473 = vmatmul.bf16.gmra.mxu0 %v2460
      %v2474 = vpop.f32.mrf.mxu0
      %v2475 = vadd.f32 0.0, %v2474
      %v2476 = vpop.f32.mrf.mxu0
      %v2477 = vadd.f32 0.0, %v2476
      %2478 = vmatmul.bf16.gmra.mxu0 %v2463
      %v2479 = vpop.f32.mrf.mxu0
      %v2480 = vadd.f32 0.0, %v2479
      %v2481 = vpop.f32.mrf.mxu0
      %v2482 = vadd.f32 0.0, %v2481
      %2483 = vdwg.mxu0
      %v2484 = vadd.f32 %v2428, %v2475
      %v2485 = vadd.f32 %v2429, %v2477
      %v2486 = vadd.f32 %v2430, %v2480
      %v2487 = vadd.f32 %v2431, %v2482
      %v2488 = vld [vmem:[%s12] sm:$0x1]
      %v2490 = vperm.slane %v2488, 0
      %v2492 = vmul.f32 %v2484, %v2490
      %v2493 = vmul.f32 %v2485, %v2490
      %v2494 = vmul.f32 %v2486, %v2490
      %v2495 = vmul.f32 %v2487, %v2490
      %vm2496 = vcmask 588800
      %v2497 = vsel %vm2496, %v2492, 0.0
      %2498 = vadd.xlane.f32.xlu0 %v2497
      %v2499 = vpop.xlane.xlu0 %2498
      %v2500 = vsel %vm2496, %v2493, 0.0
      %2501 = vadd.xlane.f32.xlu0 %v2500
      %v2502 = vpop.xlane.xlu0 %2501
      %v2503 = vsel %vm2496, %v2494, 0.0
      %2504 = vadd.xlane.f32.xlu0 %v2503
      %v2505 = vpop.xlane.xlu0 %2504
      %v2506 = vsel %vm2496, %v2495, 0.0
      %2507 = vadd.xlane.f32.xlu0 %v2506
      %v2508 = vpop.xlane.xlu0 %2507
      %v2509 = vmul.f32 %v2499, 0.015625
      %v2510 = vmul.f32 %v2502, 0.015625
      %v2511 = vmul.f32 %v2505, 0.015625
      %v2512 = vmul.f32 %v2508, 0.015625
      %v2513 = vsub.f32 %v2484, %v2509
      %v2514 = vsub.f32 %v2485, %v2510
      %v2515 = vsub.f32 %v2486, %v2511
      %v2516 = vsub.f32 %v2487, %v2512
      %v2517 = vmul.f32 %v2513, %v2513
      %v2518 = vmul.f32 %v2514, %v2514
      %v2519 = vmul.f32 %v2515, %v2515
      %v2520 = vmul.f32 %v2516, %v2516
      %v2521 = vmul.f32 %v2517, %v2490
      %v2522 = vmul.f32 %v2518, %v2490
      %v2523 = vmul.f32 %v2519, %v2490
      %v2524 = vmul.f32 %v2520, %v2490
      %v2525 = vsel %vm2496, %v2521, 0.0
      %2526 = vadd.xlane.f32.xlu0 %v2525
      %v2527 = vpop.xlane.xlu0 %2526
      %v2528 = vsel %vm2496, %v2522, 0.0
      %2529 = vadd.xlane.f32.xlu0 %v2528
      %v2530 = vpop.xlane.xlu0 %2529
      %v2531 = vsel %vm2496, %v2523, 0.0
      %2532 = vadd.xlane.f32.xlu0 %v2531
      %v2533 = vpop.xlane.xlu0 %2532
      %v2534 = vsel %vm2496, %v2524, 0.0
      %2535 = vadd.xlane.f32.xlu0 %v2534
      %v2536 = vpop.xlane.xlu0 %2535
      %v2537 = vmul.f32 %v2527, 0.015625
      %v2538 = vmul.f32 %v2530, 0.015625
      %v2539 = vmul.f32 %v2533, 0.015625
      %v2540 = vmul.f32 %v2536, 0.015625
      %v2541 = vadd.f32 %v2537, 1e-05
      %v2542 = vadd.f32 %v2538, 1e-05
      %v2543 = vadd.f32 %v2539, 1e-05
      %v2544 = vadd.f32 %v2540, 1e-05
      %v2545 = vrsqrt.pop %v2541
      %v2546 = vmul.f32 %v2545, %v2541
      %v2547 = vmul.f32 %v2546, %v2545
      %v2548 = vmul.f32 0.5, %v2547
      %v2549 = vsub.f32 1.5, %v2548
      %v2550 = vmul.f32 %v2545, %v2549
      %vm2551 = vweird.f32 %v2541
      %vm2552 = vweird.f32 %v2545
      %vm2553 = vmor %vm2551, %vm2552
      %v2554 = vsel %vm2553, %v2545, %v2550
      %v2555 = vrsqrt.pop %v2542
      %v2556 = vmul.f32 %v2555, %v2542
      %v2557 = vmul.f32 %v2556, %v2555
      %v2558 = vmul.f32 0.5, %v2557
      %v2559 = vsub.f32 1.5, %v2558
      %v2560 = vmul.f32 %v2555, %v2559
      %vm2561 = vweird.f32 %v2542
      %vm2562 = vweird.f32 %v2555
      %vm2563 = vmor %vm2561, %vm2562
      %v2564 = vsel %vm2563, %v2555, %v2560
      %v2565 = vrsqrt.pop %v2543
      %v2566 = vmul.f32 %v2565, %v2543
      %v2567 = vmul.f32 %v2566, %v2565
      %v2568 = vmul.f32 0.5, %v2567
      %v2569 = vsub.f32 1.5, %v2568
      %v2570 = vmul.f32 %v2565, %v2569
      %vm2571 = vweird.f32 %v2543
      %vm2572 = vweird.f32 %v2565
      %vm2573 = vmor %vm2571, %vm2572
      %v2574 = vsel %vm2573, %v2565, %v2570
      %v2575 = vrsqrt.pop %v2544
      %v2576 = vmul.f32 %v2575, %v2544
      %v2577 = vmul.f32 %v2576, %v2575
      %v2578 = vmul.f32 0.5, %v2577
      %v2579 = vsub.f32 1.5, %v2578
      %v2580 = vmul.f32 %v2575, %v2579
      %vm2581 = vweird.f32 %v2544
      %vm2582 = vweird.f32 %v2575
      %vm2583 = vmor %vm2581, %vm2582
      %v2584 = vsel %vm2583, %v2575, %v2580
      %v2585 = vmul.f32 %v2513, %v2554
      %v2586 = vmul.f32 %v2514, %v2564
      %v2587 = vmul.f32 %v2515, %v2574
      %v2588 = vmul.f32 %v2516, %v2584
      %v2589 = vld [vmem:[%s10] sm:$0xff]
      %v2590 = vld [vmem:[%s10 + $0x8] sm:$0xff]
      %v2591 = vld [vmem:[%s10 + $0x10] sm:$0xff]
      %v2592 = vld [vmem:[%s10 + $0x18] sm:$0xff]
      %2594 = vset.pattern.permute.xlu0 0
      %2595 = vperm.xlu0 %2594, %v2589
      %v2596 = vpop.permute.xlu0 %2595
      %2599 = vset.pattern.permute.xlu0 0
      %2600 = vperm.xlu0 %2599, %v2590
      %v2601 = vpop.permute.xlu0 %2600
      %2604 = vset.pattern.permute.xlu0 0
      %2605 = vperm.xlu0 %2604, %v2591
      %v2606 = vpop.permute.xlu0 %2605
      %2609 = vset.pattern.permute.xlu0 0
      %2610 = vperm.xlu0 %2609, %v2592
      %v2611 = vpop.permute.xlu0 %2610
      %v2613 = vmul.f32 %v2585, %v2596
      %v2614 = vmul.f32 %v2586, %v2601
      %v2615 = vmul.f32 %v2587, %v2606
      %v2616 = vmul.f32 %v2588, %v2611
      %v2617 = vld [vmem:[%s11] sm:$0xff]
      %v2618 = vld [vmem:[%s11 + $0x8] sm:$0xff]
      %v2619 = vld [vmem:[%s11 + $0x10] sm:$0xff]
      %v2620 = vld [vmem:[%s11 + $0x18] sm:$0xff]
      %2622 = vset.pattern.permute.xlu0 0
      %2623 = vperm.xlu0 %2622, %v2617
      %v2624 = vpop.permute.xlu0 %2623
      %2627 = vset.pattern.permute.xlu0 0
      %2628 = vperm.xlu0 %2627, %v2618
      %v2629 = vpop.permute.xlu0 %2628
      %2632 = vset.pattern.permute.xlu0 0
      %2633 = vperm.xlu0 %2632, %v2619
      %v2634 = vpop.permute.xlu0 %2633
      %2637 = vset.pattern.permute.xlu0 0
      %2638 = vperm.xlu0 %2637, %v2620
      %v2639 = vpop.permute.xlu0 %2638
      %v2641 = vadd.f32 %v2613, %v2624
      %v2642 = vadd.f32 %v2614, %v2629
      %v2643 = vadd.f32 %v2615, %v2634
      %v2644 = vadd.f32 %v2616, %v2639
      %vm2645 = vcmp.ge.f32.partialorder %v2641, 0.0
      %vm2646 = vcmp.ge.f32.partialorder %v2642, 0.0
      %vm2647 = vcmp.ge.f32.partialorder %v2643, 0.0
      %vm2648 = vcmp.ge.f32.partialorder %v2644, 0.0
      %v2649 = vmul.f32 %v2641, 0.2
      %v2650 = vmul.f32 %v2642, 0.2
      %v2651 = vmul.f32 %v2643, 0.2
      %v2652 = vmul.f32 %v2644, 0.2
      %v2653 = vsel %vm2645, %v2641, %v2649
      %v2654 = vsel %vm2646, %v2642, %v2650
      %v2655 = vsel %vm2647, %v2643, %v2651
      %v2656 = vsel %vm2648, %v2644, %v2652
      %v2657 = vpack.c.bf16 %v2654, %v2653
      %v2658 = vpack.c.bf16 %v2656, %v2655
      %v2659 = vld [vmem:[%s13] sm:$0xf]
      %v2660 = vld [vmem:[%s13 + $0x4] sm:$0xf]
      %v2661 = vld [vmem:[%s13 + $0x8] sm:$0xf]
      %v2662 = vld [vmem:[%s13 + $0xc] sm:$0xf]
      %v2663 = vld [vmem:[%s13 + $0x10] sm:$0xf]
      %v2664 = vld [vmem:[%s13 + $0x14] sm:$0xf]
      %v2665 = vld [vmem:[%s13 + $0x18] sm:$0xf]
      %v2666 = vld [vmem:[%s13 + $0x1c] sm:$0xf]
      %v2667 = vld [vmem:[%s13 + $0x20] sm:$0xf]
      %v2677 = vunpack.c.l.b16 %v2659
      %v2678 = vunpack.c.l.b16 %v2660
      %v2679 = vunpack.c.l.b16 %v2661
      %v2680 = vunpack.c.l.b16 %v2662
      %v2681 = vunpack.c.l.b16 %v2663
      %v2682 = vunpack.c.l.b16 %v2664
      %v2683 = vunpack.c.l.b16 %v2665
      %v2684 = vunpack.c.l.b16 %v2666
      %v2685 = vunpack.c.l.b16 %v2667
      %v2686 = vpack.c.b16 %v2678, %v2677
      %v2687 = vpack.c.b16 %v2680, %v2679
      %v2688 = vpack.c.b16 %v2682, %v2681
      %v2689 = vpack.c.b16 %v2684, %v2683
      %v2690 = vpack.c.b16 %v2685, %v2685
      %v2696 = vsel %vm2496, %v2657, 0
      %v2699 = vsel %vm2496, %v2658, 0
      %vm2701 = vcmask 1043456
      %v2703 = vsel %vm2701, %v2690, 0
      %2705 = vmatpush.bf16.msra.mxu0 0
      %2706 = vmatpush.bf16.msra.mxu0 0
      %2707 = vmatpush.bf16.msra.mxu0 0
      %2708 = vmatpush.bf16.msra.mxu0 %v2703
      %2709 = vmatpush.bf16.msra.mxu0 %v2689
      %2710 = vmatpush.bf16.msra.mxu0 %v2688
      %2711 = vmatpush.bf16.msra.mxu0 %v2687
      %2712 = vmatpush.bf16.msra.mxu0 %v2686
      %2713 = vmatmul.bf16.gmra.mxu0 %v2696
      %v2714 = vpop.f32.mrf.mxu0
      %v2715 = vadd.f32 0.0, %v2714
      %v2716 = vpop.f32.mrf.mxu0
      %v2717 = vadd.f32 0.0, %v2716
      %2718 = vmatmul.bf16.gmra.mxu0 %v2699
      %v2719 = vpop.f32.mrf.mxu0
      %v2720 = vadd.f32 0.0, %v2719
      %v2721 = vpop.f32.mrf.mxu0
      %v2722 = vadd.f32 0.0, %v2721
      %2723 = vdwg.mxu0
      %2724 = vst [vmem:[#allocation4] sm:$0xff] %v2715
      %2725 = vst [vmem:[#allocation4 + $0x8] sm:$0xff] %v2717
      %2726 = vst [vmem:[#allocation4 + $0x10] sm:$0xff] %v2720
      %2727 = vst [vmem:[#allocation4 + $0x18] sm:$0xff] %v2722
      %s2728 = scalar_lea.vmem %s13, 36
      %v2729 = vld [vmem:[%s2728] sm:$0xf]
      %v2730 = vld [vmem:[%s2728 + $0x4] sm:$0xf]
      %v2731 = vld [vmem:[%s2728 + $0x8] sm:$0xf]
      %v2732 = vld [vmem:[%s2728 + $0xc] sm:$0xf]
      %v2733 = vld [vmem:[%s2728 + $0x10] sm:$0xf]
      %v2734 = vld [vmem:[%s2728 + $0x14] sm:$0xf]
      %v2735 = vld [vmem:[%s2728 + $0x18] sm:$0xf]
      %v2736 = vld [vmem:[%s2728 + $0x1c] sm:$0xf]
      %v2737 = vld [vmem:[%s2728 + $0x20] sm:$0xf]
      %v2747 = vunpack.c.l.b16 %v2729
      %v2748 = vunpack.c.l.b16 %v2730
      %v2749 = vunpack.c.l.b16 %v2731
      %v2750 = vunpack.c.l.b16 %v2732
      %v2751 = vunpack.c.l.b16 %v2733
      %v2752 = vunpack.c.l.b16 %v2734
      %v2753 = vunpack.c.l.b16 %v2735
      %v2754 = vunpack.c.l.b16 %v2736
      %v2755 = vunpack.c.l.b16 %v2737
      %v2756 = vpack.c.b16 %v2748, %v2747
      %v2757 = vpack.c.b16 %v2750, %v2749
      %v2758 = vpack.c.b16 %v2752, %v2751
      %v2759 = vpack.c.b16 %v2754, %v2753
      %v2760 = vpack.c.b16 %v2755, %v2755
      %v2766 = vsel %vm2701, %v2760, 0
      %2768 = vmatpush.bf16.msra.mxu0 0
      %2769 = vmatpush.bf16.msra.mxu0 0
      %2770 = vmatpush.bf16.msra.mxu0 0
      %2771 = vmatpush.bf16.msra.mxu0 %v2766
      %2772 = vmatpush.bf16.msra.mxu0 %v2759
      %2773 = vmatpush.bf16.msra.mxu0 %v2758
      %2774 = vmatpush.bf16.msra.mxu0 %v2757
      %2775 = vmatpush.bf16.msra.mxu0 %v2756
      %2776 = vmatmul.bf16.gmra.mxu0 %v2696
      %v2777 = vpop.f32.mrf.mxu0
      %v2778 = vadd.f32 0.0, %v2777
      %v2779 = vpop.f32.mrf.mxu0
      %v2780 = vadd.f32 0.0, %v2779
      %2781 = vmatmul.bf16.gmra.mxu0 %v2699
      %v2782 = vpop.f32.mrf.mxu0
      %v2783 = vadd.f32 0.0, %v2782
      %v2784 = vpop.f32.mrf.mxu0
      %v2785 = vadd.f32 0.0, %v2784
      %2786 = vdwg.mxu0
      %2787 = vst [vmem:[#allocation4 + $0x20] sm:$0xff] %v2778
      %2788 = vst [vmem:[#allocation4 + $0x28] sm:$0xff] %v2780
      %2789 = vst [vmem:[#allocation4 + $0x30] sm:$0xff] %v2783
      %2790 = vst [vmem:[#allocation4 + $0x38] sm:$0xff] %v2785
      %s2791 = scalar_lea.vmem %s13, 72
      %v2792 = vld [vmem:[%s2791] sm:$0xf]
      %v2793 = vld [vmem:[%s2791 + $0x4] sm:$0xf]
      %v2794 = vld [vmem:[%s2791 + $0x8] sm:$0xf]
      %v2795 = vld [vmem:[%s2791 + $0xc] sm:$0xf]
      %v2796 = vld [vmem:[%s2791 + $0x10] sm:$0xf]
      %v2797 = vld [vmem:[%s2791 + $0x14] sm:$0xf]
      %v2798 = vld [vmem:[%s2791 + $0x18] sm:$0xf]
      %v2799 = vld [vmem:[%s2791 + $0x1c] sm:$0xf]
      %v2800 = vld [vmem:[%s2791 + $0x20] sm:$0xf]
      %v2810 = vunpack.c.l.b16 %v2792
      %v2811 = vunpack.c.l.b16 %v2793
      %v2812 = vunpack.c.l.b16 %v2794
      %v2813 = vunpack.c.l.b16 %v2795
      %v2814 = vunpack.c.l.b16 %v2796
      %v2815 = vunpack.c.l.b16 %v2797
      %v2816 = vunpack.c.l.b16 %v2798
      %v2817 = vunpack.c.l.b16 %v2799
      %v2818 = vunpack.c.l.b16 %v2800
      %v2819 = vpack.c.b16 %v2811, %v2810
      %v2820 = vpack.c.b16 %v2813, %v2812
      %v2821 = vpack.c.b16 %v2815, %v2814
      %v2822 = vpack.c.b16 %v2817, %v2816
      %v2823 = vpack.c.b16 %v2818, %v2818
      %v2829 = vsel %vm2701, %v2823, 0
      %2831 = vmatpush.bf16.msra.mxu0 0
      %2832 = vmatpush.bf16.msra.mxu0 0
      %2833 = vmatpush.bf16.msra.mxu0 0
      %2834 = vmatpush.bf16.msra.mxu0 %v2829
      %2835 = vmatpush.bf16.msra.mxu0 %v2822
      %2836 = vmatpush.bf16.msra.mxu0 %v2821
      %2837 = vmatpush.bf16.msra.mxu0 %v2820
      %2838 = vmatpush.bf16.msra.mxu0 %v2819
      %2839 = vmatmul.bf16.gmra.mxu0 %v2696
      %v2840 = vpop.f32.mrf.mxu0
      %v2841 = vadd.f32 0.0, %v2840
      %v2842 = vpop.f32.mrf.mxu0
      %v2843 = vadd.f32 0.0, %v2842
      %2844 = vmatmul.bf16.gmra.mxu0 %v2699
      %v2845 = vpop.f32.mrf.mxu0
      %v2846 = vadd.f32 0.0, %v2845
      %v2847 = vpop.f32.mrf.mxu0
      %v2848 = vadd.f32 0.0, %v2847
      %2849 = vdwg.mxu0
      %2850 = vst [vmem:[#allocation4 + $0x40] sm:$0xff] %v2841
      %2851 = vst [vmem:[#allocation4 + $0x48] sm:$0xff] %v2843
      %2852 = vst [vmem:[#allocation4 + $0x50] sm:$0xff] %v2846
      %2853 = vst [vmem:[#allocation4 + $0x58] sm:$0xff] %v2848
      %s2854 = scalar_lea.vmem %s13, 108
      %v2855 = vld [vmem:[%s2854] sm:$0xf]
      %v2856 = vld [vmem:[%s2854 + $0x4] sm:$0xf]
      %v2857 = vld [vmem:[%s2854 + $0x8] sm:$0xf]
      %v2858 = vld [vmem:[%s2854 + $0xc] sm:$0xf]
      %v2859 = vld [vmem:[%s2854 + $0x10] sm:$0xf]
      %v2860 = vld [vmem:[%s2854 + $0x14] sm:$0xf]
      %v2861 = vld [vmem:[%s2854 + $0x18] sm:$0xf]
      %v2862 = vld [vmem:[%s2854 + $0x1c] sm:$0xf]
      %v2863 = vld [vmem:[%s2854 + $0x20] sm:$0xf]
      %v2873 = vunpack.c.l.b16 %v2855
      %v2874 = vunpack.c.l.b16 %v2856
      %v2875 = vunpack.c.l.b16 %v2857
      %v2876 = vunpack.c.l.b16 %v2858
      %v2877 = vunpack.c.l.b16 %v2859
      %v2878 = vunpack.c.l.b16 %v2860
      %v2879 = vunpack.c.l.b16 %v2861
      %v2880 = vunpack.c.l.b16 %v2862
      %v2881 = vunpack.c.l.b16 %v2863
      %v2882 = vpack.c.b16 %v2874, %v2873
      %v2883 = vpack.c.b16 %v2876, %v2875
      %v2884 = vpack.c.b16 %v2878, %v2877
      %v2885 = vpack.c.b16 %v2880, %v2879
      %v2886 = vpack.c.b16 %v2881, %v2881
      %v2892 = vsel %vm2701, %v2886, 0
      %2894 = vmatpush.bf16.msra.mxu0 0
      %2895 = vmatpush.bf16.msra.mxu0 0
      %2896 = vmatpush.bf16.msra.mxu0 0
      %2897 = vmatpush.bf16.msra.mxu0 %v2892
      %2898 = vmatpush.bf16.msra.mxu0 %v2885
      %2899 = vmatpush.bf16.msra.mxu0 %v2884
      %2900 = vmatpush.bf16.msra.mxu0 %v2883
      %2901 = vmatpush.bf16.msra.mxu0 %v2882
      %2902 = vmatmul.bf16.gmra.mxu0 %v2696
      %v2903 = vpop.f32.mrf.mxu0
      %v2904 = vadd.f32 0.0, %v2903
      %v2905 = vpop.f32.mrf.mxu0
      %v2906 = vadd.f32 0.0, %v2905
      %2907 = vmatmul.bf16.gmra.mxu0 %v2699
      %v2908 = vpop.f32.mrf.mxu0
      %v2909 = vadd.f32 0.0, %v2908
      %v2910 = vpop.f32.mrf.mxu0
      %v2911 = vadd.f32 0.0, %v2910
      %2912 = vdwg.mxu0
      %2913 = vst [vmem:[#allocation4 + $0x60] sm:$0xff] %v2904
      %2914 = vst [vmem:[#allocation4 + $0x68] sm:$0xff] %v2906
      %2915 = vst [vmem:[#allocation4 + $0x70] sm:$0xff] %v2909
      %2916 = vst [vmem:[#allocation4 + $0x78] sm:$0xff] %v2911
      %v2917 = vld [vmem:[%s14] sm:$0xf]
      %v2918 = vld [vmem:[%s14 + $0x4] sm:$0xf]
      %v2919 = vld [vmem:[%s14 + $0x8] sm:$0xf]
      %v2920 = vld [vmem:[%s14 + $0xc] sm:$0xf]
      %v2921 = vld [vmem:[%s14 + $0x10] sm:$0xf]
      %v2922 = vld [vmem:[%s14 + $0x14] sm:$0xf]
      %v2923 = vld [vmem:[%s14 + $0x18] sm:$0xf]
      %v2924 = vld [vmem:[%s14 + $0x1c] sm:$0xf]
      %v2925 = vld [vmem:[#allocation4] sm:$0xff]
      %v2926 = vld [vmem:[#allocation4 + $0x8] sm:$0xff]
      %v2927 = vld [vmem:[#allocation4 + $0x10] sm:$0xff]
      %v2928 = vld [vmem:[#allocation4 + $0x18] sm:$0xff]
      %v2929 = vld [vmem:[#allocation4 + $0x20] sm:$0xff]
      %v2930 = vld [vmem:[#allocation4 + $0x28] sm:$0xff]
      %v2931 = vld [vmem:[#allocation4 + $0x30] sm:$0xff]
      %v2932 = vld [vmem:[#allocation4 + $0x38] sm:$0xff]
      %v2933 = vld [vmem:[#allocation4 + $0x40] sm:$0xff]
      %v2934 = vld [vmem:[#allocation4 + $0x48] sm:$0xff]
      %v2935 = vld [vmem:[#allocation4 + $0x50] sm:$0xff]
      %v2936 = vld [vmem:[#allocation4 + $0x58] sm:$0xff]
      %v2937 = vld [vmem:[#allocation4 + $0x60] sm:$0xff]
      %v2938 = vld [vmem:[#allocation4 + $0x68] sm:$0xff]
      %v2939 = vld [vmem:[#allocation4 + $0x70] sm:$0xff]
      %v2940 = vld [vmem:[#allocation4 + $0x78] sm:$0xff]
      %v2941 = vpack.c.bf16 %v2926, %v2925
      %v2942 = vpack.c.bf16 %v2928, %v2927
      %v2943 = vpack.c.bf16 %v2930, %v2929
      %v2944 = vpack.c.bf16 %v2932, %v2931
      %v2945 = vpack.c.bf16 %v2934, %v2933
      %v2946 = vpack.c.bf16 %v2936, %v2935
      %v2947 = vpack.c.bf16 %v2938, %v2937
      %v2948 = vpack.c.bf16 %v2940, %v2939
      %s2949 = scalar_lea.vmem %s14, 32
      %v2950 = vld [vmem:[%s2949] sm:$0xf]
      %v2951 = vld [vmem:[%s2949 + $0x4] sm:$0xf]
      %v2952 = vld [vmem:[%s2949 + $0x8] sm:$0xf]
      %v2953 = vld [vmem:[%s2949 + $0xc] sm:$0xf]
      %v2954 = vld [vmem:[%s2949 + $0x10] sm:$0xf]
      %v2955 = vld [vmem:[%s2949 + $0x14] sm:$0xf]
      %v2956 = vld [vmem:[%s2949 + $0x18] sm:$0xf]
      %v2957 = vld [vmem:[%s2949 + $0x1c] sm:$0xf]
      %v2966 = vunpack.c.l.b16 %v2950
      %v2967 = vunpack.c.l.b16 %v2951
      %v2968 = vunpack.c.l.b16 %v2952
      %v2969 = vunpack.c.l.b16 %v2953
      %v2970 = vunpack.c.l.b16 %v2954
      %v2971 = vunpack.c.l.b16 %v2955
      %v2972 = vunpack.c.l.b16 %v2956
      %v2973 = vunpack.c.l.b16 %v2957
      %v2974 = vpack.c.b16 %v2967, %v2966
      %v2975 = vpack.c.b16 %v2969, %v2968
      %v2976 = vpack.c.b16 %v2971, %v2970
      %v2977 = vpack.c.b16 %v2973, %v2972
      %2990 = vrot.lane.b32.xlu0 %v2941, 127
      %v2991 = vpop.permute.xlu0 %2990
      %2992 = vrot.lane.b32.xlu0 %v2942, 127
      %v2993 = vpop.permute.xlu0 %2992
      %2994 = vrot.lane.b32.xlu0 %v2943, 127
      %v2995 = vpop.permute.xlu0 %2994
      %2996 = vrot.lane.b32.xlu0 %v2944, 127
      %v2997 = vpop.permute.xlu0 %2996
      %2998 = vrot.lane.b32.xlu0 %v2945, 127
      %v2999 = vpop.permute.xlu0 %2998
      %3000 = vrot.lane.b32.xlu0 %v2946, 127
      %v3001 = vpop.permute.xlu0 %3000
      %3002 = vrot.lane.b32.xlu0 %v2947, 127
      %v3003 = vpop.permute.xlu0 %3002
      %3004 = vrot.lane.b32.xlu0 %v2948, 127
      %v3005 = vpop.permute.xlu0 %3004
      %3014 = vmatpush.bf16.msra.mxu0 %v3005
      %3015 = vmatpush.bf16.msra.mxu0 %v3003
      %3016 = vmatpush.bf16.msra.mxu0 %v3001
      %3017 = vmatpush.bf16.msra.mxu0 %v2999
      %3018 = vmatpush.bf16.msra.mxu0 %v2997
      %3019 = vmatpush.bf16.msra.mxu0 %v2995
      %3020 = vmatpush.bf16.msra.mxu0 %v2993
      %3021 = vmatpush.bf16.msra.mxu0 %v2991
      %3022 = vmatmul.bf16.gmra.mxu0 %v2974
      %v3023 = vpop.f32.mrf.mxu0
      %v3024 = vadd.f32 0.0, %v3023
      %v3025 = vpop.f32.mrf.mxu0
      %v3026 = vadd.f32 0.0, %v3025
      %3027 = vmatmul.bf16.gmra.mxu0 %v2975
      %v3028 = vpop.f32.mrf.mxu0
      %v3029 = vadd.f32 0.0, %v3028
      %v3030 = vpop.f32.mrf.mxu0
      %v3031 = vadd.f32 0.0, %v3030
      %3032 = vmatmul.bf16.gmra.mxu0 %v2976
      %v3033 = vpop.f32.mrf.mxu0
      %v3034 = vadd.f32 0.0, %v3033
      %v3035 = vpop.f32.mrf.mxu0
      %v3036 = vadd.f32 0.0, %v3035
      %3037 = vmatmul.bf16.gmra.mxu0 %v2977
      %v3038 = vpop.f32.mrf.mxu0
      %v3039 = vadd.f32 0.0, %v3038
      %v3040 = vpop.f32.mrf.mxu0
      %v3041 = vadd.f32 0.0, %v3040
      %3042 = vdwg.mxu0
      %v3051 = vunpack.c.l.b16 %v2917
      %v3052 = vunpack.c.l.b16 %v2918
      %v3053 = vunpack.c.l.b16 %v2919
      %v3054 = vunpack.c.l.b16 %v2920
      %v3055 = vunpack.c.l.b16 %v2921
      %v3056 = vunpack.c.l.b16 %v2922
      %v3057 = vunpack.c.l.b16 %v2923
      %v3058 = vunpack.c.l.b16 %v2924
      %v3059 = vpack.c.b16 %v3052, %v3051
      %v3060 = vpack.c.b16 %v3054, %v3053
      %v3061 = vpack.c.b16 %v3056, %v3055
      %v3062 = vpack.c.b16 %v3058, %v3057
      %3067 = vmatpush.bf16.msra.mxu0 %v2948
      %3068 = vmatpush.bf16.msra.mxu0 %v2947
      %3069 = vmatpush.bf16.msra.mxu0 %v2946
      %3070 = vmatpush.bf16.msra.mxu0 %v2945
      %3071 = vmatpush.bf16.msra.mxu0 %v2944
      %3072 = vmatpush.bf16.msra.mxu0 %v2943
      %3073 = vmatpush.bf16.msra.mxu0 %v2942
      %3074 = vmatpush.bf16.msra.mxu0 %v2941
      %3075 = vmatmul.bf16.gmra.mxu0 %v3059
      %v3076 = vpop.f32.mrf.mxu0
      %v3077 = vadd.f32 %v3024, %v3076
      %v3078 = vpop.f32.mrf.mxu0
      %v3079 = vadd.f32 %v3026, %v3078
      %3080 = vmatmul.bf16.gmra.mxu0 %v3060
      %v3081 = vpop.f32.mrf.mxu0
      %v3082 = vadd.f32 %v3029, %v3081
      %v3083 = vpop.f32.mrf.mxu0
      %v3084 = vadd.f32 %v3031, %v3083
      %3085 = vmatmul.bf16.gmra.mxu0 %v3061
      %v3086 = vpop.f32.mrf.mxu0
      %v3087 = vadd.f32 %v3034, %v3086
      %v3088 = vpop.f32.mrf.mxu0
      %v3089 = vadd.f32 %v3036, %v3088
      %3090 = vmatmul.bf16.gmra.mxu0 %v3062
      %v3091 = vpop.f32.mrf.mxu0
      %v3092 = vadd.f32 %v3039, %v3091
      %v3093 = vpop.f32.mrf.mxu0
      %v3094 = vadd.f32 %v3041, %v3093
      %3095 = vdwg.mxu0
      %s3096 = scalar_lea.vmem %s14, 64
      %v3097 = vld [vmem:[%s3096] sm:$0xf]
      %v3098 = vld [vmem:[%s3096 + $0x4] sm:$0xf]
      %v3099 = vld [vmem:[%s3096 + $0x8] sm:$0xf]
      %v3100 = vld [vmem:[%s3096 + $0xc] sm:$0xf]
      %v3101 = vld [vmem:[%s3096 + $0x10] sm:$0xf]
      %v3102 = vld [vmem:[%s3096 + $0x14] sm:$0xf]
      %v3103 = vld [vmem:[%s3096 + $0x18] sm:$0xf]
      %v3104 = vld [vmem:[%s3096 + $0x1c] sm:$0xf]
      %v3113 = vunpack.c.l.b16 %v3097
      %v3114 = vunpack.c.l.b16 %v3098
      %v3115 = vunpack.c.l.b16 %v3099
      %v3116 = vunpack.c.l.b16 %v3100
      %v3117 = vunpack.c.l.b16 %v3101
      %v3118 = vunpack.c.l.b16 %v3102
      %v3119 = vunpack.c.l.b16 %v3103
      %v3120 = vunpack.c.l.b16 %v3104
      %v3121 = vpack.c.b16 %v3114, %v3113
      %v3122 = vpack.c.b16 %v3116, %v3115
      %v3123 = vpack.c.b16 %v3118, %v3117
      %v3124 = vpack.c.b16 %v3120, %v3119
      %3129 = vrot.lane.b32.xlu0 %v2941, 123
      %v3130 = vpop.permute.xlu0 %3129
      %3131 = vrot.lane.b32.xlu0 %v2942, 123
      %v3132 = vpop.permute.xlu0 %3131
      %3133 = vrot.lane.b32.xlu0 %v2943, 123
      %v3134 = vpop.permute.xlu0 %3133
      %3135 = vrot.lane.b32.xlu0 %v2944, 123
      %v3136 = vpop.permute.xlu0 %3135
      %3137 = vrot.lane.b32.xlu0 %v2945, 123
      %v3138 = vpop.permute.xlu0 %3137
      %3139 = vrot.lane.b32.xlu0 %v2946, 123
      %v3140 = vpop.permute.xlu0 %3139
      %3141 = vrot.lane.b32.xlu0 %v2947, 123
      %v3142 = vpop.permute.xlu0 %3141
      %3143 = vrot.lane.b32.xlu0 %v2948, 123
      %v3144 = vpop.permute.xlu0 %3143
      %3153 = vmatpush.bf16.msra.mxu0 %v3144
      %3154 = vmatpush.bf16.msra.mxu0 %v3142
      %3155 = vmatpush.bf16.msra.mxu0 %v3140
      %3156 = vmatpush.bf16.msra.mxu0 %v3138
      %3157 = vmatpush.bf16.msra.mxu0 %v3136
      %3158 = vmatpush.bf16.msra.mxu0 %v3134
      %3159 = vmatpush.bf16.msra.mxu0 %v3132
      %3160 = vmatpush.bf16.msra.mxu0 %v3130
      %3161 = vmatmul.bf16.gmra.mxu0 %v3121
      %v3162 = vpop.f32.mrf.mxu0
      %v3163 = vadd.f32 0.0, %v3162
      %v3164 = vpop.f32.mrf.mxu0
      %v3165 = vadd.f32 0.0, %v3164
      %3166 = vmatmul.bf16.gmra.mxu0 %v3122
      %v3167 = vpop.f32.mrf.mxu0
      %v3168 = vadd.f32 0.0, %v3167
      %v3169 = vpop.f32.mrf.mxu0
      %v3170 = vadd.f32 0.0, %v3169
      %3171 = vmatmul.bf16.gmra.mxu0 %v3123
      %v3172 = vpop.f32.mrf.mxu0
      %v3173 = vadd.f32 0.0, %v3172
      %v3174 = vpop.f32.mrf.mxu0
      %v3175 = vadd.f32 0.0, %v3174
      %3176 = vmatmul.bf16.gmra.mxu0 %v3124
      %v3177 = vpop.f32.mrf.mxu0
      %v3178 = vadd.f32 0.0, %v3177
      %v3179 = vpop.f32.mrf.mxu0
      %v3180 = vadd.f32 0.0, %v3179
      %3181 = vdwg.mxu0
      %v3182 = vadd.f32 %v3077, %v3163
      %v3183 = vadd.f32 %v3079, %v3165
      %v3184 = vadd.f32 %v3082, %v3168
      %v3185 = vadd.f32 %v3084, %v3170
      %v3186 = vadd.f32 %v3087, %v3173
      %v3187 = vadd.f32 %v3089, %v3175
      %v3188 = vadd.f32 %v3092, %v3178
      %v3189 = vadd.f32 %v3094, %v3180
      %s3190 = scalar_lea.vmem %s14, 96
      %v3191 = vld [vmem:[%s3190] sm:$0xf]
      %v3192 = vld [vmem:[%s3190 + $0x4] sm:$0xf]
      %v3193 = vld [vmem:[%s3190 + $0x8] sm:$0xf]
      %v3194 = vld [vmem:[%s3190 + $0xc] sm:$0xf]
      %v3195 = vld [vmem:[%s3190 + $0x10] sm:$0xf]
      %v3196 = vld [vmem:[%s3190 + $0x14] sm:$0xf]
      %v3197 = vld [vmem:[%s3190 + $0x18] sm:$0xf]
      %v3198 = vld [vmem:[%s3190 + $0x1c] sm:$0xf]
      %v3207 = vunpack.c.l.b16 %v3191
      %v3208 = vunpack.c.l.b16 %v3192
      %v3209 = vunpack.c.l.b16 %v3193
      %v3210 = vunpack.c.l.b16 %v3194
      %v3211 = vunpack.c.l.b16 %v3195
      %v3212 = vunpack.c.l.b16 %v3196
      %v3213 = vunpack.c.l.b16 %v3197
      %v3214 = vunpack.c.l.b16 %v3198
      %v3215 = vpack.c.b16 %v3208, %v3207
      %v3216 = vpack.c.b16 %v3210, %v3209
      %v3217 = vpack.c.b16 %v3212, %v3211
      %v3218 = vpack.c.b16 %v3214, %v3213
      %3223 = vrot.lane.b32.xlu0 %v2941, 122
      %v3224 = vpop.permute.xlu0 %3223
      %3225 = vrot.lane.b32.xlu0 %v2942, 122
      %v3226 = vpop.permute.xlu0 %3225
      %3227 = vrot.lane.b32.xlu0 %v2943, 122
      %v3228 = vpop.permute.xlu0 %3227
      %3229 = vrot.lane.b32.xlu0 %v2944, 122
      %v3230 = vpop.permute.xlu0 %3229
      %3231 = vrot.lane.b32.xlu0 %v2945, 122
      %v3232 = vpop.permute.xlu0 %3231
      %3233 = vrot.lane.b32.xlu0 %v2946, 122
      %v3234 = vpop.permute.xlu0 %3233
      %3235 = vrot.lane.b32.xlu0 %v2947, 122
      %v3236 = vpop.permute.xlu0 %3235
      %3237 = vrot.lane.b32.xlu0 %v2948, 122
      %v3238 = vpop.permute.xlu0 %3237
      %3247 = vmatpush.bf16.msra.mxu0 %v3238
      %3248 = vmatpush.bf16.msra.mxu0 %v3236
      %3249 = vmatpush.bf16.msra.mxu0 %v3234
      %3250 = vmatpush.bf16.msra.mxu0 %v3232
      %3251 = vmatpush.bf16.msra.mxu0 %v3230
      %3252 = vmatpush.bf16.msra.mxu0 %v3228
      %3253 = vmatpush.bf16.msra.mxu0 %v3226
      %3254 = vmatpush.bf16.msra.mxu0 %v3224
      %3255 = vmatmul.bf16.gmra.mxu0 %v3215
      %v3256 = vpop.f32.mrf.mxu0
      %v3257 = vadd.f32 0.0, %v3256
      %v3258 = vpop.f32.mrf.mxu0
      %v3259 = vadd.f32 0.0, %v3258
      %3260 = vmatmul.bf16.gmra.mxu0 %v3216
      %v3261 = vpop.f32.mrf.mxu0
      %v3262 = vadd.f32 0.0, %v3261
      %v3263 = vpop.f32.mrf.mxu0
      %v3264 = vadd.f32 0.0, %v3263
      %3265 = vmatmul.bf16.gmra.mxu0 %v3217
      %v3266 = vpop.f32.mrf.mxu0
      %v3267 = vadd.f32 0.0, %v3266
      %v3268 = vpop.f32.mrf.mxu0
      %v3269 = vadd.f32 0.0, %v3268
      %3270 = vmatmul.bf16.gmra.mxu0 %v3218
      %v3271 = vpop.f32.mrf.mxu0
      %v3272 = vadd.f32 0.0, %v3271
      %v3273 = vpop.f32.mrf.mxu0
      %v3274 = vadd.f32 0.0, %v3273
      %3275 = vdwg.mxu0
      %v3276 = vadd.f32 %v3182, %v3257
      %v3277 = vadd.f32 %v3183, %v3259
      %v3278 = vadd.f32 %v3184, %v3262
      %v3279 = vadd.f32 %v3185, %v3264
      %v3280 = vadd.f32 %v3186, %v3267
      %v3281 = vadd.f32 %v3187, %v3269
      %v3282 = vadd.f32 %v3188, %v3272
      %v3283 = vadd.f32 %v3189, %v3274
      %v3284 = vld [vmem:[%s17] sm:$0x1]
      %v3286 = vperm.slane %v3284, 0
      %v3288 = vmul.f32 %v3276, %v3286
      %v3289 = vmul.f32 %v3277, %v3286
      %v3290 = vmul.f32 %v3278, %v3286
      %v3291 = vmul.f32 %v3279, %v3286
      %v3292 = vmul.f32 %v3280, %v3286
      %v3293 = vmul.f32 %v3281, %v3286
      %v3294 = vmul.f32 %v3282, %v3286
      %v3295 = vmul.f32 %v3283, %v3286
      %vm3296 = vcmask 162816
      %v3297 = vsel %vm3296, %v3288, 0.0
      %3298 = vadd.xlane.f32.xlu0 %v3297
      %v3299 = vpop.xlane.xlu0 %3298
      %v3300 = vsel %vm3296, %v3289, 0.0
      %3301 = vadd.xlane.f32.xlu0 %v3300
      %v3302 = vpop.xlane.xlu0 %3301
      %v3303 = vsel %vm3296, %v3290, 0.0
      %3304 = vadd.xlane.f32.xlu0 %v3303
      %v3305 = vpop.xlane.xlu0 %3304
      %v3306 = vsel %vm3296, %v3291, 0.0
      %3307 = vadd.xlane.f32.xlu0 %v3306
      %v3308 = vpop.xlane.xlu0 %3307
      %v3309 = vsel %vm3296, %v3292, 0.0
      %3310 = vadd.xlane.f32.xlu0 %v3309
      %v3311 = vpop.xlane.xlu0 %3310
      %v3312 = vsel %vm3296, %v3293, 0.0
      %3313 = vadd.xlane.f32.xlu0 %v3312
      %v3314 = vpop.xlane.xlu0 %3313
      %v3315 = vsel %vm3296, %v3294, 0.0
      %3316 = vadd.xlane.f32.xlu0 %v3315
      %v3317 = vpop.xlane.xlu0 %3316
      %v3318 = vsel %vm3296, %v3295, 0.0
      %3319 = vadd.xlane.f32.xlu0 %v3318
      %v3320 = vpop.xlane.xlu0 %3319
      %v3321 = vmul.f32 %v3299, 0.0625
      %v3322 = vmul.f32 %v3302, 0.0625
      %v3323 = vmul.f32 %v3305, 0.0625
      %v3324 = vmul.f32 %v3308, 0.0625
      %v3325 = vmul.f32 %v3311, 0.0625
      %v3326 = vmul.f32 %v3314, 0.0625
      %v3327 = vmul.f32 %v3317, 0.0625
      %v3328 = vmul.f32 %v3320, 0.0625
      %v3329 = vsub.f32 %v3276, %v3321
      %v3330 = vsub.f32 %v3277, %v3322
      %v3331 = vsub.f32 %v3278, %v3323
      %v3332 = vsub.f32 %v3279, %v3324
      %v3333 = vsub.f32 %v3280, %v3325
      %v3334 = vsub.f32 %v3281, %v3326
      %v3335 = vsub.f32 %v3282, %v3327
      %v3336 = vsub.f32 %v3283, %v3328
      %v3337 = vmul.f32 %v3329, %v3329
      %v3338 = vmul.f32 %v3330, %v3330
      %v3339 = vmul.f32 %v3331, %v3331
      %v3340 = vmul.f32 %v3332, %v3332
      %v3341 = vmul.f32 %v3333, %v3333
      %v3342 = vmul.f32 %v3334, %v3334
      %v3343 = vmul.f32 %v3335, %v3335
      %v3344 = vmul.f32 %v3336, %v3336
      %v3345 = vmul.f32 %v3337, %v3286
      %v3346 = vmul.f32 %v3338, %v3286
      %v3347 = vmul.f32 %v3339, %v3286
      %v3348 = vmul.f32 %v3340, %v3286
      %v3349 = vmul.f32 %v3341, %v3286
      %v3350 = vmul.f32 %v3342, %v3286
      %v3351 = vmul.f32 %v3343, %v3286
      %v3352 = vmul.f32 %v3344, %v3286
      %v3353 = vsel %vm3296, %v3345, 0.0
      %3354 = vadd.xlane.f32.xlu0 %v3353
      %v3355 = vpop.xlane.xlu0 %3354
      %v3356 = vsel %vm3296, %v3346, 0.0
      %3357 = vadd.xlane.f32.xlu0 %v3356
      %v3358 = vpop.xlane.xlu0 %3357
      %v3359 = vsel %vm3296, %v3347, 0.0
      %3360 = vadd.xlane.f32.xlu0 %v3359
      %v3361 = vpop.xlane.xlu0 %3360
      %v3362 = vsel %vm3296, %v3348, 0.0
      %3363 = vadd.xlane.f32.xlu0 %v3362
      %v3364 = vpop.xlane.xlu0 %3363
      %v3365 = vsel %vm3296, %v3349, 0.0
      %3366 = vadd.xlane.f32.xlu0 %v3365
      %v3367 = vpop.xlane.xlu0 %3366
      %v3368 = vsel %vm3296, %v3350, 0.0
      %3369 = vadd.xlane.f32.xlu0 %v3368
      %v3370 = vpop.xlane.xlu0 %3369
      %v3371 = vsel %vm3296, %v3351, 0.0
      %3372 = vadd.xlane.f32.xlu0 %v3371
      %v3373 = vpop.xlane.xlu0 %3372
      %v3374 = vsel %vm3296, %v3352, 0.0
      %3375 = vadd.xlane.f32.xlu0 %v3374
      %v3376 = vpop.xlane.xlu0 %3375
      %v3377 = vmul.f32 %v3355, 0.0625
      %v3378 = vmul.f32 %v3358, 0.0625
      %v3379 = vmul.f32 %v3361, 0.0625
      %v3380 = vmul.f32 %v3364, 0.0625
      %v3381 = vmul.f32 %v3367, 0.0625
      %v3382 = vmul.f32 %v3370, 0.0625
      %v3383 = vmul.f32 %v3373, 0.0625
      %v3384 = vmul.f32 %v3376, 0.0625
      %v3385 = vadd.f32 %v3377, 1e-05
      %v3386 = vadd.f32 %v3378, 1e-05
      %v3387 = vadd.f32 %v3379, 1e-05
      %v3388 = vadd.f32 %v3380, 1e-05
      %v3389 = vadd.f32 %v3381, 1e-05
      %v3390 = vadd.f32 %v3382, 1e-05
      %v3391 = vadd.f32 %v3383, 1e-05
      %v3392 = vadd.f32 %v3384, 1e-05
      %v3393 = vrsqrt.pop %v3385
      %v3394 = vmul.f32 %v3393, %v3385
      %v3395 = vmul.f32 %v3394, %v3393
      %v3396 = vmul.f32 0.5, %v3395
      %v3397 = vsub.f32 1.5, %v3396
      %v3398 = vmul.f32 %v3393, %v3397
      %vm3399 = vweird.f32 %v3385
      %vm3400 = vweird.f32 %v3393
      %vm3401 = vmor %vm3399, %vm3400
      %v3402 = vsel %vm3401, %v3393, %v3398
      %v3403 = vrsqrt.pop %v3386
      %v3404 = vmul.f32 %v3403, %v3386
      %v3405 = vmul.f32 %v3404, %v3403
      %v3406 = vmul.f32 0.5, %v3405
      %v3407 = vsub.f32 1.5, %v3406
      %v3408 = vmul.f32 %v3403, %v3407
      %vm3409 = vweird.f32 %v3386
      %vm3410 = vweird.f32 %v3403
      %vm3411 = vmor %vm3409, %vm3410
      %v3412 = vsel %vm3411, %v3403, %v3408
      %v3413 = vrsqrt.pop %v3387
      %v3414 = vmul.f32 %v3413, %v3387
      %v3415 = vmul.f32 %v3414, %v3413
      %v3416 = vmul.f32 0.5, %v3415
      %v3417 = vsub.f32 1.5, %v3416
      %v3418 = vmul.f32 %v3413, %v3417
      %vm3419 = vweird.f32 %v3387
      %vm3420 = vweird.f32 %v3413
      %vm3421 = vmor %vm3419, %vm3420
      %v3422 = vsel %vm3421, %v3413, %v3418
      %v3423 = vrsqrt.pop %v3388
      %v3424 = vmul.f32 %v3423, %v3388
      %v3425 = vmul.f32 %v3424, %v3423
      %v3426 = vmul.f32 0.5, %v3425
      %v3427 = vsub.f32 1.5, %v3426
      %v3428 = vmul.f32 %v3423, %v3427
      %vm3429 = vweird.f32 %v3388
      %vm3430 = vweird.f32 %v3423
      %vm3431 = vmor %vm3429, %vm3430
      %v3432 = vsel %vm3431, %v3423, %v3428
      %v3433 = vrsqrt.pop %v3389
      %v3434 = vmul.f32 %v3433, %v3389
      %v3435 = vmul.f32 %v3434, %v3433
      %v3436 = vmul.f32 0.5, %v3435
      %v3437 = vsub.f32 1.5, %v3436
      %v3438 = vmul.f32 %v3433, %v3437
      %vm3439 = vweird.f32 %v3389
      %vm3440 = vweird.f32 %v3433
      %vm3441 = vmor %vm3439, %vm3440
      %v3442 = vsel %vm3441, %v3433, %v3438
      %v3443 = vrsqrt.pop %v3390
      %v3444 = vmul.f32 %v3443, %v3390
      %v3445 = vmul.f32 %v3444, %v3443
      %v3446 = vmul.f32 0.5, %v3445
      %v3447 = vsub.f32 1.5, %v3446
      %v3448 = vmul.f32 %v3443, %v3447
      %vm3449 = vweird.f32 %v3390
      %vm3450 = vweird.f32 %v3443
      %vm3451 = vmor %vm3449, %vm3450
      %v3452 = vsel %vm3451, %v3443, %v3448
      %v3453 = vrsqrt.pop %v3391
      %v3454 = vmul.f32 %v3453, %v3391
      %v3455 = vmul.f32 %v3454, %v3453
      %v3456 = vmul.f32 0.5, %v3455
      %v3457 = vsub.f32 1.5, %v3456
      %v3458 = vmul.f32 %v3453, %v3457
      %vm3459 = vweird.f32 %v3391
      %vm3460 = vweird.f32 %v3453
      %vm3461 = vmor %vm3459, %vm3460
      %v3462 = vsel %vm3461, %v3453, %v3458
      %v3463 = vrsqrt.pop %v3392
      %v3464 = vmul.f32 %v3463, %v3392
      %v3465 = vmul.f32 %v3464, %v3463
      %v3466 = vmul.f32 0.5, %v3465
      %v3467 = vsub.f32 1.5, %v3466
      %v3468 = vmul.f32 %v3463, %v3467
      %vm3469 = vweird.f32 %v3392
      %vm3470 = vweird.f32 %v3463
      %vm3471 = vmor %vm3469, %vm3470
      %v3472 = vsel %vm3471, %v3463, %v3468
      %v3473 = vmul.f32 %v3329, %v3402
      %v3474 = vmul.f32 %v3330, %v3412
      %v3475 = vmul.f32 %v3331, %v3422
      %v3476 = vmul.f32 %v3332, %v3432
      %v3477 = vmul.f32 %v3333, %v3442
      %v3478 = vmul.f32 %v3334, %v3452
      %v3479 = vmul.f32 %v3335, %v3462
      %v3480 = vmul.f32 %v3336, %v3472
      %v3481 = vld [vmem:[%s15] sm:$0xff]
      %v3482 = vld [vmem:[%s15 + $0x8] sm:$0xff]
      %v3483 = vld [vmem:[%s15 + $0x10] sm:$0xff]
      %v3484 = vld [vmem:[%s15 + $0x18] sm:$0xff]
      %v3485 = vld [vmem:[%s15 + $0x20] sm:$0xff]
      %v3486 = vld [vmem:[%s15 + $0x28] sm:$0xff]
      %v3487 = vld [vmem:[%s15 + $0x30] sm:$0xff]
      %v3488 = vld [vmem:[%s15 + $0x38] sm:$0xff]
      %3490 = vset.pattern.permute.xlu0 0
      %3491 = vperm.xlu0 %3490, %v3481
      %v3492 = vpop.permute.xlu0 %3491
      %3495 = vset.pattern.permute.xlu0 0
      %3496 = vperm.xlu0 %3495, %v3482
      %v3497 = vpop.permute.xlu0 %3496
      %3500 = vset.pattern.permute.xlu0 0
      %3501 = vperm.xlu0 %3500, %v3483
      %v3502 = vpop.permute.xlu0 %3501
      %3505 = vset.pattern.permute.xlu0 0
      %3506 = vperm.xlu0 %3505, %v3484
      %v3507 = vpop.permute.xlu0 %3506
      %3510 = vset.pattern.permute.xlu0 0
      %3511 = vperm.xlu0 %3510, %v3485
      %v3512 = vpop.permute.xlu0 %3511
      %3515 = vset.pattern.permute.xlu0 0
      %3516 = vperm.xlu0 %3515, %v3486
      %v3517 = vpop.permute.xlu0 %3516
      %3520 = vset.pattern.permute.xlu0 0
      %3521 = vperm.xlu0 %3520, %v3487
      %v3522 = vpop.permute.xlu0 %3521
      %3525 = vset.pattern.permute.xlu0 0
      %3526 = vperm.xlu0 %3525, %v3488
      %v3527 = vpop.permute.xlu0 %3526
      %v3529 = vmul.f32 %v3473, %v3492
      %v3530 = vmul.f32 %v3474, %v3497
      %v3531 = vmul.f32 %v3475, %v3502
      %v3532 = vmul.f32 %v3476, %v3507
      %v3533 = vmul.f32 %v3477, %v3512
      %v3534 = vmul.f32 %v3478, %v3517
      %v3535 = vmul.f32 %v3479, %v3522
      %v3536 = vmul.f32 %v3480, %v3527
      %v3537 = vld [vmem:[%s16] sm:$0xff]
      %v3538 = vld [vmem:[%s16 + $0x8] sm:$0xff]
      %v3539 = vld [vmem:[%s16 + $0x10] sm:$0xff]
      %v3540 = vld [vmem:[%s16 + $0x18] sm:$0xff]
      %v3541 = vld [vmem:[%s16 + $0x20] sm:$0xff]
      %v3542 = vld [vmem:[%s16 + $0x28] sm:$0xff]
      %v3543 = vld [vmem:[%s16 + $0x30] sm:$0xff]
      %v3544 = vld [vmem:[%s16 + $0x38] sm:$0xff]
      %3546 = vset.pattern.permute.xlu0 0
      %3547 = vperm.xlu0 %3546, %v3537
      %v3548 = vpop.permute.xlu0 %3547
      %3551 = vset.pattern.permute.xlu0 0
      %3552 = vperm.xlu0 %3551, %v3538
      %v3553 = vpop.permute.xlu0 %3552
      %3556 = vset.pattern.permute.xlu0 0
      %3557 = vperm.xlu0 %3556, %v3539
      %v3558 = vpop.permute.xlu0 %3557
      %3561 = vset.pattern.permute.xlu0 0
      %3562 = vperm.xlu0 %3561, %v3540
      %v3563 = vpop.permute.xlu0 %3562
      %3566 = vset.pattern.permute.xlu0 0
      %3567 = vperm.xlu0 %3566, %v3541
      %v3568 = vpop.permute.xlu0 %3567
      %3571 = vset.pattern.permute.xlu0 0
      %3572 = vperm.xlu0 %3571, %v3542
      %v3573 = vpop.permute.xlu0 %3572
      %3576 = vset.pattern.permute.xlu0 0
      %3577 = vperm.xlu0 %3576, %v3543
      %v3578 = vpop.permute.xlu0 %3577
      %3581 = vset.pattern.permute.xlu0 0
      %3582 = vperm.xlu0 %3581, %v3544
      %v3583 = vpop.permute.xlu0 %3582
      %v3585 = vadd.f32 %v3529, %v3548
      %v3586 = vadd.f32 %v3530, %v3553
      %v3587 = vadd.f32 %v3531, %v3558
      %v3588 = vadd.f32 %v3532, %v3563
      %v3589 = vadd.f32 %v3533, %v3568
      %v3590 = vadd.f32 %v3534, %v3573
      %v3591 = vadd.f32 %v3535, %v3578
      %v3592 = vadd.f32 %v3536, %v3583
      %vm3593 = vcmp.ge.f32.partialorder %v3585, 0.0
      %vm3594 = vcmp.ge.f32.partialorder %v3586, 0.0
      %vm3595 = vcmp.ge.f32.partialorder %v3587, 0.0
      %vm3596 = vcmp.ge.f32.partialorder %v3588, 0.0
      %vm3597 = vcmp.ge.f32.partialorder %v3589, 0.0
      %vm3598 = vcmp.ge.f32.partialorder %v3590, 0.0
      %vm3599 = vcmp.ge.f32.partialorder %v3591, 0.0
      %vm3600 = vcmp.ge.f32.partialorder %v3592, 0.0
      %v3601 = vmul.f32 %v3585, 0.2
      %v3602 = vmul.f32 %v3586, 0.2
      %v3603 = vmul.f32 %v3587, 0.2
      %v3604 = vmul.f32 %v3588, 0.2
      %v3605 = vmul.f32 %v3589, 0.2
      %v3606 = vmul.f32 %v3590, 0.2
      %v3607 = vmul.f32 %v3591, 0.2
      %v3608 = vmul.f32 %v3592, 0.2
      %v3609 = vsel %vm3593, %v3585, %v3601
      %v3610 = vsel %vm3594, %v3586, %v3602
      %v3611 = vsel %vm3595, %v3587, %v3603
      %v3612 = vsel %vm3596, %v3588, %v3604
      %v3613 = vsel %vm3597, %v3589, %v3605
      %v3614 = vsel %vm3598, %v3590, %v3606
      %v3615 = vsel %vm3599, %v3591, %v3607
      %v3616 = vsel %vm3600, %v3592, %v3608
      %v3617 = vld [vmem:[%s18] sm:$0xff]
      %v3618 = vld [vmem:[%s18 + $0x8] sm:$0xff]
      %v3619 = vld [vmem:[%s18 + $0x10] sm:$0xff]
      %v3620 = vld [vmem:[%s18 + $0x18] sm:$0xff]
      %v3621 = vld [vmem:[%s18 + $0x20] sm:$0xff]
      %v3622 = vld [vmem:[%s18 + $0x28] sm:$0xff]
      %v3623 = vld [vmem:[%s18 + $0x30] sm:$0xff]
      %v3624 = vld [vmem:[%s18 + $0x38] sm:$0xff]
      %v3625 = vmul.f32 %v3609, %v3617
      %v3626 = vmul.f32 %v3610, %v3618
      %v3627 = vmul.f32 %v3611, %v3619
      %v3628 = vmul.f32 %v3612, %v3620
      %v3629 = vmul.f32 %v3613, %v3621
      %v3630 = vmul.f32 %v3614, %v3622
      %v3631 = vmul.f32 %v3615, %v3623
      %v3632 = vmul.f32 %v3616, %v3624
      %v3633 = vsel %vm3296, %v3625, 0.0
      %3634 = vadd.xlane.f32.xlu0 %v3633
      %v3635 = vpop.xlane.xlu0 %3634
      %v3636 = vsel %vm3296, %v3626, 0.0
      %3637 = vadd.xlane.f32.xlu0 %v3636
      %v3638 = vpop.xlane.xlu0 %3637
      %v3639 = vsel %vm3296, %v3627, 0.0
      %3640 = vadd.xlane.f32.xlu0 %v3639
      %v3641 = vpop.xlane.xlu0 %3640
      %v3642 = vsel %vm3296, %v3628, 0.0
      %3643 = vadd.xlane.f32.xlu0 %v3642
      %v3644 = vpop.xlane.xlu0 %3643
      %v3645 = vsel %vm3296, %v3629, 0.0
      %3646 = vadd.xlane.f32.xlu0 %v3645
      %v3647 = vpop.xlane.xlu0 %3646
      %v3648 = vsel %vm3296, %v3630, 0.0
      %3649 = vadd.xlane.f32.xlu0 %v3648
      %v3650 = vpop.xlane.xlu0 %3649
      %v3651 = vsel %vm3296, %v3631, 0.0
      %3652 = vadd.xlane.f32.xlu0 %v3651
      %v3653 = vpop.xlane.xlu0 %3652
      %v3654 = vsel %vm3296, %v3632, 0.0
      %3655 = vadd.xlane.f32.xlu0 %v3654
      %v3656 = vpop.xlane.xlu0 %3655
      %v3657 = vadd.f32 %v3635, %v3638
      %v3658 = vadd.f32 %v3657, %v3641
      %v3659 = vadd.f32 %v3658, %v3644
      %v3660 = vadd.f32 %v3659, %v3647
      %v3661 = vadd.f32 %v3660, %v3650
      %v3662 = vadd.f32 %v3661, %v3653
      %v3663 = vadd.f32 %v3662, %v3656
      %v3664 = vrot.slane %v3663, 4
      %v3665 = vadd.f32 %v3663, %v3664
      %v3666 = vrot.slane %v3665, 2
      %v3667 = vadd.f32 %v3665, %v3666
      %v3668 = vrot.slane %v3667, 1
      %v3669 = vadd.f32 %v3667, %v3668
      %v3670 = vld [vmem:[#allocation5] sm:$0x1]
      %v3671 = vadd.f32 %v3669, %v3670
      %vm3672 = vcmask 0
      %3673 = vst.msk [vmem:[%s627] sm:$0x1] %vm3672, %v3671
      %p3674 = scmp.lt.s32.totalorder %s33, 1
      %s3675 = scalar_select %p3674, %s33, 1
      %s3676 = scalar_lea.vmem %s20, %s3675
      // Predicated region
      $region101: #{discriminator_forward.1} parent=99 // pred_check
        %p3677 = pneg %p476
      $region102: #{discriminator_forward.1} parent=99 // pred_check_branch
        %3679 = sbr.rel (%p3677) target = $region104
      $region103: #{discriminator_forward.1} parent=99 // pred_region
        _
      $region104: #{discriminator_forward.1} parent=99 // pred_fallthru
        _
    $region100: #{discriminator_forward.1} parent=5 // pred_fallthru
      _
    %p3680 = scmp.le.s32.totalorder 2, %s28
    // Predicated region
    $region105: #{discriminator_forward.1} parent=5 // pred_check
      %p3681 = pneg %p3680
    $region106: #{discriminator_forward.1} parent=5 // pred_check_branch
      %3683 = sbr.rel (%p3681) target = $region108
    $region107: #{discriminator_forward.1} parent=5 // pred_region
      %s3684 = ssub.s32 %s28, 2
      // Predicated region
      $region109: #{discriminator_forward.1} parent=107 // pred_check
        %p3685 = pneg %p482
      $region110: #{discriminator_forward.1} parent=107 // pred_check_branch
        %3687 = sbr.rel (%p3685) target = $region112
      $region111: #{discriminator_forward.1} parent=107 // pred_region
        %p3688 = scmp.lt.s32.totalorder %s34, 1
        %s3689 = scalar_select %p3688, %s34, 1
        %s3690 = scalar_lea.vmem %s20, %s3689
      $region112: #{discriminator_forward.1} parent=107 // pred_fallthru
        _
    $region108: #{discriminator_forward.1} parent=5 // pred_fallthru
      _
  $region6: #{discriminator_forward.1} parent=0 // loop_footer
    %s32 = sadd.s32 1, %s28
  $region7: #{discriminator_forward.1} parent=0 // loop_footer_branch
    %27 = sbr.rel target = $region3
  $region8: #{discriminator_forward.1} parent=0 // loop_exit
    _

</llo_original>
